<compile_context>
chip_gen: v6e
topology: v6e:2x2x1
jax: 0.10.0
libtpu: 0.0.40
codegen_flags: <defaults>
</compile_context>

<pallas_src>
import functools

import jax
import jax.numpy as jnp
from jax.experimental import pallas as pl
from jax.experimental.pallas import tpu as pltpu

LEAKY_SLOPE = 0.01  # nn.LeakyReLU default negative_slope


def _vmem_spec():
    # Whole-array block resident in VMEM (total working set here is ~1 MB).
    return pl.BlockSpec(memory_space=pltpu.MemorySpace.VMEM)


# ----------------------------- fused Pallas kernel --------------------------


def _fused_kernel(des_ref, tweet_ref, num_ref, cat_ref, a_ref,
                  wdes_ref, wtw_ref, wnum_ref, wcat_ref, bemb_ref,
                  winp_ref, binp_ref,
                  w0_ref, w1_ref, wroot_ref, brgcn_ref,
                  wout1_ref, bout1_ref, wout2_ref, bout2_ref,
                  o_ref, *, n_nodes, n_rgcn_layers):
    f32 = jnp.float32
    bf16 = jnp.bfloat16

    def leaky(v):
        # max(v, 0.01*v) == LeakyReLU(v) for slope in (0,1): single VALU op.
        return jnp.maximum(v, LEAKY_SLOPE * v)

    def mm(a, b):
        return jnp.dot(a, b, preferred_element_type=f32)

    # ---- embedding linears: weights are zero-padded into their 32-column
    # block of [fan_in, 128], so the four results sum to the column concat
    # (blocks are disjoint) and LeakyReLU applies elementwise afterwards.
    x = mm(des_ref[...], wdes_ref[...])
    x = x + mm(tweet_ref[...], wtw_ref[...])
    x = x + mm(num_ref[...], wnum_ref[...])
    x = x + mm(cat_ref[...], wcat_ref[...])
    x = leaky(x + bemb_ref[...])                      # [N, E] f32

    # ---- input linear + LeakyReLU
    x = leaky(mm(x.astype(bf16), winp_ref[...]) + binp_ref[...])

    a = a_ref[...]          # [2N, N]  bf16: stacked row-normalized A0, A1
    w0 = w0_ref[...]        # [E, E]   bf16
    w1 = w1_ref[...]        # [E, E]   bf16
    wr = wroot_ref[...]     # [E, E]   bf16
    b_r = brgcn_ref[...]    # [1, E]   f32

    # ---- 4 stacked RGCN layers (no activation between them in the spec).
    # TODO(synk): dropout between layers is eval-mode identity; stochastic
    # training-mode dropout would need pltpu.prng_* inside this kernel.
    for _ in range(n_rgcn_layers):
        xb = x.astype(bf16)
        h = mm(a, xb)                                 # [2N, E] f32 (one matmul)
        hb = h.astype(bf16)
        # Sublane (row) slices, 128-row aligned -> no lane-crossing copies.
        x = (mm(hb[:n_nodes], w0)
             + mm(hb[n_nodes:], w1)
             + mm(xb, wr)
             + b_r)                                   # [N, E] f32

    # ---- output head: out1 (+LeakyReLU), out2 padded to 128 lanes so the
    # final store is a full-lane unmasked vst (wrapper slices to width 2).
    y = leaky(mm(x.astype(bf16), wout1_ref[...]) + bout1_ref[...])
    o_ref[...] = mm(y.astype(bf16), wout2_ref[...]) + bout2_ref[...]


# ------------------------------ glue (plain JAX) ----------------------------


def build_rel_adj(edge_index, edge_type, num_nodes, rel):
    """Dense row-normalized adjacency for one relation (scatter-mean)."""
    src = edge_index[0]
    dst = edge_index[1]
    mask = (edge_type == rel).astype(jnp.float32)
    a = jnp.zeros((num_nodes, num_nodes), jnp.float32).at[dst, src].add(mask)
    deg = a.sum(axis=1, keepdims=True)
    return jnp.where(deg > 0, a / jnp.maximum(deg, 1.0), 0.0)


def init_params(key, des_size=768, tweet_size=768, num_prop_size=6,
                cat_prop_size=11, emb=128):
    keys = jax.random.split(key, 12)

    def lin(k, fan_in, fan_out):
        k1, k2 = jax.random.split(k)
        bound = 1.0 / (fan_in ** 0.5)
        w = jax.random.uniform(k1, (fan_in, fan_out), jnp.float32, -bound, bound)
        b = jax.random.uniform(k2, (fan_out,), jnp.float32, -bound, bound)
        return w, b

    p = {
        "des": lin(keys[0], des_size, emb // 4),
        "tweet": lin(keys[1], tweet_size, emb // 4),
        "num": lin(keys[2], num_prop_size, emb // 4),
        "cat": lin(keys[3], cat_prop_size, emb // 4),
        "inp": lin(keys[4], emb, emb),
        "out1": lin(keys[5], emb, emb),
        "out2": lin(keys[6], emb, 2),
        # RGCNConv(emb, emb, num_relations=2): per-relation weights, root, bias
        "rgcn_w0": jax.random.uniform(keys[7], (emb, emb), jnp.float32, -0.1, 0.1),
        "rgcn_w1": jax.random.uniform(keys[8], (emb, emb), jnp.float32, -0.1, 0.1),
        "rgcn_root": jax.random.uniform(keys[9], (emb, emb), jnp.float32, -0.1, 0.1),
        "rgcn_b": jax.random.uniform(keys[10], (emb,), jnp.float32, -0.1, 0.1),
    }
    return p


def drgcn_forward(params, des, tweet, num_prop, cat_prop, edge_index, edge_type):
    num_nodes = des.shape[0]
    emb = params["inp"][0].shape[0]
    quarter = emb // 4
    bf = jnp.bfloat16
    n_rgcn_layers = 4

    # Stacked row-normalized adjacencies [2N, N]: one aggregation matmul/layer.
    a0 = build_rel_adj(edge_index, edge_type, num_nodes, 0)
    a1 = build_rel_adj(edge_index, edge_type, num_nodes, 1)
    a_stack = jnp.concatenate([a0, a1], axis=0).astype(bf)

    # Embedding weights zero-padded into their 32-column block of [fan_in, emb]
    # -> four full-lane matmuls summed, no in-kernel lane concat.
    def pad_cols(w, col0, width):
        buf = jnp.zeros((w.shape[0], width), w.dtype)
        return buf.at[:, col0:col0 + w.shape[1]].set(w)

    w_des = pad_cols(params["des"][0], 0 * quarter, emb).astype(bf)
    w_tw = pad_cols(params["tweet"][0], 1 * quarter, emb).astype(bf)
    w_num = pad_cols(params["num"][0], 2 * quarter, emb).astype(bf)
    w_cat = pad_cols(params["cat"][0], 3 * quarter, emb).astype(bf)
    b_emb = jnp.concatenate([params["des"][1], params["tweet"][1],
                             params["num"][1], params["cat"][1]]).reshape(1, emb)

    # Lane-dense output head: pad out2 (emb -> 2) to emb output lanes.
    w_out2 = pad_cols(params["out2"][0], 0, emb).astype(bf)
    b_out2 = jnp.zeros((1, emb), jnp.float32).at[0, :2].set(params["out2"][1])

    args = (
        des.astype(bf), tweet.astype(bf), num_prop.astype(bf), cat_prop.astype(bf),
        a_stack,
        w_des, w_tw, w_num, w_cat, b_emb,
        params["inp"][0].astype(bf), params["inp"][1].reshape(1, emb),
        params["rgcn_w0"].astype(bf), params["rgcn_w1"].astype(bf),
        params["rgcn_root"].astype(bf), params["rgcn_b"].reshape(1, emb),
        params["out1"][0].astype(bf), params["out1"][1].reshape(1, emb),
        w_out2, b_out2,
    )

    # Advisory cost estimate for XLA scheduling of the surrounding ops.
    feat_in = des.shape[1] + tweet.shape[1] + num_prop.shape[1] + cat_prop.shape[1]
    flops = 2 * num_nodes * emb * feat_in                        # embedding matmuls
    flops += 2 * num_nodes * emb * emb                           # input linear
    flops += n_rgcn_layers * (2 * (2 * num_nodes) * num_nodes * emb   # A_stack @ X
                              + 3 * 2 * num_nodes * emb * emb)        # W0/W1/Wroot
    flops += 2 * num_nodes * emb * emb + 2 * num_nodes * emb * emb    # out1 + out2
    bytes_accessed = int(sum(int(a.size) * a.dtype.itemsize for a in args)
                         + num_nodes * emb * 4)

    out_padded = pl.pallas_call(
        functools.partial(_fused_kernel, n_nodes=num_nodes,
                          n_rgcn_layers=n_rgcn_layers),
        out_shape=jax.ShapeDtypeStruct((num_nodes, emb), jnp.float32),
        in_specs=[_vmem_spec()] * len(args),
        out_specs=_vmem_spec(),
        cost_estimate=pl.CostEstimate(flops=int(flops), transcendentals=0,
                                      bytes_accessed=bytes_accessed),
    )(*args)
    return out_padded[:, :2]


# --------------------------------- driver -----------------------------------

if __name__ == "__main__":
    N_NODES = 64
    N_EDGES = 256
    DES, TWEET, NUMP, CATP, EMB = 768, 768, 6, 11, 128

    root = jax.random.PRNGKey(0)
    k_param, k_des, k_tw, k_np, k_cp, k_ei, k_et = jax.random.split(root, 7)

    params = init_params(k_param, DES, TWEET, NUMP, CATP, EMB)

    des = jax.random.normal(k_des, (N_NODES, DES), jnp.float32)
    tweet = jax.random.normal(k_tw, (N_NODES, TWEET), jnp.float32)
    num_prop = jax.random.normal(k_np, (N_NODES, NUMP), jnp.float32)
    cat_prop = jax.random.normal(k_cp, (N_NODES, CATP), jnp.float32)
    edge_index = jax.random.randint(k_ei, (2, N_EDGES), 0, N_NODES, jnp.int32)
    edge_type = jax.random.randint(k_et, (N_EDGES,), 0, 2, jnp.int32)

    fwd = jax.jit(drgcn_forward)
    out = fwd(params, des, tweet, num_prop, cat_prop, edge_index, edge_type)
    out = jax.block_until_ready(out)
    assert out.shape == (N_NODES, 2) and out.dtype == jnp.float32
    assert bool(jnp.all(jnp.isfinite(out)))
    print("KERNEL_OK")
</pallas_src>

<mosaic_0001>
module attributes {stable_mosaic.version = 11 : i64} {
  func.func private @main(%arg0: i32) attributes {dimension_semantics = [#tpu.dimension_semantics<core_parallel>], iteration_bounds = array<i64: 2>, tpu.core_type = #tpu.core_type<sc_scalar_subcore>, window_params = []} {
    return
  }
}

module attributes {stable_mosaic.version = 11 : i64} {
  func.func private @main(%arg0: i32) attributes {dimension_semantics = [#tpu.dimension_semantics<core_parallel>], iteration_bounds = array<i64: 2>, tpu.core_type = #tpu.core_type<sc_scalar_subcore>, window_params = []} {
    return
  }
}

module attributes {stable_mosaic.version = 11 : i64} {
  func.func @_fused_kernel(%arg0: memref<64x768xbf16, #tpu.memory_space<vmem>>, %arg1: memref<64x768xbf16, #tpu.memory_space<vmem>>, %arg2: memref<64x6xbf16, #tpu.memory_space<vmem>>, %arg3: memref<64x11xbf16, #tpu.memory_space<vmem>>, %arg4: memref<128x64xbf16, #tpu.memory_space<vmem>>, %arg5: memref<768x128xbf16, #tpu.memory_space<vmem>>, %arg6: memref<768x128xbf16, #tpu.memory_space<vmem>>, %arg7: memref<6x128xbf16, #tpu.memory_space<vmem>>, %arg8: memref<11x128xbf16, #tpu.memory_space<vmem>>, %arg9: memref<1x128xf32, #tpu.memory_space<vmem>>, %arg10: memref<128x128xbf16, #tpu.memory_space<vmem>>, %arg11: memref<1x128xf32, #tpu.memory_space<vmem>>, %arg12: memref<128x128xbf16, #tpu.memory_space<vmem>>, %arg13: memref<128x128xbf16, #tpu.memory_space<vmem>>, %arg14: memref<128x128xbf16, #tpu.memory_space<vmem>>, %arg15: memref<1x128xf32, #tpu.memory_space<vmem>>, %arg16: memref<128x128xbf16, #tpu.memory_space<vmem>>, %arg17: memref<1x128xf32, #tpu.memory_space<vmem>>, %arg18: memref<128x128xbf16, #tpu.memory_space<vmem>>, %arg19: memref<1x128xf32, #tpu.memory_space<vmem>>, %arg20: memref<64x128xf32, #tpu.memory_space<vmem>>) attributes {dimension_semantics = [], scalar_prefetch = 0 : i64, scratch_operands = 0 : i64, tpu.core_type = #tpu.core_type<tc>} {
    %c0 = arith.constant 0 : index
    %c0_0 = arith.constant 0 : index
    %0 = vector.load %arg0[%c0, %c0_0] : memref<64x768xbf16, #tpu.memory_space<vmem>>, vector<64x768xbf16>
    %c0_1 = arith.constant 0 : index
    %c0_2 = arith.constant 0 : index
    %1 = vector.load %arg5[%c0_1, %c0_2] : memref<768x128xbf16, #tpu.memory_space<vmem>>, vector<768x128xbf16>
    %cst = arith.constant dense<0.000000e+00> : vector<64x128xf32>
    %2 = tpu.matmul %0, %1, %cst {dimension_numbers = #tpu.dot_dimension_numbers<[1], [0], [0], [1], [0, 0, 1, 1], [], []>} : vector<64x768xbf16>, vector<768x128xbf16>, vector<64x128xf32> -> vector<64x128xf32>
    %c0_3 = arith.constant 0 : index
    %c0_4 = arith.constant 0 : index
    %3 = vector.load %arg1[%c0_3, %c0_4] : memref<64x768xbf16, #tpu.memory_space<vmem>>, vector<64x768xbf16>
    %c0_5 = arith.constant 0 : index
    %c0_6 = arith.constant 0 : index
    %4 = vector.load %arg6[%c0_5, %c0_6] : memref<768x128xbf16, #tpu.memory_space<vmem>>, vector<768x128xbf16>
    %cst_7 = arith.constant dense<0.000000e+00> : vector<64x128xf32>
    %5 = tpu.matmul %3, %4, %cst_7 {dimension_numbers = #tpu.dot_dimension_numbers<[1], [0], [0], [1], [0, 0, 1, 1], [], []>} : vector<64x768xbf16>, vector<768x128xbf16>, vector<64x128xf32> -> vector<64x128xf32>
    %6 = arith.addf %2, %5 : vector<64x128xf32>
    %c0_8 = arith.constant 0 : index
    %c0_9 = arith.constant 0 : index
    %7 = vector.load %arg2[%c0_8, %c0_9] : memref<64x6xbf16, #tpu.memory_space<vmem>>, vector<64x6xbf16>
    %c0_10 = arith.constant 0 : index
    %c0_11 = arith.constant 0 : index
    %8 = vector.load %arg7[%c0_10, %c0_11] : memref<6x128xbf16, #tpu.memory_space<vmem>>, vector<6x128xbf16>
    %cst_12 = arith.constant dense<0.000000e+00> : vector<64x128xf32>
    %9 = tpu.matmul %7, %8, %cst_12 {dimension_numbers = #tpu.dot_dimension_numbers<[1], [0], [0], [1], [0, 0, 1, 1], [], []>} : vector<64x6xbf16>, vector<6x128xbf16>, vector<64x128xf32> -> vector<64x128xf32>
    %10 = arith.addf %6, %9 : vector<64x128xf32>
    %c0_13 = arith.constant 0 : index
    %c0_14 = arith.constant 0 : index
    %11 = vector.load %arg3[%c0_13, %c0_14] : memref<64x11xbf16, #tpu.memory_space<vmem>>, vector<64x11xbf16>
    %c0_15 = arith.constant 0 : index
    %c0_16 = arith.constant 0 : index
    %12 = vector.load %arg8[%c0_15, %c0_16] : memref<11x128xbf16, #tpu.memory_space<vmem>>, vector<11x128xbf16>
    %cst_17 = arith.constant dense<0.000000e+00> : vector<64x128xf32>
    %13 = tpu.matmul %11, %12, %cst_17 {dimension_numbers = #tpu.dot_dimension_numbers<[1], [0], [0], [1], [0, 0, 1, 1], [], []>} : vector<64x11xbf16>, vector<11x128xbf16>, vector<64x128xf32> -> vector<64x128xf32>
    %14 = arith.addf %10, %13 : vector<64x128xf32>
    %c0_18 = arith.constant 0 : index
    %c0_19 = arith.constant 0 : index
    %15 = vector.load %arg9[%c0_18, %c0_19] : memref<1x128xf32, #tpu.memory_space<vmem>>, vector<1x128xf32>
    %16 = vector.broadcast %15 : vector<1x128xf32> to vector<64x128xf32>
    %17 = arith.addf %14, %16 : vector<64x128xf32>
    %cst_20 = arith.constant 0.00999999977 : f32
    %18 = vector.broadcast %cst_20 : f32 to vector<64x128xf32>
    %19 = arith.mulf %18, %17 : vector<64x128xf32>
    %20 = arith.maximumf %17, %19 : vector<64x128xf32>
    %21 = arith.truncf %20 : vector<64x128xf32> to vector<64x128xbf16>
    %c0_21 = arith.constant 0 : index
    %c0_22 = arith.constant 0 : index
    %22 = vector.load %arg10[%c0_21, %c0_22] : memref<128x128xbf16, #tpu.memory_space<vmem>>, vector<128x128xbf16>
    %cst_23 = arith.constant dense<0.000000e+00> : vector<64x128xf32>
    %23 = tpu.matmul %21, %22, %cst_23 {dimension_numbers = #tpu.dot_dimension_numbers<[1], [0], [0], [1], [0, 0, 1, 1], [], []>} : vector<64x128xbf16>, vector<128x128xbf16>, vector<64x128xf32> -> vector<64x128xf32>
    %c0_24 = arith.constant 0 : index
    %c0_25 = arith.constant 0 : index
    %24 = vector.load %arg11[%c0_24, %c0_25] : memref<1x128xf32, #tpu.memory_space<vmem>>, vector<1x128xf32>
    %25 = vector.broadcast %24 : vector<1x128xf32> to vector<64x128xf32>
    %26 = arith.addf %23, %25 : vector<64x128xf32>
    %cst_26 = arith.constant 0.00999999977 : f32
    %27 = vector.broadcast %cst_26 : f32 to vector<64x128xf32>
    %28 = arith.mulf %27, %26 : vector<64x128xf32>
    %29 = arith.maximumf %26, %28 : vector<64x128xf32>
    %c0_27 = arith.constant 0 : index
    %c0_28 = arith.constant 0 : index
    %30 = vector.load %arg4[%c0_27, %c0_28] : memref<128x64xbf16, #tpu.memory_space<vmem>>, vector<128x64xbf16>
    %c0_29 = arith.constant 0 : index
    %c0_30 = arith.constant 0 : index
    %31 = vector.load %arg12[%c0_29, %c0_30] : memref<128x128xbf16, #tpu.memory_space<vmem>>, vector<128x128xbf16>
    %c0_31 = arith.constant 0 : index
    %c0_32 = arith.constant 0 : index
    %32 = vector.load %arg13[%c0_31, %c0_32] : memref<128x128xbf16, #tpu.memory_space<vmem>>, vector<128x128xbf16>
    %c0_33 = arith.constant 0 : index
    %c0_34 = arith.constant 0 : index
    %33 = vector.load %arg14[%c0_33, %c0_34] : memref<128x128xbf16, #tpu.memory_space<vmem>>, vector<128x128xbf16>
    %c0_35 = arith.constant 0 : index
    %c0_36 = arith.constant 0 : index
    %34 = vector.load %arg15[%c0_35, %c0_36] : memref<1x128xf32, #tpu.memory_space<vmem>>, vector<1x128xf32>
    %35 = arith.truncf %29 : vector<64x128xf32> to vector<64x128xbf16>
    %cst_37 = arith.constant dense<0.000000e+00> : vector<128x128xf32>
    %36 = tpu.matmul %30, %35, %cst_37 {dimension_numbers = #tpu.dot_dimension_numbers<[1], [0], [0], [1], [0, 0, 1, 1], [], []>} : vector<128x64xbf16>, vector<64x128xbf16>, vector<128x128xf32> -> vector<128x128xf32>
    %37 = arith.truncf %36 : vector<128x128xf32> to vector<128x128xbf16>
    %38 = vector.extract_strided_slice %37 {offsets = [0, 0], sizes = [64, 128], strides = [1, 1]} : vector<128x128xbf16> to vector<64x128xbf16>
    %cst_38 = arith.constant dense<0.000000e+00> : vector<64x128xf32>
    %39 = tpu.matmul %38, %31, %cst_38 {dimension_numbers = #tpu.dot_dimension_numbers<[1], [0], [0], [1], [0, 0, 1, 1], [], []>} : vector<64x128xbf16>, vector<128x128xbf16>, vector<64x128xf32> -> vector<64x128xf32>
    %40 = vector.extract_strided_slice %37 {offsets = [64, 0], sizes = [64, 128], strides = [1, 1]} : vector<128x128xbf16> to vector<64x128xbf16>
    %cst_39 = arith.constant dense<0.000000e+00> : vector<64x128xf32>
    %41 = tpu.matmul %40, %32, %cst_39 {dimension_numbers = #tpu.dot_dimension_numbers<[1], [0], [0], [1], [0, 0, 1, 1], [], []>} : vector<64x128xbf16>, vector<128x128xbf16>, vector<64x128xf32> -> vector<64x128xf32>
    %42 = arith.addf %39, %41 : vector<64x128xf32>
    %cst_40 = arith.constant dense<0.000000e+00> : vector<64x128xf32>
    %43 = tpu.matmul %35, %33, %cst_40 {dimension_numbers = #tpu.dot_dimension_numbers<[1], [0], [0], [1], [0, 0, 1, 1], [], []>} : vector<64x128xbf16>, vector<128x128xbf16>, vector<64x128xf32> -> vector<64x128xf32>
    %44 = arith.addf %42, %43 : vector<64x128xf32>
    %45 = vector.broadcast %34 : vector<1x128xf32> to vector<64x128xf32>
    %46 = arith.addf %44, %45 : vector<64x128xf32>
    %47 = arith.truncf %46 : vector<64x128xf32> to vector<64x128xbf16>
    %cst_41 = arith.constant dense<0.000000e+00> : vector<128x128xf32>
    %48 = tpu.matmul %30, %47, %cst_41 {dimension_numbers = #tpu.dot_dimension_numbers<[1], [0], [0], [1], [0, 0, 1, 1], [], []>} : vector<128x64xbf16>, vector<64x128xbf16>, vector<128x128xf32> -> vector<128x128xf32>
    %49 = arith.truncf %48 : vector<128x128xf32> to vector<128x128xbf16>
    %50 = vector.extract_strided_slice %49 {offsets = [0, 0], sizes = [64, 128], strides = [1, 1]} : vector<128x128xbf16> to vector<64x128xbf16>
    %cst_42 = arith.constant dense<0.000000e+00> : vector<64x128xf32>
    %51 = tpu.matmul %50, %31, %cst_42 {dimension_numbers = #tpu.dot_dimension_numbers<[1], [0], [0], [1], [0, 0, 1, 1], [], []>} : vector<64x128xbf16>, vector<128x128xbf16>, vector<64x128xf32> -> vector<64x128xf32>
    %52 = vector.extract_strided_slice %49 {offsets = [64, 0], sizes = [64, 128], strides = [1, 1]} : vector<128x128xbf16> to vector<64x128xbf16>
    %cst_43 = arith.constant dense<0.000000e+00> : vector<64x128xf32>
    %53 = tpu.matmul %52, %32, %cst_43 {dimension_numbers = #tpu.dot_dimension_numbers<[1], [0], [0], [1], [0, 0, 1, 1], [], []>} : vector<64x128xbf16>, vector<128x128xbf16>, vector<64x128xf32> -> vector<64x128xf32>
    %54 = arith.addf %51, %53 : vector<64x128xf32>
    %cst_44 = arith.constant dense<0.000000e+00> : vector<64x128xf32>
    %55 = tpu.matmul %47, %33, %cst_44 {dimension_numbers = #tpu.dot_dimension_numbers<[1], [0], [0], [1], [0, 0, 1, 1], [], []>} : vector<64x128xbf16>, vector<128x128xbf16>, vector<64x128xf32> -> vector<64x128xf32>
    %56 = arith.addf %54, %55 : vector<64x128xf32>
    %57 = vector.broadcast %34 : vector<1x128xf32> to vector<64x128xf32>
    %58 = arith.addf %56, %57 : vector<64x128xf32>
    %59 = arith.truncf %58 : vector<64x128xf32> to vector<64x128xbf16>
    %cst_45 = arith.constant dense<0.000000e+00> : vector<128x128xf32>
    %60 = tpu.matmul %30, %59, %cst_45 {dimension_numbers = #tpu.dot_dimension_numbers<[1], [0], [0], [1], [0, 0, 1, 1], [], []>} : vector<128x64xbf16>, vector<64x128xbf16>, vector<128x128xf32> -> vector<128x128xf32>
    %61 = arith.truncf %60 : vector<128x128xf32> to vector<128x128xbf16>
    %62 = vector.extract_strided_slice %61 {offsets = [0, 0], sizes = [64, 128], strides = [1, 1]} : vector<128x128xbf16> to vector<64x128xbf16>
    %cst_46 = arith.constant dense<0.000000e+00> : vector<64x128xf32>
    %63 = tpu.matmul %62, %31, %cst_46 {dimension_numbers = #tpu.dot_dimension_numbers<[1], [0], [0], [1], [0, 0, 1, 1], [], []>} : vector<64x128xbf16>, vector<128x128xbf16>, vector<64x128xf32> -> vector<64x128xf32>
    %64 = vector.extract_strided_slice %61 {offsets = [64, 0], sizes = [64, 128], strides = [1, 1]} : vector<128x128xbf16> to vector<64x128xbf16>
    %cst_47 = arith.constant dense<0.000000e+00> : vector<64x128xf32>
    %65 = tpu.matmul %64, %32, %cst_47 {dimension_numbers = #tpu.dot_dimension_numbers<[1], [0], [0], [1], [0, 0, 1, 1], [], []>} : vector<64x128xbf16>, vector<128x128xbf16>, vector<64x128xf32> -> vector<64x128xf32>
    %66 = arith.addf %63, %65 : vector<64x128xf32>
    %cst_48 = arith.constant dense<0.000000e+00> : vector<64x128xf32>
    %67 = tpu.matmul %59, %33, %cst_48 {dimension_numbers = #tpu.dot_dimension_numbers<[1], [0], [0], [1], [0, 0, 1, 1], [], []>} : vector<64x128xbf16>, vector<128x128xbf16>, vector<64x128xf32> -> vector<64x128xf32>
    %68 = arith.addf %66, %67 : vector<64x128xf32>
    %69 = vector.broadcast %34 : vector<1x128xf32> to vector<64x128xf32>
    %70 = arith.addf %68, %69 : vector<64x128xf32>
    %71 = arith.truncf %70 : vector<64x128xf32> to vector<64x128xbf16>
    %cst_49 = arith.constant dense<0.000000e+00> : vector<128x128xf32>
    %72 = tpu.matmul %30, %71, %cst_49 {dimension_numbers = #tpu.dot_dimension_numbers<[1], [0], [0], [1], [0, 0, 1, 1], [], []>} : vector<128x64xbf16>, vector<64x128xbf16>, vector<128x128xf32> -> vector<128x128xf32>
    %73 = arith.truncf %72 : vector<128x128xf32> to vector<128x128xbf16>
    %74 = vector.extract_strided_slice %73 {offsets = [0, 0], sizes = [64, 128], strides = [1, 1]} : vector<128x128xbf16> to vector<64x128xbf16>
    %cst_50 = arith.constant dense<0.000000e+00> : vector<64x128xf32>
    %75 = tpu.matmul %74, %31, %cst_50 {dimension_numbers = #tpu.dot_dimension_numbers<[1], [0], [0], [1], [0, 0, 1, 1], [], []>} : vector<64x128xbf16>, vector<128x128xbf16>, vector<64x128xf32> -> vector<64x128xf32>
    %76 = vector.extract_strided_slice %73 {offsets = [64, 0], sizes = [64, 128], strides = [1, 1]} : vector<128x128xbf16> to vector<64x128xbf16>
    %cst_51 = arith.constant dense<0.000000e+00> : vector<64x128xf32>
    %77 = tpu.matmul %76, %32, %cst_51 {dimension_numbers = #tpu.dot_dimension_numbers<[1], [0], [0], [1], [0, 0, 1, 1], [], []>} : vector<64x128xbf16>, vector<128x128xbf16>, vector<64x128xf32> -> vector<64x128xf32>
    %78 = arith.addf %75, %77 : vector<64x128xf32>
    %cst_52 = arith.constant dense<0.000000e+00> : vector<64x128xf32>
    %79 = tpu.matmul %71, %33, %cst_52 {dimension_numbers = #tpu.dot_dimension_numbers<[1], [0], [0], [1], [0, 0, 1, 1], [], []>} : vector<64x128xbf16>, vector<128x128xbf16>, vector<64x128xf32> -> vector<64x128xf32>
    %80 = arith.addf %78, %79 : vector<64x128xf32>
    %81 = vector.broadcast %34 : vector<1x128xf32> to vector<64x128xf32>
    %82 = arith.addf %80, %81 : vector<64x128xf32>
    %83 = arith.truncf %82 : vector<64x128xf32> to vector<64x128xbf16>
    %c0_53 = arith.constant 0 : index
    %c0_54 = arith.constant 0 : index
    %84 = vector.load %arg16[%c0_53, %c0_54] : memref<128x128xbf16, #tpu.memory_space<vmem>>, vector<128x128xbf16>
    %cst_55 = arith.constant dense<0.000000e+00> : vector<64x128xf32>
    %85 = tpu.matmul %83, %84, %cst_55 {dimension_numbers = #tpu.dot_dimension_numbers<[1], [0], [0], [1], [0, 0, 1, 1], [], []>} : vector<64x128xbf16>, vector<128x128xbf16>, vector<64x128xf32> -> vector<64x128xf32>
    %c0_56 = arith.constant 0 : index
    %c0_57 = arith.constant 0 : index
    %86 = vector.load %arg17[%c0_56, %c0_57] : memref<1x128xf32, #tpu.memory_space<vmem>>, vector<1x128xf32>
    %87 = vector.broadcast %86 : vector<1x128xf32> to vector<64x128xf32>
    %88 = arith.addf %85, %87 : vector<64x128xf32>
    %cst_58 = arith.constant 0.00999999977 : f32
    %89 = vector.broadcast %cst_58 : f32 to vector<64x128xf32>
    %90 = arith.mulf %89, %88 : vector<64x128xf32>
    %91 = arith.maximumf %88, %90 : vector<64x128xf32>
    %92 = arith.truncf %91 : vector<64x128xf32> to vector<64x128xbf16>
    %c0_59 = arith.constant 0 : index
    %c0_60 = arith.constant 0 : index
    %93 = vector.load %arg18[%c0_59, %c0_60] : memref<128x128xbf16, #tpu.memory_space<vmem>>, vector<128x128xbf16>
    %cst_61 = arith.constant dense<0.000000e+00> : vector<64x128xf32>
    %94 = tpu.matmul %92, %93, %cst_61 {dimension_numbers = #tpu.dot_dimension_numbers<[1], [0], [0], [1], [0, 0, 1, 1], [], []>} : vector<64x128xbf16>, vector<128x128xbf16>, vector<64x128xf32> -> vector<64x128xf32>
    %c0_62 = arith.constant 0 : index
    %c0_63 = arith.constant 0 : index
    %95 = vector.load %arg19[%c0_62, %c0_63] : memref<1x128xf32, #tpu.memory_space<vmem>>, vector<1x128xf32>
    %96 = vector.broadcast %95 : vector<1x128xf32> to vector<64x128xf32>
    %97 = arith.addf %94, %96 : vector<64x128xf32>
    %c0_64 = arith.constant 0 : index
    %c0_65 = arith.constant 0 : index
    %98 = vector.load %arg20[%c0_64, %c0_65] : memref<64x128xf32, #tpu.memory_space<vmem>>, vector<64x128xf32>
    tpu.vector_store %arg20[%c0_64, %c0_65], %97 {strides = array<i32>} : memref<64x128xf32, #tpu.memory_space<vmem>>, vector<64x128xf32>,
    return
  }
}

</mosaic_0001>

<llo_original>
// kernel: drgcn_forward.1
$region0: #{drgcn_forward.1}
  #allocation0 [shape = 'u32[]', space=smem, size = 0x4, offset = 0x4, fixed_abs, tag = 'smem constant byte address 0x4 - core index']
  #allocation1 [shape = 'u32[144,128]{1,0:T(1,128)}', space=vmem, size = 0x12000, scoped, tag = 'internal scratch']
  %s0 = inlined_call_operand.vmem [shape: bf16[64,768], index: 0, kind: input, shape index: {}]
  %s1 = inlined_call_operand.vmem [shape: bf16[64,768], index: 1, kind: input, shape index: {}]
  %s2 = inlined_call_operand.vmem [shape: bf16[64,6], index: 2, kind: input, shape index: {}]
  %s3 = inlined_call_operand.vmem [shape: bf16[64,11], index: 3, kind: input, shape index: {}]
  %s4 = inlined_call_operand.vmem [shape: bf16[128,64], index: 4, kind: input, shape index: {}]
  %s5 = inlined_call_operand.vmem [shape: bf16[768,128], index: 5, kind: input, shape index: {}]
  %s6 = inlined_call_operand.vmem [shape: bf16[768,128], index: 6, kind: input, shape index: {}]
  %s7 = inlined_call_operand.vmem [shape: bf16[6,128], index: 7, kind: input, shape index: {}]
  %s8 = inlined_call_operand.vmem [shape: bf16[11,128], index: 8, kind: input, shape index: {}]
  %s9 = inlined_call_operand.vmem [shape: f32[1,128], index: 9, kind: input, shape index: {}]
  %s10 = inlined_call_operand.vmem [shape: bf16[128,128], index: 10, kind: input, shape index: {}]
  %s11 = inlined_call_operand.vmem [shape: f32[1,128], index: 11, kind: input, shape index: {}]
  %s12 = inlined_call_operand.vmem [shape: bf16[128,128], index: 12, kind: input, shape index: {}]
  %s13 = inlined_call_operand.vmem [shape: bf16[128,128], index: 13, kind: input, shape index: {}]
  %s14 = inlined_call_operand.vmem [shape: bf16[128,128], index: 14, kind: input, shape index: {}]
  %s15 = inlined_call_operand.vmem [shape: f32[1,128], index: 15, kind: input, shape index: {}]
  %s16 = inlined_call_operand.vmem [shape: bf16[128,128], index: 16, kind: input, shape index: {}]
  %s17 = inlined_call_operand.vmem [shape: f32[1,128], index: 17, kind: input, shape index: {}]
  %s18 = inlined_call_operand.vmem [shape: bf16[128,128], index: 18, kind: input, shape index: {}]
  %s19 = inlined_call_operand.vmem [shape: f32[1,128], index: 19, kind: input, shape index: {}]
  %s20 = inlined_call_operand.vmem [shape: f32[64,128], index: 20, kind: output, shape index: {}]
  %s21 = sld [smem:[#allocation0]]
  $region90: #{drgcn_forward.1} parent=0
    _
  %s23 = ssub.s32 1, %s21
  %s24 = scalar_select 0, %s23, %s21
  // Predicated region
  $region2: #{drgcn_forward.1} parent=0 // pred_check
    _
  $region3: #{drgcn_forward.1} parent=0 // pred_check_branch
    %26 = sbr.rel (0) target = $region5
  $region4: #{drgcn_forward.1} parent=0 // pred_region
    _
  $region5: #{drgcn_forward.1} parent=0 // pred_fallthru
    _
  // Predicated region
  $region6: #{drgcn_forward.1} parent=0 // pred_check
    _
  $region7: #{drgcn_forward.1} parent=0 // pred_check_branch
    %28 = sbr.rel (0) target = $region9
  $region8: #{drgcn_forward.1} parent=0 // pred_region
    _
  $region9: #{drgcn_forward.1} parent=0 // pred_fallthru
    _
  // Predicated region
  $region10: #{drgcn_forward.1} parent=0 // pred_check
    _
  $region11: #{drgcn_forward.1} parent=0 // pred_check_branch
    %30 = sbr.rel (0) target = $region13
  $region12: #{drgcn_forward.1} parent=0 // pred_region
    _
  $region13: #{drgcn_forward.1} parent=0 // pred_fallthru
    _
  // Predicated region
  $region14: #{drgcn_forward.1} parent=0 // pred_check
    _
  $region15: #{drgcn_forward.1} parent=0 // pred_check_branch
    %32 = sbr.rel (0) target = $region17
  $region16: #{drgcn_forward.1} parent=0 // pred_region
    _
  $region17: #{drgcn_forward.1} parent=0 // pred_fallthru
    _
  // Predicated region
  $region18: #{drgcn_forward.1} parent=0 // pred_check
    _
  $region19: #{drgcn_forward.1} parent=0 // pred_check_branch
    %34 = sbr.rel (0) target = $region21
  $region20: #{drgcn_forward.1} parent=0 // pred_region
    _
  $region21: #{drgcn_forward.1} parent=0 // pred_fallthru
    _
  // Predicated region
  $region22: #{drgcn_forward.1} parent=0 // pred_check
    _
  $region23: #{drgcn_forward.1} parent=0 // pred_check_branch
    %36 = sbr.rel (0) target = $region25
  $region24: #{drgcn_forward.1} parent=0 // pred_region
    _
  $region25: #{drgcn_forward.1} parent=0 // pred_fallthru
    _
  // Predicated region
  $region26: #{drgcn_forward.1} parent=0 // pred_check
    _
  $region27: #{drgcn_forward.1} parent=0 // pred_check_branch
    %38 = sbr.rel (0) target = $region29
  $region28: #{drgcn_forward.1} parent=0 // pred_region
    _
  $region29: #{drgcn_forward.1} parent=0 // pred_fallthru
    _
  // Predicated region
  $region30: #{drgcn_forward.1} parent=0 // pred_check
    _
  $region31: #{drgcn_forward.1} parent=0 // pred_check_branch
    %40 = sbr.rel (0) target = $region33
  $region32: #{drgcn_forward.1} parent=0 // pred_region
    _
  $region33: #{drgcn_forward.1} parent=0 // pred_fallthru
    _
  // Predicated region
  $region34: #{drgcn_forward.1} parent=0 // pred_check
    _
  $region35: #{drgcn_forward.1} parent=0 // pred_check_branch
    %42 = sbr.rel (0) target = $region37
  $region36: #{drgcn_forward.1} parent=0 // pred_region
    _
  $region37: #{drgcn_forward.1} parent=0 // pred_fallthru
    _
  // Predicated region
  $region38: #{drgcn_forward.1} parent=0 // pred_check
    _
  $region39: #{drgcn_forward.1} parent=0 // pred_check_branch
    %44 = sbr.rel (0) target = $region41
  $region40: #{drgcn_forward.1} parent=0 // pred_region
    _
  $region41: #{drgcn_forward.1} parent=0 // pred_fallthru
    _
  // Predicated region
  $region42: #{drgcn_forward.1} parent=0 // pred_check
    _
  $region43: #{drgcn_forward.1} parent=0 // pred_check_branch
    %46 = sbr.rel (0) target = $region45
  $region44: #{drgcn_forward.1} parent=0 // pred_region
    _
  $region45: #{drgcn_forward.1} parent=0 // pred_fallthru
    _
  // Predicated region
  $region46: #{drgcn_forward.1} parent=0 // pred_check
    _
  $region47: #{drgcn_forward.1} parent=0 // pred_check_branch
    %48 = sbr.rel (0) target = $region49
  $region48: #{drgcn_forward.1} parent=0 // pred_region
    _
  $region49: #{drgcn_forward.1} parent=0 // pred_fallthru
    _
  // Predicated region
  $region50: #{drgcn_forward.1} parent=0 // pred_check
    _
  $region51: #{drgcn_forward.1} parent=0 // pred_check_branch
    %50 = sbr.rel (0) target = $region53
  $region52: #{drgcn_forward.1} parent=0 // pred_region
    _
  $region53: #{drgcn_forward.1} parent=0 // pred_fallthru
    _
  // Predicated region
  $region54: #{drgcn_forward.1} parent=0 // pred_check
    _
  $region55: #{drgcn_forward.1} parent=0 // pred_check_branch
    %52 = sbr.rel (0) target = $region57
  $region56: #{drgcn_forward.1} parent=0 // pred_region
    _
  $region57: #{drgcn_forward.1} parent=0 // pred_fallthru
    _
  // Predicated region
  $region58: #{drgcn_forward.1} parent=0 // pred_check
    _
  $region59: #{drgcn_forward.1} parent=0 // pred_check_branch
    %54 = sbr.rel (0) target = $region61
  $region60: #{drgcn_forward.1} parent=0 // pred_region
    _
  $region61: #{drgcn_forward.1} parent=0 // pred_fallthru
    _
  // Predicated region
  $region62: #{drgcn_forward.1} parent=0 // pred_check
    _
  $region63: #{drgcn_forward.1} parent=0 // pred_check_branch
    %56 = sbr.rel (0) target = $region65
  $region64: #{drgcn_forward.1} parent=0 // pred_region
    _
  $region65: #{drgcn_forward.1} parent=0 // pred_fallthru
    _
  // Predicated region
  $region66: #{drgcn_forward.1} parent=0 // pred_check
    _
  $region67: #{drgcn_forward.1} parent=0 // pred_check_branch
    %58 = sbr.rel (0) target = $region69
  $region68: #{drgcn_forward.1} parent=0 // pred_region
    _
  $region69: #{drgcn_forward.1} parent=0 // pred_fallthru
    _
  // Predicated region
  $region70: #{drgcn_forward.1} parent=0 // pred_check
    _
  $region71: #{drgcn_forward.1} parent=0 // pred_check_branch
    %60 = sbr.rel (0) target = $region73
  $region72: #{drgcn_forward.1} parent=0 // pred_region
    _
  $region73: #{drgcn_forward.1} parent=0 // pred_fallthru
    _
  // Predicated region
  $region74: #{drgcn_forward.1} parent=0 // pred_check
    _
  $region75: #{drgcn_forward.1} parent=0 // pred_check_branch
    %62 = sbr.rel (0) target = $region77
  $region76: #{drgcn_forward.1} parent=0 // pred_region
    _
  $region77: #{drgcn_forward.1} parent=0 // pred_fallthru
    _
  // Predicated region
  $region78: #{drgcn_forward.1} parent=0 // pred_check
    _
  $region79: #{drgcn_forward.1} parent=0 // pred_check_branch
    %64 = sbr.rel (0) target = $region81
  $region80: #{drgcn_forward.1} parent=0 // pred_region
    _
  $region81: #{drgcn_forward.1} parent=0 // pred_fallthru
    _
  %v66 = vld [vmem:[%s0] sm:$0xff]
  %v67 = vld [vmem:[%s0 + $0x8] sm:$0xff]
  %v68 = vld [vmem:[%s0 + $0x10] sm:$0xff]
  %v69 = vld [vmem:[%s0 + $0x18] sm:$0xff]
  %v70 = vld [vmem:[%s0 + $0x20] sm:$0xff]
  %v71 = vld [vmem:[%s0 + $0x28] sm:$0xff]
  %v72 = vld [vmem:[%s0 + $0x30] sm:$0xff]
  %v73 = vld [vmem:[%s0 + $0x38] sm:$0xff]
  %v74 = vld [vmem:[%s0 + $0x40] sm:$0xff]
  %v75 = vld [vmem:[%s0 + $0x48] sm:$0xff]
  %v76 = vld [vmem:[%s0 + $0x50] sm:$0xff]
  %v77 = vld [vmem:[%s0 + $0x58] sm:$0xff]
  %v78 = vld [vmem:[%s0 + $0x60] sm:$0xff]
  %v79 = vld [vmem:[%s0 + $0x68] sm:$0xff]
  %v80 = vld [vmem:[%s0 + $0x70] sm:$0xff]
  %v81 = vld [vmem:[%s0 + $0x78] sm:$0xff]
  %v82 = vld [vmem:[%s0 + $0x80] sm:$0xff]
  %v83 = vld [vmem:[%s0 + $0x88] sm:$0xff]
  %v84 = vld [vmem:[%s0 + $0x90] sm:$0xff]
  %v85 = vld [vmem:[%s0 + $0x98] sm:$0xff]
  %v86 = vld [vmem:[%s0 + $0xa0] sm:$0xff]
  %v87 = vld [vmem:[%s0 + $0xa8] sm:$0xff]
  %v88 = vld [vmem:[%s0 + $0xb0] sm:$0xff]
  %v89 = vld [vmem:[%s0 + $0xb8] sm:$0xff]
  %v90 = vld [vmem:[%s5] sm:$0xf]
  %v91 = vld [vmem:[%s5 + $0x4] sm:$0xf]
  %v92 = vld [vmem:[%s5 + $0x8] sm:$0xf]
  %v93 = vld [vmem:[%s5 + $0xc] sm:$0xf]
  %v94 = vld [vmem:[%s5 + $0x10] sm:$0xf]
  %v95 = vld [vmem:[%s5 + $0x14] sm:$0xf]
  %v96 = vld [vmem:[%s5 + $0x18] sm:$0xf]
  %v97 = vld [vmem:[%s5 + $0x1c] sm:$0xf]
  %v98 = vld [vmem:[%s5 + $0x20] sm:$0xf]
  %v99 = vld [vmem:[%s5 + $0x24] sm:$0xf]
  %v100 = vld [vmem:[%s5 + $0x28] sm:$0xf]
  %v101 = vld [vmem:[%s5 + $0x2c] sm:$0xf]
  %v102 = vld [vmem:[%s5 + $0x30] sm:$0xf]
  %v103 = vld [vmem:[%s5 + $0x34] sm:$0xf]
  %v104 = vld [vmem:[%s5 + $0x38] sm:$0xf]
  %v105 = vld [vmem:[%s5 + $0x3c] sm:$0xf]
  %v106 = vld [vmem:[%s5 + $0x40] sm:$0xf]
  %v107 = vld [vmem:[%s5 + $0x44] sm:$0xf]
  %v108 = vld [vmem:[%s5 + $0x48] sm:$0xf]
  %v109 = vld [vmem:[%s5 + $0x4c] sm:$0xf]
  %v110 = vld [vmem:[%s5 + $0x50] sm:$0xf]
  %v111 = vld [vmem:[%s5 + $0x54] sm:$0xf]
  %v112 = vld [vmem:[%s5 + $0x58] sm:$0xf]
  %v113 = vld [vmem:[%s5 + $0x5c] sm:$0xf]
  %v114 = vld [vmem:[%s5 + $0x60] sm:$0xf]
  %v115 = vld [vmem:[%s5 + $0x64] sm:$0xf]
  %v116 = vld [vmem:[%s5 + $0x68] sm:$0xf]
  %v117 = vld [vmem:[%s5 + $0x6c] sm:$0xf]
  %v118 = vld [vmem:[%s5 + $0x70] sm:$0xf]
  %v119 = vld [vmem:[%s5 + $0x74] sm:$0xf]
  %v120 = vld [vmem:[%s5 + $0x78] sm:$0xf]
  %v121 = vld [vmem:[%s5 + $0x7c] sm:$0xf]
  %v122 = vld [vmem:[%s5 + $0x80] sm:$0xf]
  %v123 = vld [vmem:[%s5 + $0x84] sm:$0xf]
  %v124 = vld [vmem:[%s5 + $0x88] sm:$0xf]
  %v125 = vld [vmem:[%s5 + $0x8c] sm:$0xf]
  %v126 = vld [vmem:[%s5 + $0x90] sm:$0xf]
  %v127 = vld [vmem:[%s5 + $0x94] sm:$0xf]
  %v128 = vld [vmem:[%s5 + $0x98] sm:$0xf]
  %v129 = vld [vmem:[%s5 + $0x9c] sm:$0xf]
  %v130 = vld [vmem:[%s5 + $0xa0] sm:$0xf]
  %v131 = vld [vmem:[%s5 + $0xa4] sm:$0xf]
  %v132 = vld [vmem:[%s5 + $0xa8] sm:$0xf]
  %v133 = vld [vmem:[%s5 + $0xac] sm:$0xf]
  %v134 = vld [vmem:[%s5 + $0xb0] sm:$0xf]
  %v135 = vld [vmem:[%s5 + $0xb4] sm:$0xf]
  %v136 = vld [vmem:[%s5 + $0xb8] sm:$0xf]
  %v137 = vld [vmem:[%s5 + $0xbc] sm:$0xf]
  %v138 = vld [vmem:[%s5 + $0xc0] sm:$0xf]
  %v139 = vld [vmem:[%s5 + $0xc4] sm:$0xf]
  %v140 = vld [vmem:[%s5 + $0xc8] sm:$0xf]
  %v141 = vld [vmem:[%s5 + $0xcc] sm:$0xf]
  %v142 = vld [vmem:[%s5 + $0xd0] sm:$0xf]
  %v143 = vld [vmem:[%s5 + $0xd4] sm:$0xf]
  %v144 = vld [vmem:[%s5 + $0xd8] sm:$0xf]
  %v145 = vld [vmem:[%s5 + $0xdc] sm:$0xf]
  %v146 = vld [vmem:[%s5 + $0xe0] sm:$0xf]
  %v147 = vld [vmem:[%s5 + $0xe4] sm:$0xf]
  %v148 = vld [vmem:[%s5 + $0xe8] sm:$0xf]
  %v149 = vld [vmem:[%s5 + $0xec] sm:$0xf]
  %v150 = vld [vmem:[%s5 + $0xf0] sm:$0xf]
  %v151 = vld [vmem:[%s5 + $0xf4] sm:$0xf]
  %v152 = vld [vmem:[%s5 + $0xf8] sm:$0xf]
  %v153 = vld [vmem:[%s5 + $0xfc] sm:$0xf]
  %v154 = vld [vmem:[%s5 + $0x100] sm:$0xf]
  %v155 = vld [vmem:[%s5 + $0x104] sm:$0xf]
  %v156 = vld [vmem:[%s5 + $0x108] sm:$0xf]
  %v157 = vld [vmem:[%s5 + $0x10c] sm:$0xf]
  %v158 = vld [vmem:[%s5 + $0x110] sm:$0xf]
  %v159 = vld [vmem:[%s5 + $0x114] sm:$0xf]
  %v160 = vld [vmem:[%s5 + $0x118] sm:$0xf]
  %v161 = vld [vmem:[%s5 + $0x11c] sm:$0xf]
  %v162 = vld [vmem:[%s5 + $0x120] sm:$0xf]
  %v163 = vld [vmem:[%s5 + $0x124] sm:$0xf]
  %v164 = vld [vmem:[%s5 + $0x128] sm:$0xf]
  %v165 = vld [vmem:[%s5 + $0x12c] sm:$0xf]
  %v166 = vld [vmem:[%s5 + $0x130] sm:$0xf]
  %v167 = vld [vmem:[%s5 + $0x134] sm:$0xf]
  %v168 = vld [vmem:[%s5 + $0x138] sm:$0xf]
  %v169 = vld [vmem:[%s5 + $0x13c] sm:$0xf]
  %v170 = vld [vmem:[%s5 + $0x140] sm:$0xf]
  %v171 = vld [vmem:[%s5 + $0x144] sm:$0xf]
  %v172 = vld [vmem:[%s5 + $0x148] sm:$0xf]
  %v173 = vld [vmem:[%s5 + $0x14c] sm:$0xf]
  %v174 = vld [vmem:[%s5 + $0x150] sm:$0xf]
  %v175 = vld [vmem:[%s5 + $0x154] sm:$0xf]
  %v176 = vld [vmem:[%s5 + $0x158] sm:$0xf]
  %v177 = vld [vmem:[%s5 + $0x15c] sm:$0xf]
  %v178 = vld [vmem:[%s5 + $0x160] sm:$0xf]
  %v179 = vld [vmem:[%s5 + $0x164] sm:$0xf]
  %v180 = vld [vmem:[%s5 + $0x168] sm:$0xf]
  %v181 = vld [vmem:[%s5 + $0x16c] sm:$0xf]
  %v182 = vld [vmem:[%s5 + $0x170] sm:$0xf]
  %v183 = vld [vmem:[%s5 + $0x174] sm:$0xf]
  %v184 = vld [vmem:[%s5 + $0x178] sm:$0xf]
  %v185 = vld [vmem:[%s5 + $0x17c] sm:$0xf]
  %v186 = vld [vmem:[%s1] sm:$0xff]
  %v187 = vld [vmem:[%s1 + $0x8] sm:$0xff]
  %v188 = vld [vmem:[%s1 + $0x10] sm:$0xff]
  %v189 = vld [vmem:[%s1 + $0x18] sm:$0xff]
  %v190 = vld [vmem:[%s1 + $0x20] sm:$0xff]
  %v191 = vld [vmem:[%s1 + $0x28] sm:$0xff]
  %v192 = vld [vmem:[%s1 + $0x30] sm:$0xff]
  %v193 = vld [vmem:[%s1 + $0x38] sm:$0xff]
  %v194 = vld [vmem:[%s1 + $0x40] sm:$0xff]
  %v195 = vld [vmem:[%s1 + $0x48] sm:$0xff]
  %v196 = vld [vmem:[%s1 + $0x50] sm:$0xff]
  %v197 = vld [vmem:[%s1 + $0x58] sm:$0xff]
  %v198 = vld [vmem:[%s1 + $0x60] sm:$0xff]
  %v199 = vld [vmem:[%s1 + $0x68] sm:$0xff]
  %v200 = vld [vmem:[%s1 + $0x70] sm:$0xff]
  %v201 = vld [vmem:[%s1 + $0x78] sm:$0xff]
  %v202 = vld [vmem:[%s1 + $0x80] sm:$0xff]
  %v203 = vld [vmem:[%s1 + $0x88] sm:$0xff]
  %v204 = vld [vmem:[%s1 + $0x90] sm:$0xff]
  %v205 = vld [vmem:[%s1 + $0x98] sm:$0xff]
  %v206 = vld [vmem:[%s1 + $0xa0] sm:$0xff]
  %v207 = vld [vmem:[%s1 + $0xa8] sm:$0xff]
  %v208 = vld [vmem:[%s1 + $0xb0] sm:$0xff]
  %v209 = vld [vmem:[%s1 + $0xb8] sm:$0xff]
  %v210 = vld [vmem:[%s6] sm:$0xf]
  %v211 = vld [vmem:[%s6 + $0x4] sm:$0xf]
  %v212 = vld [vmem:[%s6 + $0x8] sm:$0xf]
  %v213 = vld [vmem:[%s6 + $0xc] sm:$0xf]
  %v214 = vld [vmem:[%s6 + $0x10] sm:$0xf]
  %v215 = vld [vmem:[%s6 + $0x14] sm:$0xf]
  %v216 = vld [vmem:[%s6 + $0x18] sm:$0xf]
  %v217 = vld [vmem:[%s6 + $0x1c] sm:$0xf]
  %v218 = vld [vmem:[%s6 + $0x20] sm:$0xf]
  %v219 = vld [vmem:[%s6 + $0x24] sm:$0xf]
  %v220 = vld [vmem:[%s6 + $0x28] sm:$0xf]
  %v221 = vld [vmem:[%s6 + $0x2c] sm:$0xf]
  %v222 = vld [vmem:[%s6 + $0x30] sm:$0xf]
  %v223 = vld [vmem:[%s6 + $0x34] sm:$0xf]
  %v224 = vld [vmem:[%s6 + $0x38] sm:$0xf]
  %v225 = vld [vmem:[%s6 + $0x3c] sm:$0xf]
  %v226 = vld [vmem:[%s6 + $0x40] sm:$0xf]
  %v227 = vld [vmem:[%s6 + $0x44] sm:$0xf]
  %v228 = vld [vmem:[%s6 + $0x48] sm:$0xf]
  %v229 = vld [vmem:[%s6 + $0x4c] sm:$0xf]
  %v230 = vld [vmem:[%s6 + $0x50] sm:$0xf]
  %v231 = vld [vmem:[%s6 + $0x54] sm:$0xf]
  %v232 = vld [vmem:[%s6 + $0x58] sm:$0xf]
  %v233 = vld [vmem:[%s6 + $0x5c] sm:$0xf]
  %v234 = vld [vmem:[%s6 + $0x60] sm:$0xf]
  %v235 = vld [vmem:[%s6 + $0x64] sm:$0xf]
  %v236 = vld [vmem:[%s6 + $0x68] sm:$0xf]
  %v237 = vld [vmem:[%s6 + $0x6c] sm:$0xf]
  %v238 = vld [vmem:[%s6 + $0x70] sm:$0xf]
  %v239 = vld [vmem:[%s6 + $0x74] sm:$0xf]
  %v240 = vld [vmem:[%s6 + $0x78] sm:$0xf]
  %v241 = vld [vmem:[%s6 + $0x7c] sm:$0xf]
  %v242 = vld [vmem:[%s6 + $0x80] sm:$0xf]
  %v243 = vld [vmem:[%s6 + $0x84] sm:$0xf]
  %v244 = vld [vmem:[%s6 + $0x88] sm:$0xf]
  %v245 = vld [vmem:[%s6 + $0x8c] sm:$0xf]
  %v246 = vld [vmem:[%s6 + $0x90] sm:$0xf]
  %v247 = vld [vmem:[%s6 + $0x94] sm:$0xf]
  %v248 = vld [vmem:[%s6 + $0x98] sm:$0xf]
  %v249 = vld [vmem:[%s6 + $0x9c] sm:$0xf]
  %v250 = vld [vmem:[%s6 + $0xa0] sm:$0xf]
  %v251 = vld [vmem:[%s6 + $0xa4] sm:$0xf]
  %v252 = vld [vmem:[%s6 + $0xa8] sm:$0xf]
  %v253 = vld [vmem:[%s6 + $0xac] sm:$0xf]
  %v254 = vld [vmem:[%s6 + $0xb0] sm:$0xf]
  %v255 = vld [vmem:[%s6 + $0xb4] sm:$0xf]
  %v256 = vld [vmem:[%s6 + $0xb8] sm:$0xf]
  %v257 = vld [vmem:[%s6 + $0xbc] sm:$0xf]
  %v258 = vld [vmem:[%s6 + $0xc0] sm:$0xf]
  %v259 = vld [vmem:[%s6 + $0xc4] sm:$0xf]
  %v260 = vld [vmem:[%s6 + $0xc8] sm:$0xf]
  %v261 = vld [vmem:[%s6 + $0xcc] sm:$0xf]
  %v262 = vld [vmem:[%s6 + $0xd0] sm:$0xf]
  %v263 = vld [vmem:[%s6 + $0xd4] sm:$0xf]
  %v264 = vld [vmem:[%s6 + $0xd8] sm:$0xf]
  %v265 = vld [vmem:[%s6 + $0xdc] sm:$0xf]
  %v266 = vld [vmem:[%s6 + $0xe0] sm:$0xf]
  %v267 = vld [vmem:[%s6 + $0xe4] sm:$0xf]
  %v268 = vld [vmem:[%s6 + $0xe8] sm:$0xf]
  %v269 = vld [vmem:[%s6 + $0xec] sm:$0xf]
  %v270 = vld [vmem:[%s6 + $0xf0] sm:$0xf]
  %v271 = vld [vmem:[%s6 + $0xf4] sm:$0xf]
  %v272 = vld [vmem:[%s6 + $0xf8] sm:$0xf]
  %v273 = vld [vmem:[%s6 + $0xfc] sm:$0xf]
  %v274 = vld [vmem:[%s6 + $0x100] sm:$0xf]
  %v275 = vld [vmem:[%s6 + $0x104] sm:$0xf]
  %v276 = vld [vmem:[%s6 + $0x108] sm:$0xf]
  %v277 = vld [vmem:[%s6 + $0x10c] sm:$0xf]
  %v278 = vld [vmem:[%s6 + $0x110] sm:$0xf]
  %v279 = vld [vmem:[%s6 + $0x114] sm:$0xf]
  %v280 = vld [vmem:[%s6 + $0x118] sm:$0xf]
  %v281 = vld [vmem:[%s6 + $0x11c] sm:$0xf]
  %v282 = vld [vmem:[%s6 + $0x120] sm:$0xf]
  %v283 = vld [vmem:[%s6 + $0x124] sm:$0xf]
  %v284 = vld [vmem:[%s6 + $0x128] sm:$0xf]
  %v285 = vld [vmem:[%s6 + $0x12c] sm:$0xf]
  %v286 = vld [vmem:[%s6 + $0x130] sm:$0xf]
  %v287 = vld [vmem:[%s6 + $0x134] sm:$0xf]
  %v288 = vld [vmem:[%s6 + $0x138] sm:$0xf]
  %v289 = vld [vmem:[%s6 + $0x13c] sm:$0xf]
  %v290 = vld [vmem:[%s6 + $0x140] sm:$0xf]
  %v291 = vld [vmem:[%s6 + $0x144] sm:$0xf]
  %v292 = vld [vmem:[%s6 + $0x148] sm:$0xf]
  %v293 = vld [vmem:[%s6 + $0x14c] sm:$0xf]
  %v294 = vld [vmem:[%s6 + $0x150] sm:$0xf]
  %v295 = vld [vmem:[%s6 + $0x154] sm:$0xf]
  %v296 = vld [vmem:[%s6 + $0x158] sm:$0xf]
  %v297 = vld [vmem:[%s6 + $0x15c] sm:$0xf]
  %v298 = vld [vmem:[%s6 + $0x160] sm:$0xf]
  %v299 = vld [vmem:[%s6 + $0x164] sm:$0xf]
  %v300 = vld [vmem:[%s6 + $0x168] sm:$0xf]
  %v301 = vld [vmem:[%s6 + $0x16c] sm:$0xf]
  %v302 = vld [vmem:[%s6 + $0x170] sm:$0xf]
  %v303 = vld [vmem:[%s6 + $0x174] sm:$0xf]
  %v304 = vld [vmem:[%s6 + $0x178] sm:$0xf]
  %v305 = vld [vmem:[%s6 + $0x17c] sm:$0xf]
  %v330 = vunpack.c.l.b16 %v186
  %v331 = vunpack.c.h.b16 %v186
  %v332 = vunpack.c.l.b16 %v187
  %v333 = vunpack.c.h.b16 %v187
  %v334 = vunpack.c.l.b16 %v188
  %v335 = vunpack.c.h.b16 %v188
  %v336 = vunpack.c.l.b16 %v189
  %v337 = vunpack.c.h.b16 %v189
  %v338 = vunpack.c.l.b16 %v190
  %v339 = vunpack.c.h.b16 %v190
  %v340 = vunpack.c.l.b16 %v191
  %v341 = vunpack.c.h.b16 %v191
  %v342 = vunpack.c.l.b16 %v192
  %v343 = vunpack.c.h.b16 %v192
  %v344 = vunpack.c.l.b16 %v193
  %v345 = vunpack.c.h.b16 %v193
  %v346 = vunpack.c.l.b16 %v194
  %v347 = vunpack.c.h.b16 %v194
  %v348 = vunpack.c.l.b16 %v195
  %v349 = vunpack.c.h.b16 %v195
  %v350 = vunpack.c.l.b16 %v196
  %v351 = vunpack.c.h.b16 %v196
  %v352 = vunpack.c.l.b16 %v197
  %v353 = vunpack.c.h.b16 %v197
  %v354 = vunpack.c.l.b16 %v198
  %v355 = vunpack.c.h.b16 %v198
  %v356 = vunpack.c.l.b16 %v199
  %v357 = vunpack.c.h.b16 %v199
  %v358 = vunpack.c.l.b16 %v200
  %v359 = vunpack.c.h.b16 %v200
  %v360 = vunpack.c.l.b16 %v201
  %v361 = vunpack.c.h.b16 %v201
  %v362 = vunpack.c.l.b16 %v202
  %v363 = vunpack.c.h.b16 %v202
  %v364 = vunpack.c.l.b16 %v203
  %v365 = vunpack.c.h.b16 %v203
  %v366 = vunpack.c.l.b16 %v204
  %v367 = vunpack.c.h.b16 %v204
  %v368 = vunpack.c.l.b16 %v205
  %v369 = vunpack.c.h.b16 %v205
  %v370 = vunpack.c.l.b16 %v206
  %v371 = vunpack.c.h.b16 %v206
  %v372 = vunpack.c.l.b16 %v207
  %v373 = vunpack.c.h.b16 %v207
  %v374 = vunpack.c.l.b16 %v208
  %v375 = vunpack.c.h.b16 %v208
  %v376 = vunpack.c.l.b16 %v209
  %v377 = vunpack.c.h.b16 %v209
  %v378 = vpack.c.b16 %v336, %v330
  %v379 = vpack.c.b16 %v337, %v331
  %v380 = vpack.c.b16 %v338, %v332
  %v381 = vpack.c.b16 %v339, %v333
  %v382 = vpack.c.b16 %v340, %v334
  %v383 = vpack.c.b16 %v341, %v335
  %v384 = vpack.c.b16 %v348, %v342
  %v385 = vpack.c.b16 %v349, %v343
  %v386 = vpack.c.b16 %v350, %v344
  %v387 = vpack.c.b16 %v351, %v345
  %v388 = vpack.c.b16 %v352, %v346
  %v389 = vpack.c.b16 %v353, %v347
  %v390 = vpack.c.b16 %v360, %v354
  %v391 = vpack.c.b16 %v361, %v355
  %v392 = vpack.c.b16 %v362, %v356
  %v393 = vpack.c.b16 %v363, %v357
  %v394 = vpack.c.b16 %v364, %v358
  %v395 = vpack.c.b16 %v365, %v359
  %v396 = vpack.c.b16 %v372, %v366
  %v397 = vpack.c.b16 %v373, %v367
  %v398 = vpack.c.b16 %v374, %v368
  %v399 = vpack.c.b16 %v375, %v369
  %v400 = vpack.c.b16 %v376, %v370
  %v401 = vpack.c.b16 %v377, %v371
  %v522 = vunpack.c.l.b16 %v210
  %v523 = vunpack.c.l.b16 %v211
  %v524 = vunpack.c.l.b16 %v212
  %v525 = vunpack.c.l.b16 %v213
  %v526 = vunpack.c.l.b16 %v214
  %v527 = vunpack.c.l.b16 %v215
  %v528 = vunpack.c.l.b16 %v216
  %v529 = vunpack.c.l.b16 %v217
  %v530 = vunpack.c.l.b16 %v218
  %v531 = vunpack.c.l.b16 %v219
  %v532 = vunpack.c.l.b16 %v220
  %v533 = vunpack.c.l.b16 %v221
  %v534 = vunpack.c.l.b16 %v222
  %v535 = vunpack.c.l.b16 %v223
  %v536 = vunpack.c.l.b16 %v224
  %v537 = vunpack.c.l.b16 %v225
  %v538 = vunpack.c.l.b16 %v226
  %v539 = vunpack.c.l.b16 %v227
  %v540 = vunpack.c.l.b16 %v228
  %v541 = vunpack.c.l.b16 %v229
  %v542 = vunpack.c.l.b16 %v230
  %v543 = vunpack.c.l.b16 %v231
  %v544 = vunpack.c.l.b16 %v232
  %v545 = vunpack.c.l.b16 %v233
  %v546 = vunpack.c.l.b16 %v234
  %v547 = vunpack.c.l.b16 %v235
  %v548 = vunpack.c.l.b16 %v236
  %v549 = vunpack.c.l.b16 %v237
  %v550 = vunpack.c.l.b16 %v238
  %v551 = vunpack.c.l.b16 %v239
  %v552 = vunpack.c.l.b16 %v240
  %v553 = vunpack.c.l.b16 %v241
  %v554 = vunpack.c.l.b16 %v242
  %v555 = vunpack.c.l.b16 %v243
  %v556 = vunpack.c.l.b16 %v244
  %v557 = vunpack.c.l.b16 %v245
  %v558 = vunpack.c.l.b16 %v246
  %v559 = vunpack.c.l.b16 %v247
  %v560 = vunpack.c.l.b16 %v248
  %v561 = vunpack.c.l.b16 %v249
  %v562 = vunpack.c.l.b16 %v250
  %v563 = vunpack.c.l.b16 %v251
  %v564 = vunpack.c.l.b16 %v252
  %v565 = vunpack.c.l.b16 %v253
  %v566 = vunpack.c.l.b16 %v254
  %v567 = vunpack.c.l.b16 %v255
  %v568 = vunpack.c.l.b16 %v256
  %v569 = vunpack.c.l.b16 %v257
  %v570 = vunpack.c.l.b16 %v258
  %v571 = vunpack.c.l.b16 %v259
  %v572 = vunpack.c.l.b16 %v260
  %v573 = vunpack.c.l.b16 %v261
  %v574 = vunpack.c.l.b16 %v262
  %v575 = vunpack.c.l.b16 %v263
  %v576 = vunpack.c.l.b16 %v264
  %v577 = vunpack.c.l.b16 %v265
  %v578 = vunpack.c.l.b16 %v266
  %v579 = vunpack.c.l.b16 %v267
  %v580 = vunpack.c.l.b16 %v268
  %v581 = vunpack.c.l.b16 %v269
  %v582 = vunpack.c.l.b16 %v270
  %v583 = vunpack.c.l.b16 %v271
  %v584 = vunpack.c.l.b16 %v272
  %v585 = vunpack.c.l.b16 %v273
  %v586 = vunpack.c.l.b16 %v274
  %v587 = vunpack.c.l.b16 %v275
  %v588 = vunpack.c.l.b16 %v276
  %v589 = vunpack.c.l.b16 %v277
  %v590 = vunpack.c.l.b16 %v278
  %v591 = vunpack.c.l.b16 %v279
  %v592 = vunpack.c.l.b16 %v280
  %v593 = vunpack.c.l.b16 %v281
  %v594 = vunpack.c.l.b16 %v282
  %v595 = vunpack.c.l.b16 %v283
  %v596 = vunpack.c.l.b16 %v284
  %v597 = vunpack.c.l.b16 %v285
  %v598 = vunpack.c.l.b16 %v286
  %v599 = vunpack.c.l.b16 %v287
  %v600 = vunpack.c.l.b16 %v288
  %v601 = vunpack.c.l.b16 %v289
  %v602 = vunpack.c.l.b16 %v290
  %v603 = vunpack.c.l.b16 %v291
  %v604 = vunpack.c.l.b16 %v292
  %v605 = vunpack.c.l.b16 %v293
  %v606 = vunpack.c.l.b16 %v294
  %v607 = vunpack.c.l.b16 %v295
  %v608 = vunpack.c.l.b16 %v296
  %v609 = vunpack.c.l.b16 %v297
  %v610 = vunpack.c.l.b16 %v298
  %v611 = vunpack.c.l.b16 %v299
  %v612 = vunpack.c.l.b16 %v300
  %v613 = vunpack.c.l.b16 %v301
  %v614 = vunpack.c.l.b16 %v302
  %v615 = vunpack.c.l.b16 %v303
  %v616 = vunpack.c.l.b16 %v304
  %v617 = vunpack.c.l.b16 %v305
  %v618 = vpack.c.b16 %v523, %v522
  %v619 = vpack.c.b16 %v525, %v524
  %v620 = vpack.c.b16 %v527, %v526
  %v621 = vpack.c.b16 %v529, %v528
  %v622 = vpack.c.b16 %v531, %v530
  %v623 = vpack.c.b16 %v533, %v532
  %v624 = vpack.c.b16 %v535, %v534
  %v625 = vpack.c.b16 %v537, %v536
  %v626 = vpack.c.b16 %v539, %v538
  %v627 = vpack.c.b16 %v541, %v540
  %v628 = vpack.c.b16 %v543, %v542
  %v629 = vpack.c.b16 %v545, %v544
  %v630 = vpack.c.b16 %v547, %v546
  %v631 = vpack.c.b16 %v549, %v548
  %v632 = vpack.c.b16 %v551, %v550
  %v633 = vpack.c.b16 %v553, %v552
  %v634 = vpack.c.b16 %v555, %v554
  %v635 = vpack.c.b16 %v557, %v556
  %v636 = vpack.c.b16 %v559, %v558
  %v637 = vpack.c.b16 %v561, %v560
  %v638 = vpack.c.b16 %v563, %v562
  %v639 = vpack.c.b16 %v565, %v564
  %v640 = vpack.c.b16 %v567, %v566
  %v641 = vpack.c.b16 %v569, %v568
  %v642 = vpack.c.b16 %v571, %v570
  %v643 = vpack.c.b16 %v573, %v572
  %v644 = vpack.c.b16 %v575, %v574
  %v645 = vpack.c.b16 %v577, %v576
  %v646 = vpack.c.b16 %v579, %v578
  %v647 = vpack.c.b16 %v581, %v580
  %v648 = vpack.c.b16 %v583, %v582
  %v649 = vpack.c.b16 %v585, %v584
  %v650 = vpack.c.b16 %v587, %v586
  %v651 = vpack.c.b16 %v589, %v588
  %v652 = vpack.c.b16 %v591, %v590
  %v653 = vpack.c.b16 %v593, %v592
  %v654 = vpack.c.b16 %v595, %v594
  %v655 = vpack.c.b16 %v597, %v596
  %v656 = vpack.c.b16 %v599, %v598
  %v657 = vpack.c.b16 %v601, %v600
  %v658 = vpack.c.b16 %v603, %v602
  %v659 = vpack.c.b16 %v605, %v604
  %v660 = vpack.c.b16 %v607, %v606
  %v661 = vpack.c.b16 %v609, %v608
  %v662 = vpack.c.b16 %v611, %v610
  %v663 = vpack.c.b16 %v613, %v612
  %v664 = vpack.c.b16 %v615, %v614
  %v665 = vpack.c.b16 %v617, %v616
  %714 = vmatprep.subr.bf16.mxu0 0
  %715 = vmatpush1.bf16.msra.mxu0 %v625
  %716 = vmatprep.subr.bf16.mxu0 0
  %717 = vmatpush1.bf16.msra.mxu0 %v624
  %718 = vmatprep.subr.bf16.mxu0 0
  %719 = vmatpush1.bf16.msra.mxu0 %v623
  %720 = vmatprep.subr.bf16.mxu0 0
  %721 = vmatpush1.bf16.msra.mxu0 %v622
  %722 = vmatprep.subr.bf16.mxu0 0
  %723 = vmatpush1.bf16.msra.mxu0 %v621
  %724 = vmatprep.subr.bf16.mxu0 0
  %725 = vmatpush1.bf16.msra.mxu0 %v620
  %726 = vmatprep.subr.bf16.mxu0 0
  %727 = vmatpush1.bf16.msra.mxu0 %v619
  %728 = vmatprep.subr.bf16.mxu0 0
  %729 = vmatpush1.bf16.msra.mxu0 %v618
  %730 = vmatprep.subr.bf16.mxu0 0
  %731 = vmatpush2.bf16.msra.mxu0 %v633
  %732 = vmatprep.subr.bf16.mxu0 0
  %733 = vmatpush2.bf16.msra.mxu0 %v632
  %734 = vmatprep.subr.bf16.mxu0 0
  %735 = vmatpush2.bf16.msra.mxu0 %v631
  %736 = vmatprep.subr.bf16.mxu0 0
  %737 = vmatpush2.bf16.msra.mxu0 %v630
  %738 = vmatprep.subr.bf16.mxu0 0
  %739 = vmatpush2.bf16.msra.mxu0 %v629
  %740 = vmatprep.subr.bf16.mxu0 0
  %741 = vmatpush2.bf16.msra.mxu0 %v628
  %742 = vmatprep.subr.bf16.mxu0 0
  %743 = vmatpush2.bf16.msra.mxu0 %v627
  %744 = vmatprep.subr.bf16.mxu0 0
  %745 = vmatpush2.bf16.msra.mxu0 %v626
  %746 = vmatprep.mubr.bf16.mxu0 %v379
  %747 = vmatmul.mubr.bf16.gmra.mxu0 %v378
  %v748 = vpop.f32.mrf.mxu0
  %v749 = vadd.f32 0.0, %v748
  %v750 = vpop.f32.mrf.mxu0
  %v751 = vpop.f32.mrf.mxu0
  %v752 = vadd.f32 0.0, %v751
  %v753 = vpop.f32.mrf.mxu0
  %754 = vmatprep.mubr.bf16.mxu0 %v385
  %755 = vmatmul.mubr.bf16.gmra.mxu0 %v384
  %v756 = vpop.f32.mrf.mxu0
  %v757 = vadd.f32 0.0, %v756
  %v758 = vpop.f32.mrf.mxu0
  %v759 = vpop.f32.mrf.mxu0
  %v760 = vadd.f32 0.0, %v759
  %v761 = vpop.f32.mrf.mxu0
  %762 = vmatprep.mubr.bf16.mxu0 %v391
  %763 = vmatmul.mubr.bf16.gmra.mxu0 %v390
  %v764 = vpop.f32.mrf.mxu0
  %v765 = vadd.f32 0.0, %v764
  %v766 = vpop.f32.mrf.mxu0
  %v767 = vpop.f32.mrf.mxu0
  %v768 = vadd.f32 0.0, %v767
  %v769 = vpop.f32.mrf.mxu0
  %770 = vmatprep.mubr.bf16.mxu0 %v397
  %771 = vmatmul.mubr.bf16.gmra.mxu0 %v396
  %v772 = vpop.f32.mrf.mxu0
  %v773 = vadd.f32 0.0, %v772
  %v774 = vpop.f32.mrf.mxu0
  %v775 = vpop.f32.mrf.mxu0
  %v776 = vadd.f32 0.0, %v775
  %v777 = vpop.f32.mrf.mxu0
  %778 = vdwg.mxu0
  %779 = vmatprep.subr.bf16.mxu0 0
  %780 = vmatpush1.bf16.msra.mxu0 %v641
  %781 = vmatprep.subr.bf16.mxu0 0
  %782 = vmatpush1.bf16.msra.mxu0 %v640
  %783 = vmatprep.subr.bf16.mxu0 0
  %784 = vmatpush1.bf16.msra.mxu0 %v639
  %785 = vmatprep.subr.bf16.mxu0 0
  %786 = vmatpush1.bf16.msra.mxu0 %v638
  %787 = vmatprep.subr.bf16.mxu0 0
  %788 = vmatpush1.bf16.msra.mxu0 %v637
  %789 = vmatprep.subr.bf16.mxu0 0
  %790 = vmatpush1.bf16.msra.mxu0 %v636
  %791 = vmatprep.subr.bf16.mxu0 0
  %792 = vmatpush1.bf16.msra.mxu0 %v635
  %793 = vmatprep.subr.bf16.mxu0 0
  %794 = vmatpush1.bf16.msra.mxu0 %v634
  %795 = vmatprep.subr.bf16.mxu0 0
  %796 = vmatpush2.bf16.msra.mxu0 %v649
  %797 = vmatprep.subr.bf16.mxu0 0
  %798 = vmatpush2.bf16.msra.mxu0 %v648
  %799 = vmatprep.subr.bf16.mxu0 0
  %800 = vmatpush2.bf16.msra.mxu0 %v647
  %801 = vmatprep.subr.bf16.mxu0 0
  %802 = vmatpush2.bf16.msra.mxu0 %v646
  %803 = vmatprep.subr.bf16.mxu0 0
  %804 = vmatpush2.bf16.msra.mxu0 %v645
  %805 = vmatprep.subr.bf16.mxu0 0
  %806 = vmatpush2.bf16.msra.mxu0 %v644
  %807 = vmatprep.subr.bf16.mxu0 0
  %808 = vmatpush2.bf16.msra.mxu0 %v643
  %809 = vmatprep.subr.bf16.mxu0 0
  %810 = vmatpush2.bf16.msra.mxu0 %v642
  %811 = vmatprep.mubr.bf16.mxu0 %v381
  %812 = vmatmul.mubr.bf16.gmra.mxu0 %v380
  %v813 = vpop.f32.mrf.mxu0
  %v814 = vadd.f32 %v749, %v813
  %v815 = vpop.f32.mrf.mxu0
  %v816 = vpop.f32.mrf.mxu0
  %v817 = vadd.f32 %v752, %v816
  %v818 = vpop.f32.mrf.mxu0
  %819 = vmatprep.mubr.bf16.mxu0 %v387
  %820 = vmatmul.mubr.bf16.gmra.mxu0 %v386
  %v821 = vpop.f32.mrf.mxu0
  %v822 = vadd.f32 %v757, %v821
  %v823 = vpop.f32.mrf.mxu0
  %v824 = vpop.f32.mrf.mxu0
  %v825 = vadd.f32 %v760, %v824
  %v826 = vpop.f32.mrf.mxu0
  %827 = vmatprep.mubr.bf16.mxu0 %v393
  %828 = vmatmul.mubr.bf16.gmra.mxu0 %v392
  %v829 = vpop.f32.mrf.mxu0
  %v830 = vadd.f32 %v765, %v829
  %v831 = vpop.f32.mrf.mxu0
  %v832 = vpop.f32.mrf.mxu0
  %v833 = vadd.f32 %v768, %v832
  %v834 = vpop.f32.mrf.mxu0
  %835 = vmatprep.mubr.bf16.mxu0 %v399
  %836 = vmatmul.mubr.bf16.gmra.mxu0 %v398
  %v837 = vpop.f32.mrf.mxu0
  %v838 = vadd.f32 %v773, %v837
  %v839 = vpop.f32.mrf.mxu0
  %v840 = vpop.f32.mrf.mxu0
  %v841 = vadd.f32 %v776, %v840
  %v842 = vpop.f32.mrf.mxu0
  %843 = vdwg.mxu0
  %844 = vmatprep.subr.bf16.mxu0 0
  %845 = vmatpush1.bf16.msra.mxu0 %v657
  %846 = vmatprep.subr.bf16.mxu0 0
  %847 = vmatpush1.bf16.msra.mxu0 %v656
  %848 = vmatprep.subr.bf16.mxu0 0
  %849 = vmatpush1.bf16.msra.mxu0 %v655
  %850 = vmatprep.subr.bf16.mxu0 0
  %851 = vmatpush1.bf16.msra.mxu0 %v654
  %852 = vmatprep.subr.bf16.mxu0 0
  %853 = vmatpush1.bf16.msra.mxu0 %v653
  %854 = vmatprep.subr.bf16.mxu0 0
  %855 = vmatpush1.bf16.msra.mxu0 %v652
  %856 = vmatprep.subr.bf16.mxu0 0
  %857 = vmatpush1.bf16.msra.mxu0 %v651
  %858 = vmatprep.subr.bf16.mxu0 0
  %859 = vmatpush1.bf16.msra.mxu0 %v650
  %860 = vmatprep.subr.bf16.mxu0 0
  %861 = vmatpush2.bf16.msra.mxu0 %v665
  %862 = vmatprep.subr.bf16.mxu0 0
  %863 = vmatpush2.bf16.msra.mxu0 %v664
  %864 = vmatprep.subr.bf16.mxu0 0
  %865 = vmatpush2.bf16.msra.mxu0 %v663
  %866 = vmatprep.subr.bf16.mxu0 0
  %867 = vmatpush2.bf16.msra.mxu0 %v662
  %868 = vmatprep.subr.bf16.mxu0 0
  %869 = vmatpush2.bf16.msra.mxu0 %v661
  %870 = vmatprep.subr.bf16.mxu0 0
  %871 = vmatpush2.bf16.msra.mxu0 %v660
  %872 = vmatprep.subr.bf16.mxu0 0
  %873 = vmatpush2.bf16.msra.mxu0 %v659
  %874 = vmatprep.subr.bf16.mxu0 0
  %875 = vmatpush2.bf16.msra.mxu0 %v658
  %876 = vmatprep.mubr.bf16.mxu0 %v383
  %877 = vmatmul.mubr.bf16.gmra.mxu0 %v382
  %v878 = vpop.f32.mrf.mxu0
  %v879 = vadd.f32 %v814, %v878
  %v880 = vpop.f32.mrf.mxu0
  %v881 = vpop.f32.mrf.mxu0
  %v882 = vadd.f32 %v817, %v881
  %v883 = vpop.f32.mrf.mxu0
  %884 = vmatprep.mubr.bf16.mxu0 %v389
  %885 = vmatmul.mubr.bf16.gmra.mxu0 %v388
  %v886 = vpop.f32.mrf.mxu0
  %v887 = vadd.f32 %v822, %v886
  %v888 = vpop.f32.mrf.mxu0
  %v889 = vpop.f32.mrf.mxu0
  %v890 = vadd.f32 %v825, %v889
  %v891 = vpop.f32.mrf.mxu0
  %892 = vmatprep.mubr.bf16.mxu0 %v395
  %893 = vmatmul.mubr.bf16.gmra.mxu0 %v394
  %v894 = vpop.f32.mrf.mxu0
  %v895 = vadd.f32 %v830, %v894
  %v896 = vpop.f32.mrf.mxu0
  %v897 = vpop.f32.mrf.mxu0
  %v898 = vadd.f32 %v833, %v897
  %v899 = vpop.f32.mrf.mxu0
  %900 = vmatprep.mubr.bf16.mxu0 %v401
  %901 = vmatmul.mubr.bf16.gmra.mxu0 %v400
  %v902 = vpop.f32.mrf.mxu0
  %v903 = vadd.f32 %v838, %v902
  %v904 = vpop.f32.mrf.mxu0
  %v905 = vpop.f32.mrf.mxu0
  %v906 = vadd.f32 %v841, %v905
  %v907 = vpop.f32.mrf.mxu0
  %908 = vdwg.mxu0
  %v933 = vunpack.c.l.b16 %v66
  %v934 = vunpack.c.h.b16 %v66
  %v935 = vunpack.c.l.b16 %v67
  %v936 = vunpack.c.h.b16 %v67
  %v937 = vunpack.c.l.b16 %v68
  %v938 = vunpack.c.h.b16 %v68
  %v939 = vunpack.c.l.b16 %v69
  %v940 = vunpack.c.h.b16 %v69
  %v941 = vunpack.c.l.b16 %v70
  %v942 = vunpack.c.h.b16 %v70
  %v943 = vunpack.c.l.b16 %v71
  %v944 = vunpack.c.h.b16 %v71
  %v945 = vunpack.c.l.b16 %v72
  %v946 = vunpack.c.h.b16 %v72
  %v947 = vunpack.c.l.b16 %v73
  %v948 = vunpack.c.h.b16 %v73
  %v949 = vunpack.c.l.b16 %v74
  %v950 = vunpack.c.h.b16 %v74
  %v951 = vunpack.c.l.b16 %v75
  %v952 = vunpack.c.h.b16 %v75
  %v953 = vunpack.c.l.b16 %v76
  %v954 = vunpack.c.h.b16 %v76
  %v955 = vunpack.c.l.b16 %v77
  %v956 = vunpack.c.h.b16 %v77
  %v957 = vunpack.c.l.b16 %v78
  %v958 = vunpack.c.h.b16 %v78
  %v959 = vunpack.c.l.b16 %v79
  %v960 = vunpack.c.h.b16 %v79
  %v961 = vunpack.c.l.b16 %v80
  %v962 = vunpack.c.h.b16 %v80
  %v963 = vunpack.c.l.b16 %v81
  %v964 = vunpack.c.h.b16 %v81
  %v965 = vunpack.c.l.b16 %v82
  %v966 = vunpack.c.h.b16 %v82
  %v967 = vunpack.c.l.b16 %v83
  %v968 = vunpack.c.h.b16 %v83
  %v969 = vunpack.c.l.b16 %v84
  %v970 = vunpack.c.h.b16 %v84
  %v971 = vunpack.c.l.b16 %v85
  %v972 = vunpack.c.h.b16 %v85
  %v973 = vunpack.c.l.b16 %v86
  %v974 = vunpack.c.h.b16 %v86
  %v975 = vunpack.c.l.b16 %v87
  %v976 = vunpack.c.h.b16 %v87
  %v977 = vunpack.c.l.b16 %v88
  %v978 = vunpack.c.h.b16 %v88
  %v979 = vunpack.c.l.b16 %v89
  %v980 = vunpack.c.h.b16 %v89
  %v981 = vpack.c.b16 %v939, %v933
  %v982 = vpack.c.b16 %v940, %v934
  %v983 = vpack.c.b16 %v941, %v935
  %v984 = vpack.c.b16 %v942, %v936
  %v985 = vpack.c.b16 %v943, %v937
  %v986 = vpack.c.b16 %v944, %v938
  %v987 = vpack.c.b16 %v951, %v945
  %v988 = vpack.c.b16 %v952, %v946
  %v989 = vpack.c.b16 %v953, %v947
  %v990 = vpack.c.b16 %v954, %v948
  %v991 = vpack.c.b16 %v955, %v949
  %v992 = vpack.c.b16 %v956, %v950
  %v993 = vpack.c.b16 %v963, %v957
  %v994 = vpack.c.b16 %v964, %v958
  %v995 = vpack.c.b16 %v965, %v959
  %v996 = vpack.c.b16 %v966, %v960
  %v997 = vpack.c.b16 %v967, %v961
  %v998 = vpack.c.b16 %v968, %v962
  %v999 = vpack.c.b16 %v975, %v969
  %v1000 = vpack.c.b16 %v976, %v970
  %v1001 = vpack.c.b16 %v977, %v971
  %v1002 = vpack.c.b16 %v978, %v972
  %v1003 = vpack.c.b16 %v979, %v973
  %v1004 = vpack.c.b16 %v980, %v974
  %v1125 = vunpack.c.l.b16 %v90
  %v1126 = vunpack.c.l.b16 %v91
  %v1127 = vunpack.c.l.b16 %v92
  %v1128 = vunpack.c.l.b16 %v93
  %v1129 = vunpack.c.l.b16 %v94
  %v1130 = vunpack.c.l.b16 %v95
  %v1131 = vunpack.c.l.b16 %v96
  %v1132 = vunpack.c.l.b16 %v97
  %v1133 = vunpack.c.l.b16 %v98
  %v1134 = vunpack.c.l.b16 %v99
  %v1135 = vunpack.c.l.b16 %v100
  %v1136 = vunpack.c.l.b16 %v101
  %v1137 = vunpack.c.l.b16 %v102
  %v1138 = vunpack.c.l.b16 %v103
  %v1139 = vunpack.c.l.b16 %v104
  %v1140 = vunpack.c.l.b16 %v105
  %v1141 = vunpack.c.l.b16 %v106
  %v1142 = vunpack.c.l.b16 %v107
  %v1143 = vunpack.c.l.b16 %v108
  %v1144 = vunpack.c.l.b16 %v109
  %v1145 = vunpack.c.l.b16 %v110
  %v1146 = vunpack.c.l.b16 %v111
  %v1147 = vunpack.c.l.b16 %v112
  %v1148 = vunpack.c.l.b16 %v113
  %v1149 = vunpack.c.l.b16 %v114
  %v1150 = vunpack.c.l.b16 %v115
  %v1151 = vunpack.c.l.b16 %v116
  %v1152 = vunpack.c.l.b16 %v117
  %v1153 = vunpack.c.l.b16 %v118
  %v1154 = vunpack.c.l.b16 %v119
  %v1155 = vunpack.c.l.b16 %v120
  %v1156 = vunpack.c.l.b16 %v121
  %v1157 = vunpack.c.l.b16 %v122
  %v1158 = vunpack.c.l.b16 %v123
  %v1159 = vunpack.c.l.b16 %v124
  %v1160 = vunpack.c.l.b16 %v125
  %v1161 = vunpack.c.l.b16 %v126
  %v1162 = vunpack.c.l.b16 %v127
  %v1163 = vunpack.c.l.b16 %v128
  %v1164 = vunpack.c.l.b16 %v129
  %v1165 = vunpack.c.l.b16 %v130
  %v1166 = vunpack.c.l.b16 %v131
  %v1167 = vunpack.c.l.b16 %v132
  %v1168 = vunpack.c.l.b16 %v133
  %v1169 = vunpack.c.l.b16 %v134
  %v1170 = vunpack.c.l.b16 %v135
  %v1171 = vunpack.c.l.b16 %v136
  %v1172 = vunpack.c.l.b16 %v137
  %v1173 = vunpack.c.l.b16 %v138
  %v1174 = vunpack.c.l.b16 %v139
  %v1175 = vunpack.c.l.b16 %v140
  %v1176 = vunpack.c.l.b16 %v141
  %v1177 = vunpack.c.l.b16 %v142
  %v1178 = vunpack.c.l.b16 %v143
  %v1179 = vunpack.c.l.b16 %v144
  %v1180 = vunpack.c.l.b16 %v145
  %v1181 = vunpack.c.l.b16 %v146
  %v1182 = vunpack.c.l.b16 %v147
  %v1183 = vunpack.c.l.b16 %v148
  %v1184 = vunpack.c.l.b16 %v149
  %v1185 = vunpack.c.l.b16 %v150
  %v1186 = vunpack.c.l.b16 %v151
  %v1187 = vunpack.c.l.b16 %v152
  %v1188 = vunpack.c.l.b16 %v153
  %v1189 = vunpack.c.l.b16 %v154
  %v1190 = vunpack.c.l.b16 %v155
  %v1191 = vunpack.c.l.b16 %v156
  %v1192 = vunpack.c.l.b16 %v157
  %v1193 = vunpack.c.l.b16 %v158
  %v1194 = vunpack.c.l.b16 %v159
  %v1195 = vunpack.c.l.b16 %v160
  %v1196 = vunpack.c.l.b16 %v161
  %v1197 = vunpack.c.l.b16 %v162
  %v1198 = vunpack.c.l.b16 %v163
  %v1199 = vunpack.c.l.b16 %v164
  %v1200 = vunpack.c.l.b16 %v165
  %v1201 = vunpack.c.l.b16 %v166
  %v1202 = vunpack.c.l.b16 %v167
  %v1203 = vunpack.c.l.b16 %v168
  %v1204 = vunpack.c.l.b16 %v169
  %v1205 = vunpack.c.l.b16 %v170
  %v1206 = vunpack.c.l.b16 %v171
  %v1207 = vunpack.c.l.b16 %v172
  %v1208 = vunpack.c.l.b16 %v173
  %v1209 = vunpack.c.l.b16 %v174
  %v1210 = vunpack.c.l.b16 %v175
  %v1211 = vunpack.c.l.b16 %v176
  %v1212 = vunpack.c.l.b16 %v177
  %v1213 = vunpack.c.l.b16 %v178
  %v1214 = vunpack.c.l.b16 %v179
  %v1215 = vunpack.c.l.b16 %v180
  %v1216 = vunpack.c.l.b16 %v181
  %v1217 = vunpack.c.l.b16 %v182
  %v1218 = vunpack.c.l.b16 %v183
  %v1219 = vunpack.c.l.b16 %v184
  %v1220 = vunpack.c.l.b16 %v185
  %v1221 = vpack.c.b16 %v1126, %v1125
  %v1222 = vpack.c.b16 %v1128, %v1127
  %v1223 = vpack.c.b16 %v1130, %v1129
  %v1224 = vpack.c.b16 %v1132, %v1131
  %v1225 = vpack.c.b16 %v1134, %v1133
  %v1226 = vpack.c.b16 %v1136, %v1135
  %v1227 = vpack.c.b16 %v1138, %v1137
  %v1228 = vpack.c.b16 %v1140, %v1139
  %v1229 = vpack.c.b16 %v1142, %v1141
  %v1230 = vpack.c.b16 %v1144, %v1143
  %v1231 = vpack.c.b16 %v1146, %v1145
  %v1232 = vpack.c.b16 %v1148, %v1147
  %v1233 = vpack.c.b16 %v1150, %v1149
  %v1234 = vpack.c.b16 %v1152, %v1151
  %v1235 = vpack.c.b16 %v1154, %v1153
  %v1236 = vpack.c.b16 %v1156, %v1155
  %v1237 = vpack.c.b16 %v1158, %v1157
  %v1238 = vpack.c.b16 %v1160, %v1159
  %v1239 = vpack.c.b16 %v1162, %v1161
  %v1240 = vpack.c.b16 %v1164, %v1163
  %v1241 = vpack.c.b16 %v1166, %v1165
  %v1242 = vpack.c.b16 %v1168, %v1167
  %v1243 = vpack.c.b16 %v1170, %v1169
  %v1244 = vpack.c.b16 %v1172, %v1171
  %v1245 = vpack.c.b16 %v1174, %v1173
  %v1246 = vpack.c.b16 %v1176, %v1175
  %v1247 = vpack.c.b16 %v1178, %v1177
  %v1248 = vpack.c.b16 %v1180, %v1179
  %v1249 = vpack.c.b16 %v1182, %v1181
  %v1250 = vpack.c.b16 %v1184, %v1183
  %v1251 = vpack.c.b16 %v1186, %v1185
  %v1252 = vpack.c.b16 %v1188, %v1187
  %v1253 = vpack.c.b16 %v1190, %v1189
  %v1254 = vpack.c.b16 %v1192, %v1191
  %v1255 = vpack.c.b16 %v1194, %v1193
  %v1256 = vpack.c.b16 %v1196, %v1195
  %v1257 = vpack.c.b16 %v1198, %v1197
  %v1258 = vpack.c.b16 %v1200, %v1199
  %v1259 = vpack.c.b16 %v1202, %v1201
  %v1260 = vpack.c.b16 %v1204, %v1203
  %v1261 = vpack.c.b16 %v1206, %v1205
  %v1262 = vpack.c.b16 %v1208, %v1207
  %v1263 = vpack.c.b16 %v1210, %v1209
  %v1264 = vpack.c.b16 %v1212, %v1211
  %v1265 = vpack.c.b16 %v1214, %v1213
  %v1266 = vpack.c.b16 %v1216, %v1215
  %v1267 = vpack.c.b16 %v1218, %v1217
  %v1268 = vpack.c.b16 %v1220, %v1219
  %1317 = vmatprep.subr.bf16.mxu0 0
  %1318 = vmatpush1.bf16.msra.mxu0 %v1228
  %1319 = vmatprep.subr.bf16.mxu0 0
  %1320 = vmatpush1.bf16.msra.mxu0 %v1227
  %1321 = vmatprep.subr.bf16.mxu0 0
  %1322 = vmatpush1.bf16.msra.mxu0 %v1226
  %1323 = vmatprep.subr.bf16.mxu0 0
  %1324 = vmatpush1.bf16.msra.mxu0 %v1225
  %1325 = vmatprep.subr.bf16.mxu0 0
  %1326 = vmatpush1.bf16.msra.mxu0 %v1224
  %1327 = vmatprep.subr.bf16.mxu0 0
  %1328 = vmatpush1.bf16.msra.mxu0 %v1223
  %1329 = vmatprep.subr.bf16.mxu0 0
  %1330 = vmatpush1.bf16.msra.mxu0 %v1222
  %1331 = vmatprep.subr.bf16.mxu0 0
  %1332 = vmatpush1.bf16.msra.mxu0 %v1221
  %1333 = vmatprep.subr.bf16.mxu0 0
  %1334 = vmatpush2.bf16.msra.mxu0 %v1236
  %1335 = vmatprep.subr.bf16.mxu0 0
  %1336 = vmatpush2.bf16.msra.mxu0 %v1235
  %1337 = vmatprep.subr.bf16.mxu0 0
  %1338 = vmatpush2.bf16.msra.mxu0 %v1234
  %1339 = vmatprep.subr.bf16.mxu0 0
  %1340 = vmatpush2.bf16.msra.mxu0 %v1233
  %1341 = vmatprep.subr.bf16.mxu0 0
  %1342 = vmatpush2.bf16.msra.mxu0 %v1232
  %1343 = vmatprep.subr.bf16.mxu0 0
  %1344 = vmatpush2.bf16.msra.mxu0 %v1231
  %1345 = vmatprep.subr.bf16.mxu0 0
  %1346 = vmatpush2.bf16.msra.mxu0 %v1230
  %1347 = vmatprep.subr.bf16.mxu0 0
  %1348 = vmatpush2.bf16.msra.mxu0 %v1229
  %1349 = vmatprep.mubr.bf16.mxu0 %v982
  %1350 = vmatmul.mubr.bf16.gmra.mxu0 %v981
  %v1351 = vpop.f32.mrf.mxu0
  %v1352 = vadd.f32 %v879, %v1351
  %v1353 = vpop.f32.mrf.mxu0
  %v1354 = vpop.f32.mrf.mxu0
  %v1355 = vadd.f32 %v882, %v1354
  %v1356 = vpop.f32.mrf.mxu0
  %1357 = vmatprep.mubr.bf16.mxu0 %v988
  %1358 = vmatmul.mubr.bf16.gmra.mxu0 %v987
  %v1359 = vpop.f32.mrf.mxu0
  %v1360 = vadd.f32 %v887, %v1359
  %v1361 = vpop.f32.mrf.mxu0
  %v1362 = vpop.f32.mrf.mxu0
  %v1363 = vadd.f32 %v890, %v1362
  %v1364 = vpop.f32.mrf.mxu0
  %1365 = vmatprep.mubr.bf16.mxu0 %v994
  %1366 = vmatmul.mubr.bf16.gmra.mxu0 %v993
  %v1367 = vpop.f32.mrf.mxu0
  %v1368 = vadd.f32 %v895, %v1367
  %v1369 = vpop.f32.mrf.mxu0
  %v1370 = vpop.f32.mrf.mxu0
  %v1371 = vadd.f32 %v898, %v1370
  %v1372 = vpop.f32.mrf.mxu0
  %1373 = vmatprep.mubr.bf16.mxu0 %v1000
  %1374 = vmatmul.mubr.bf16.gmra.mxu0 %v999
  %v1375 = vpop.f32.mrf.mxu0
  %v1376 = vadd.f32 %v903, %v1375
  %v1377 = vpop.f32.mrf.mxu0
  %v1378 = vpop.f32.mrf.mxu0
  %v1379 = vadd.f32 %v906, %v1378
  %v1380 = vpop.f32.mrf.mxu0
  %1381 = vdwg.mxu0
  %1382 = vmatprep.subr.bf16.mxu0 0
  %1383 = vmatpush1.bf16.msra.mxu0 %v1244
  %1384 = vmatprep.subr.bf16.mxu0 0
  %1385 = vmatpush1.bf16.msra.mxu0 %v1243
  %1386 = vmatprep.subr.bf16.mxu0 0
  %1387 = vmatpush1.bf16.msra.mxu0 %v1242
  %1388 = vmatprep.subr.bf16.mxu0 0
  %1389 = vmatpush1.bf16.msra.mxu0 %v1241
  %1390 = vmatprep.subr.bf16.mxu0 0
  %1391 = vmatpush1.bf16.msra.mxu0 %v1240
  %1392 = vmatprep.subr.bf16.mxu0 0
  %1393 = vmatpush1.bf16.msra.mxu0 %v1239
  %1394 = vmatprep.subr.bf16.mxu0 0
  %1395 = vmatpush1.bf16.msra.mxu0 %v1238
  %1396 = vmatprep.subr.bf16.mxu0 0
  %1397 = vmatpush1.bf16.msra.mxu0 %v1237
  %1398 = vmatprep.subr.bf16.mxu0 0
  %1399 = vmatpush2.bf16.msra.mxu0 %v1252
  %1400 = vmatprep.subr.bf16.mxu0 0
  %1401 = vmatpush2.bf16.msra.mxu0 %v1251
  %1402 = vmatprep.subr.bf16.mxu0 0
  %1403 = vmatpush2.bf16.msra.mxu0 %v1250
  %1404 = vmatprep.subr.bf16.mxu0 0
  %1405 = vmatpush2.bf16.msra.mxu0 %v1249
  %1406 = vmatprep.subr.bf16.mxu0 0
  %1407 = vmatpush2.bf16.msra.mxu0 %v1248
  %1408 = vmatprep.subr.bf16.mxu0 0
  %1409 = vmatpush2.bf16.msra.mxu0 %v1247
  %1410 = vmatprep.subr.bf16.mxu0 0
  %1411 = vmatpush2.bf16.msra.mxu0 %v1246
  %1412 = vmatprep.subr.bf16.mxu0 0
  %1413 = vmatpush2.bf16.msra.mxu0 %v1245
  %1414 = vmatprep.mubr.bf16.mxu0 %v984
  %1415 = vmatmul.mubr.bf16.gmra.mxu0 %v983
  %v1416 = vpop.f32.mrf.mxu0
  %v1417 = vadd.f32 %v1352, %v1416
  %v1418 = vpop.f32.mrf.mxu0
  %v1419 = vpop.f32.mrf.mxu0
  %v1420 = vadd.f32 %v1355, %v1419
  %v1421 = vpop.f32.mrf.mxu0
  %1422 = vmatprep.mubr.bf16.mxu0 %v990
  %1423 = vmatmul.mubr.bf16.gmra.mxu0 %v989
  %v1424 = vpop.f32.mrf.mxu0
  %v1425 = vadd.f32 %v1360, %v1424
  %v1426 = vpop.f32.mrf.mxu0
  %v1427 = vpop.f32.mrf.mxu0
  %v1428 = vadd.f32 %v1363, %v1427
  %v1429 = vpop.f32.mrf.mxu0
  %1430 = vmatprep.mubr.bf16.mxu0 %v996
  %1431 = vmatmul.mubr.bf16.gmra.mxu0 %v995
  %v1432 = vpop.f32.mrf.mxu0
  %v1433 = vadd.f32 %v1368, %v1432
  %v1434 = vpop.f32.mrf.mxu0
  %v1435 = vpop.f32.mrf.mxu0
  %v1436 = vadd.f32 %v1371, %v1435
  %v1437 = vpop.f32.mrf.mxu0
  %1438 = vmatprep.mubr.bf16.mxu0 %v1002
  %1439 = vmatmul.mubr.bf16.gmra.mxu0 %v1001
  %v1440 = vpop.f32.mrf.mxu0
  %v1441 = vadd.f32 %v1376, %v1440
  %v1442 = vpop.f32.mrf.mxu0
  %v1443 = vpop.f32.mrf.mxu0
  %v1444 = vadd.f32 %v1379, %v1443
  %v1445 = vpop.f32.mrf.mxu0
  %1446 = vdwg.mxu0
  %1447 = vmatprep.subr.bf16.mxu0 0
  %1448 = vmatpush1.bf16.msra.mxu0 %v1260
  %1449 = vmatprep.subr.bf16.mxu0 0
  %1450 = vmatpush1.bf16.msra.mxu0 %v1259
  %1451 = vmatprep.subr.bf16.mxu0 0
  %1452 = vmatpush1.bf16.msra.mxu0 %v1258
  %1453 = vmatprep.subr.bf16.mxu0 0
  %1454 = vmatpush1.bf16.msra.mxu0 %v1257
  %1455 = vmatprep.subr.bf16.mxu0 0
  %1456 = vmatpush1.bf16.msra.mxu0 %v1256
  %1457 = vmatprep.subr.bf16.mxu0 0
  %1458 = vmatpush1.bf16.msra.mxu0 %v1255
  %1459 = vmatprep.subr.bf16.mxu0 0
  %1460 = vmatpush1.bf16.msra.mxu0 %v1254
  %1461 = vmatprep.subr.bf16.mxu0 0
  %1462 = vmatpush1.bf16.msra.mxu0 %v1253
  %1463 = vmatprep.subr.bf16.mxu0 0
  %1464 = vmatpush2.bf16.msra.mxu0 %v1268
  %1465 = vmatprep.subr.bf16.mxu0 0
  %1466 = vmatpush2.bf16.msra.mxu0 %v1267
  %1467 = vmatprep.subr.bf16.mxu0 0
  %1468 = vmatpush2.bf16.msra.mxu0 %v1266
  %1469 = vmatprep.subr.bf16.mxu0 0
  %1470 = vmatpush2.bf16.msra.mxu0 %v1265
  %1471 = vmatprep.subr.bf16.mxu0 0
  %1472 = vmatpush2.bf16.msra.mxu0 %v1264
  %1473 = vmatprep.subr.bf16.mxu0 0
  %1474 = vmatpush2.bf16.msra.mxu0 %v1263
  %1475 = vmatprep.subr.bf16.mxu0 0
  %1476 = vmatpush2.bf16.msra.mxu0 %v1262
  %1477 = vmatprep.subr.bf16.mxu0 0
  %1478 = vmatpush2.bf16.msra.mxu0 %v1261
  %1479 = vmatprep.mubr.bf16.mxu0 %v986
  %1480 = vmatmul.mubr.bf16.gmra.mxu0 %v985
  %v1481 = vpop.f32.mrf.mxu0
  %v1482 = vadd.f32 %v1417, %v1481
  %v1483 = vpop.f32.mrf.mxu0
  %v1484 = vpop.f32.mrf.mxu0
  %v1485 = vadd.f32 %v1420, %v1484
  %v1486 = vpop.f32.mrf.mxu0
  %1487 = vmatprep.mubr.bf16.mxu0 %v992
  %1488 = vmatmul.mubr.bf16.gmra.mxu0 %v991
  %v1489 = vpop.f32.mrf.mxu0
  %v1490 = vadd.f32 %v1425, %v1489
  %v1491 = vpop.f32.mrf.mxu0
  %v1492 = vpop.f32.mrf.mxu0
  %v1493 = vadd.f32 %v1428, %v1492
  %v1494 = vpop.f32.mrf.mxu0
  %1495 = vmatprep.mubr.bf16.mxu0 %v998
  %1496 = vmatmul.mubr.bf16.gmra.mxu0 %v997
  %v1497 = vpop.f32.mrf.mxu0
  %v1498 = vadd.f32 %v1433, %v1497
  %v1499 = vpop.f32.mrf.mxu0
  %v1500 = vpop.f32.mrf.mxu0
  %v1501 = vadd.f32 %v1436, %v1500
  %v1502 = vpop.f32.mrf.mxu0
  %1503 = vmatprep.mubr.bf16.mxu0 %v1004
  %1504 = vmatmul.mubr.bf16.gmra.mxu0 %v1003
  %v1505 = vpop.f32.mrf.mxu0
  %v1506 = vadd.f32 %v1441, %v1505
  %v1507 = vpop.f32.mrf.mxu0
  %v1508 = vpop.f32.mrf.mxu0
  %v1509 = vadd.f32 %v1444, %v1508
  %v1510 = vpop.f32.mrf.mxu0
  %1511 = vdwg.mxu0
  %v1512 = vld [vmem:[%s2] sm:$0xf]
  %v1513 = vld [vmem:[%s2 + $0x4] sm:$0xf]
  %v1514 = vld [vmem:[%s2 + $0x8] sm:$0xf]
  %v1515 = vld [vmem:[%s2 + $0xc] sm:$0xf]
  %v1516 = vld [vmem:[%s2 + $0x10] sm:$0xf]
  %v1517 = vld [vmem:[%s2 + $0x14] sm:$0xf]
  %v1518 = vld [vmem:[%s2 + $0x18] sm:$0xf]
  %v1519 = vld [vmem:[%s2 + $0x1c] sm:$0xf]
  %v1520 = vld [vmem:[%s7] sm:$0x7]
  %v1529 = vunpack.c.l.b16 %v1512
  %v1530 = vunpack.c.l.b16 %v1513
  %v1531 = vunpack.c.l.b16 %v1514
  %v1532 = vunpack.c.l.b16 %v1515
  %v1533 = vunpack.c.l.b16 %v1516
  %v1534 = vunpack.c.l.b16 %v1517
  %v1535 = vunpack.c.l.b16 %v1518
  %v1536 = vunpack.c.l.b16 %v1519
  %v1537 = vpack.c.b16 %v1530, %v1529
  %v1538 = vpack.c.b16 %v1532, %v1531
  %v1539 = vpack.c.b16 %v1534, %v1533
  %v1540 = vpack.c.b16 %v1536, %v1535
  %vm1541 = vcmask 48128
  %v1543 = vsel %vm1541, %v1537, 0
  %v1546 = vsel %vm1541, %v1538, 0
  %v1549 = vsel %vm1541, %v1539, 0
  %v1552 = vsel %vm1541, %v1540, 0
  %vm1554 = vcmask 1042432
  %v1556 = vsel %vm1554, %v1520, 0
  %1558 = vmatprep.subr.bf16.mxu0 0
  %1559 = vmatpush1.bf16.msra.mxu0 0
  %1560 = vmatprep.subr.bf16.mxu0 0
  %1561 = vmatpush1.bf16.msra.mxu0 0
  %1562 = vmatprep.subr.bf16.mxu0 0
  %1563 = vmatpush1.bf16.msra.mxu0 0
  %1564 = vmatprep.subr.bf16.mxu0 0
  %1565 = vmatpush1.bf16.msra.mxu0 0
  %1566 = vmatprep.subr.bf16.mxu0 0
  %1567 = vmatpush1.bf16.msra.mxu0 0
  %1568 = vmatprep.subr.bf16.mxu0 0
  %1569 = vmatpush1.bf16.msra.mxu0 0
  %1570 = vmatprep.subr.bf16.mxu0 0
  %1571 = vmatpush1.bf16.msra.mxu0 0
  %1572 = vmatprep.subr.bf16.mxu0 0
  %1573 = vmatpush1.bf16.msra.mxu0 %v1556
  %1574 = vmatprep.subr.bf16.mxu0 0
  %1575 = vmatpush2.bf16.msra.mxu0 0
  %1576 = vmatprep.subr.bf16.mxu0 0
  %1577 = vmatpush2.bf16.msra.mxu0 0
  %1578 = vmatprep.subr.bf16.mxu0 0
  %1579 = vmatpush2.bf16.msra.mxu0 0
  %1580 = vmatprep.subr.bf16.mxu0 0
  %1581 = vmatpush2.bf16.msra.mxu0 0
  %1582 = vmatprep.subr.bf16.mxu0 0
  %1583 = vmatpush2.bf16.msra.mxu0 0
  %1584 = vmatprep.subr.bf16.mxu0 0
  %1585 = vmatpush2.bf16.msra.mxu0 0
  %1586 = vmatprep.subr.bf16.mxu0 0
  %1587 = vmatpush2.bf16.msra.mxu0 0
  %1588 = vmatprep.subr.bf16.mxu0 0
  %1589 = vmatpush2.bf16.msra.mxu0 0
  %1590 = vmatprep.mubr.bf16.mxu0 0
  %1591 = vmatmul.mubr.bf16.gmra.mxu0 %v1543
  %v1592 = vpop.f32.mrf.mxu0
  %v1593 = vadd.f32 0.0, %v1592
  %v1594 = vpop.f32.mrf.mxu0
  %v1595 = vpop.f32.mrf.mxu0
  %v1596 = vadd.f32 0.0, %v1595
  %v1597 = vpop.f32.mrf.mxu0
  %1598 = vmatprep.mubr.bf16.mxu0 0
  %1599 = vmatmul.mubr.bf16.gmra.mxu0 %v1546
  %v1600 = vpop.f32.mrf.mxu0
  %v1601 = vadd.f32 0.0, %v1600
  %v1602 = vpop.f32.mrf.mxu0
  %v1603 = vpop.f32.mrf.mxu0
  %v1604 = vadd.f32 0.0, %v1603
  %v1605 = vpop.f32.mrf.mxu0
  %1606 = vmatprep.mubr.bf16.mxu0 0
  %1607 = vmatmul.mubr.bf16.gmra.mxu0 %v1549
  %v1608 = vpop.f32.mrf.mxu0
  %v1609 = vadd.f32 0.0, %v1608
  %v1610 = vpop.f32.mrf.mxu0
  %v1611 = vpop.f32.mrf.mxu0
  %v1612 = vadd.f32 0.0, %v1611
  %v1613 = vpop.f32.mrf.mxu0
  %1614 = vmatprep.mubr.bf16.mxu0 0
  %1615 = vmatmul.mubr.bf16.gmra.mxu0 %v1552
  %v1616 = vpop.f32.mrf.mxu0
  %v1617 = vadd.f32 0.0, %v1616
  %v1618 = vpop.f32.mrf.mxu0
  %v1619 = vpop.f32.mrf.mxu0
  %v1620 = vadd.f32 0.0, %v1619
  %v1621 = vpop.f32.mrf.mxu0
  %1622 = vdwg.mxu0
  %v1623 = vadd.f32 %v1482, %v1593
  %v1624 = vadd.f32 %v1485, %v1596
  %v1625 = vadd.f32 %v1490, %v1601
  %v1626 = vadd.f32 %v1493, %v1604
  %v1627 = vadd.f32 %v1498, %v1609
  %v1628 = vadd.f32 %v1501, %v1612
  %v1629 = vadd.f32 %v1506, %v1617
  %v1630 = vadd.f32 %v1509, %v1620
  %v1631 = vld [vmem:[%s3] sm:$0xf]
  %v1632 = vld [vmem:[%s3 + $0x4] sm:$0xf]
  %v1633 = vld [vmem:[%s3 + $0x8] sm:$0xf]
  %v1634 = vld [vmem:[%s3 + $0xc] sm:$0xf]
  %v1635 = vld [vmem:[%s3 + $0x10] sm:$0xf]
  %v1636 = vld [vmem:[%s3 + $0x14] sm:$0xf]
  %v1637 = vld [vmem:[%s3 + $0x18] sm:$0xf]
  %v1638 = vld [vmem:[%s3 + $0x1c] sm:$0xf]
  %v1639 = vld [vmem:[%s8] sm:$0xf]
  %v1640 = vld [vmem:[%s8 + $0x4] sm:$0x3]
  %v1649 = vunpack.c.l.b16 %v1631
  %v1650 = vunpack.c.l.b16 %v1632
  %v1651 = vunpack.c.l.b16 %v1633
  %v1652 = vunpack.c.l.b16 %v1634
  %v1653 = vunpack.c.l.b16 %v1635
  %v1654 = vunpack.c.l.b16 %v1636
  %v1655 = vunpack.c.l.b16 %v1637
  %v1656 = vunpack.c.l.b16 %v1638
  %v1657 = vpack.c.b16 %v1650, %v1649
  %v1658 = vpack.c.b16 %v1652, %v1651
  %v1659 = vpack.c.b16 %v1654, %v1653
  %v1660 = vpack.c.b16 %v1656, %v1655
  %v1663 = vunpack.c.l.b16 %v1639
  %v1664 = vunpack.c.l.b16 %v1640
  %v1665 = vpack.c.b16 %v1664, %v1663
  %vm1666 = vcmask 89088
  %v1668 = vsel %vm1666, %v1657, 0
  %v1671 = vsel %vm1666, %v1658, 0
  %v1674 = vsel %vm1666, %v1659, 0
  %v1677 = vsel %vm1666, %v1660, 0
  %vm1679 = vcmask 1044480
  %vm1680 = vcmask 1045504
  %v1681 = vsel %vm1679, 4294967295, 65535
  %v1682 = vsel %vm1680, %v1681, 0
  %v1684 = vand.u32 %v1665, %v1682
  %1686 = vmatprep.subr.bf16.mxu0 0
  %1687 = vmatpush1.bf16.msra.mxu0 0
  %1688 = vmatprep.subr.bf16.mxu0 0
  %1689 = vmatpush1.bf16.msra.mxu0 0
  %1690 = vmatprep.subr.bf16.mxu0 0
  %1691 = vmatpush1.bf16.msra.mxu0 0
  %1692 = vmatprep.subr.bf16.mxu0 0
  %1693 = vmatpush1.bf16.msra.mxu0 0
  %1694 = vmatprep.subr.bf16.mxu0 0
  %1695 = vmatpush1.bf16.msra.mxu0 0
  %1696 = vmatprep.subr.bf16.mxu0 0
  %1697 = vmatpush1.bf16.msra.mxu0 0
  %1698 = vmatprep.subr.bf16.mxu0 0
  %1699 = vmatpush1.bf16.msra.mxu0 0
  %1700 = vmatprep.subr.bf16.mxu0 0
  %1701 = vmatpush1.bf16.msra.mxu0 %v1684
  %1702 = vmatprep.subr.bf16.mxu0 0
  %1703 = vmatpush2.bf16.msra.mxu0 0
  %1704 = vmatprep.subr.bf16.mxu0 0
  %1705 = vmatpush2.bf16.msra.mxu0 0
  %1706 = vmatprep.subr.bf16.mxu0 0
  %1707 = vmatpush2.bf16.msra.mxu0 0
  %1708 = vmatprep.subr.bf16.mxu0 0
  %1709 = vmatpush2.bf16.msra.mxu0 0
  %1710 = vmatprep.subr.bf16.mxu0 0
  %1711 = vmatpush2.bf16.msra.mxu0 0
  %1712 = vmatprep.subr.bf16.mxu0 0
  %1713 = vmatpush2.bf16.msra.mxu0 0
  %1714 = vmatprep.subr.bf16.mxu0 0
  %1715 = vmatpush2.bf16.msra.mxu0 0
  %1716 = vmatprep.subr.bf16.mxu0 0
  %1717 = vmatpush2.bf16.msra.mxu0 0
  %1718 = vmatprep.mubr.bf16.mxu0 0
  %1719 = vmatmul.mubr.bf16.gmra.mxu0 %v1668
  %v1720 = vpop.f32.mrf.mxu0
  %v1721 = vadd.f32 0.0, %v1720
  %v1722 = vpop.f32.mrf.mxu0
  %v1723 = vpop.f32.mrf.mxu0
  %v1724 = vadd.f32 0.0, %v1723
  %v1725 = vpop.f32.mrf.mxu0
  %1726 = vmatprep.mubr.bf16.mxu0 0
  %1727 = vmatmul.mubr.bf16.gmra.mxu0 %v1671
  %v1728 = vpop.f32.mrf.mxu0
  %v1729 = vadd.f32 0.0, %v1728
  %v1730 = vpop.f32.mrf.mxu0
  %v1731 = vpop.f32.mrf.mxu0
  %v1732 = vadd.f32 0.0, %v1731
  %v1733 = vpop.f32.mrf.mxu0
  %1734 = vmatprep.mubr.bf16.mxu0 0
  %1735 = vmatmul.mubr.bf16.gmra.mxu0 %v1674
  %v1736 = vpop.f32.mrf.mxu0
  %v1737 = vadd.f32 0.0, %v1736
  %v1738 = vpop.f32.mrf.mxu0
  %v1739 = vpop.f32.mrf.mxu0
  %v1740 = vadd.f32 0.0, %v1739
  %v1741 = vpop.f32.mrf.mxu0
  %1742 = vmatprep.mubr.bf16.mxu0 0
  %1743 = vmatmul.mubr.bf16.gmra.mxu0 %v1677
  %v1744 = vpop.f32.mrf.mxu0
  %v1745 = vadd.f32 0.0, %v1744
  %v1746 = vpop.f32.mrf.mxu0
  %v1747 = vpop.f32.mrf.mxu0
  %v1748 = vadd.f32 0.0, %v1747
  %v1749 = vpop.f32.mrf.mxu0
  %1750 = vdwg.mxu0
  %v1751 = vadd.f32 %v1623, %v1721
  %v1752 = vadd.f32 %v1624, %v1724
  %v1753 = vadd.f32 %v1625, %v1729
  %v1754 = vadd.f32 %v1626, %v1732
  %v1755 = vadd.f32 %v1627, %v1737
  %v1756 = vadd.f32 %v1628, %v1740
  %v1757 = vadd.f32 %v1629, %v1745
  %v1758 = vadd.f32 %v1630, %v1748
  %v1759 = vld [vmem:[%s9] sm:$0x1]
  %v1761 = vlaneseq
  %v1762 = vshrl.u32 %v1761, 7
  %v1763 = vsub.s32 0, %v1762
  %v1764 = vrot.slane %v1759, %v1763
  %v1766 = vadd.f32 %v1751, %v1764
  %v1767 = vadd.f32 %v1752, %v1764
  %v1768 = vadd.f32 %v1753, %v1764
  %v1769 = vadd.f32 %v1754, %v1764
  %v1770 = vadd.f32 %v1755, %v1764
  %v1771 = vadd.f32 %v1756, %v1764
  %v1772 = vadd.f32 %v1757, %v1764
  %v1773 = vadd.f32 %v1758, %v1764
  %v1774 = vmul.f32 %v1766, 0.01
  %v1775 = vmul.f32 %v1767, 0.01
  %v1776 = vmul.f32 %v1768, 0.01
  %v1777 = vmul.f32 %v1769, 0.01
  %v1778 = vmul.f32 %v1770, 0.01
  %v1779 = vmul.f32 %v1771, 0.01
  %v1780 = vmul.f32 %v1772, 0.01
  %v1781 = vmul.f32 %v1773, 0.01
  %v1782 = vmax.f32 %v1766, %v1774
  %v1783 = vmax.f32 %v1767, %v1775
  %v1784 = vmax.f32 %v1768, %v1776
  %v1785 = vmax.f32 %v1769, %v1777
  %v1786 = vmax.f32 %v1770, %v1778
  %v1787 = vmax.f32 %v1771, %v1779
  %v1788 = vmax.f32 %v1772, %v1780
  %v1789 = vmax.f32 %v1773, %v1781
  %v1790 = vpack.c.bf16 %v1783, %v1782
  %v1791 = vpack.c.bf16 %v1785, %v1784
  %v1792 = vpack.c.bf16 %v1787, %v1786
  %v1793 = vpack.c.bf16 %v1789, %v1788
  %v1794 = vld [vmem:[%s10] sm:$0xf]
  %v1795 = vld [vmem:[%s10 + $0x4] sm:$0xf]
  %v1796 = vld [vmem:[%s10 + $0x8] sm:$0xf]
  %v1797 = vld [vmem:[%s10 + $0xc] sm:$0xf]
  %v1798 = vld [vmem:[%s10 + $0x10] sm:$0xf]
  %v1799 = vld [vmem:[%s10 + $0x14] sm:$0xf]
  %v1800 = vld [vmem:[%s10 + $0x18] sm:$0xf]
  %v1801 = vld [vmem:[%s10 + $0x1c] sm:$0xf]
  %v1802 = vld [vmem:[%s10 + $0x20] sm:$0xf]
  %v1803 = vld [vmem:[%s10 + $0x24] sm:$0xf]
  %v1804 = vld [vmem:[%s10 + $0x28] sm:$0xf]
  %v1805 = vld [vmem:[%s10 + $0x2c] sm:$0xf]
  %v1806 = vld [vmem:[%s10 + $0x30] sm:$0xf]
  %v1807 = vld [vmem:[%s10 + $0x34] sm:$0xf]
  %v1808 = vld [vmem:[%s10 + $0x38] sm:$0xf]
  %v1809 = vld [vmem:[%s10 + $0x3c] sm:$0xf]
  %v1810 = vld [vmem:[%s11] sm:$0x1]
  %v1812 = vlaneseq
  %v1813 = vshrl.u32 %v1812, 7
  %v1814 = vsub.s32 0, %v1813
  %v1815 = vrot.slane %v1810, %v1814
  %v1833 = vunpack.c.l.b16 %v1794
  %v1834 = vunpack.c.l.b16 %v1795
  %v1835 = vunpack.c.l.b16 %v1796
  %v1836 = vunpack.c.l.b16 %v1797
  %v1837 = vunpack.c.l.b16 %v1798
  %v1838 = vunpack.c.l.b16 %v1799
  %v1839 = vunpack.c.l.b16 %v1800
  %v1840 = vunpack.c.l.b16 %v1801
  %v1841 = vunpack.c.l.b16 %v1802
  %v1842 = vunpack.c.l.b16 %v1803
  %v1843 = vunpack.c.l.b16 %v1804
  %v1844 = vunpack.c.l.b16 %v1805
  %v1845 = vunpack.c.l.b16 %v1806
  %v1846 = vunpack.c.l.b16 %v1807
  %v1847 = vunpack.c.l.b16 %v1808
  %v1848 = vunpack.c.l.b16 %v1809
  %v1849 = vpack.c.b16 %v1834, %v1833
  %v1850 = vpack.c.b16 %v1836, %v1835
  %v1851 = vpack.c.b16 %v1838, %v1837
  %v1852 = vpack.c.b16 %v1840, %v1839
  %v1853 = vpack.c.b16 %v1842, %v1841
  %v1854 = vpack.c.b16 %v1844, %v1843
  %v1855 = vpack.c.b16 %v1846, %v1845
  %v1856 = vpack.c.b16 %v1848, %v1847
  %1865 = vmatprep.subr.bf16.mxu0 0
  %1866 = vmatpush1.bf16.msra.mxu0 %v1856
  %1867 = vmatprep.subr.bf16.mxu0 0
  %1868 = vmatpush1.bf16.msra.mxu0 %v1855
  %1869 = vmatprep.subr.bf16.mxu0 0
  %1870 = vmatpush1.bf16.msra.mxu0 %v1854
  %1871 = vmatprep.subr.bf16.mxu0 0
  %1872 = vmatpush1.bf16.msra.mxu0 %v1853
  %1873 = vmatprep.subr.bf16.mxu0 0
  %1874 = vmatpush1.bf16.msra.mxu0 %v1852
  %1875 = vmatprep.subr.bf16.mxu0 0
  %1876 = vmatpush1.bf16.msra.mxu0 %v1851
  %1877 = vmatprep.subr.bf16.mxu0 0
  %1878 = vmatpush1.bf16.msra.mxu0 %v1850
  %1879 = vmatprep.subr.bf16.mxu0 0
  %1880 = vmatpush1.bf16.msra.mxu0 %v1849
  %1881 = vmatprep.subr.bf16.mxu0 0
  %1882 = vmatpush2.bf16.msra.mxu0 0
  %1883 = vmatprep.subr.bf16.mxu0 0
  %1884 = vmatpush2.bf16.msra.mxu0 0
  %1885 = vmatprep.subr.bf16.mxu0 0
  %1886 = vmatpush2.bf16.msra.mxu0 0
  %1887 = vmatprep.subr.bf16.mxu0 0
  %1888 = vmatpush2.bf16.msra.mxu0 0
  %1889 = vmatprep.subr.bf16.mxu0 0
  %1890 = vmatpush2.bf16.msra.mxu0 0
  %1891 = vmatprep.subr.bf16.mxu0 0
  %1892 = vmatpush2.bf16.msra.mxu0 0
  %1893 = vmatprep.subr.bf16.mxu0 0
  %1894 = vmatpush2.bf16.msra.mxu0 0
  %1895 = vmatprep.subr.bf16.mxu0 0
  %1896 = vmatpush2.bf16.msra.mxu0 0
  %1897 = vmatprep.mubr.bf16.mxu0 0
  %1898 = vmatmul.mubr.bf16.gmra.mxu0 %v1790
  %v1899 = vpop.f32.mrf.mxu0
  %v1900 = vadd.f32 %v1815, %v1899
  %v1901 = vpop.f32.mrf.mxu0
  %v1902 = vpop.f32.mrf.mxu0
  %v1903 = vadd.f32 %v1815, %v1902
  %v1904 = vpop.f32.mrf.mxu0
  %1905 = vmatprep.mubr.bf16.mxu0 0
  %1906 = vmatmul.mubr.bf16.gmra.mxu0 %v1791
  %v1907 = vpop.f32.mrf.mxu0
  %v1908 = vadd.f32 %v1815, %v1907
  %v1909 = vpop.f32.mrf.mxu0
  %v1910 = vpop.f32.mrf.mxu0
  %v1911 = vadd.f32 %v1815, %v1910
  %v1912 = vpop.f32.mrf.mxu0
  %1913 = vmatprep.mubr.bf16.mxu0 0
  %1914 = vmatmul.mubr.bf16.gmra.mxu0 %v1792
  %v1915 = vpop.f32.mrf.mxu0
  %v1916 = vadd.f32 %v1815, %v1915
  %v1917 = vpop.f32.mrf.mxu0
  %v1918 = vpop.f32.mrf.mxu0
  %v1919 = vadd.f32 %v1815, %v1918
  %v1920 = vpop.f32.mrf.mxu0
  %1921 = vmatprep.mubr.bf16.mxu0 0
  %1922 = vmatmul.mubr.bf16.gmra.mxu0 %v1793
  %v1923 = vpop.f32.mrf.mxu0
  %v1924 = vadd.f32 %v1815, %v1923
  %v1925 = vpop.f32.mrf.mxu0
  %v1926 = vpop.f32.mrf.mxu0
  %v1927 = vadd.f32 %v1815, %v1926
  %v1928 = vpop.f32.mrf.mxu0
  %1929 = vdwg.mxu0
  %v1930 = vmul.f32 %v1900, 0.01
  %v1931 = vmul.f32 %v1903, 0.01
  %v1932 = vmul.f32 %v1908, 0.01
  %v1933 = vmul.f32 %v1911, 0.01
  %v1934 = vmul.f32 %v1916, 0.01
  %v1935 = vmul.f32 %v1919, 0.01
  %v1936 = vmul.f32 %v1924, 0.01
  %v1937 = vmul.f32 %v1927, 0.01
  %v1938 = vmax.f32 %v1900, %v1930
  %v1939 = vmax.f32 %v1903, %v1931
  %v1940 = vmax.f32 %v1908, %v1932
  %v1941 = vmax.f32 %v1911, %v1933
  %v1942 = vmax.f32 %v1916, %v1934
  %v1943 = vmax.f32 %v1919, %v1935
  %v1944 = vmax.f32 %v1924, %v1936
  %v1945 = vmax.f32 %v1927, %v1937
  %v1946 = vld [vmem:[%s4] sm:$0xf]
  %v1947 = vld [vmem:[%s4 + $0x4] sm:$0xf]
  %v1948 = vld [vmem:[%s4 + $0x8] sm:$0xf]
  %v1949 = vld [vmem:[%s4 + $0xc] sm:$0xf]
  %v1950 = vld [vmem:[%s4 + $0x10] sm:$0xf]
  %v1951 = vld [vmem:[%s4 + $0x14] sm:$0xf]
  %v1952 = vld [vmem:[%s4 + $0x18] sm:$0xf]
  %v1953 = vld [vmem:[%s4 + $0x1c] sm:$0xf]
  %v1954 = vld [vmem:[%s4 + $0x20] sm:$0xf]
  %v1955 = vld [vmem:[%s4 + $0x24] sm:$0xf]
  %v1956 = vld [vmem:[%s4 + $0x28] sm:$0xf]
  %v1957 = vld [vmem:[%s4 + $0x2c] sm:$0xf]
  %v1958 = vld [vmem:[%s4 + $0x30] sm:$0xf]
  %v1959 = vld [vmem:[%s4 + $0x34] sm:$0xf]
  %v1960 = vld [vmem:[%s4 + $0x38] sm:$0xf]
  %v1961 = vld [vmem:[%s4 + $0x3c] sm:$0xf]
  %v1962 = vld [vmem:[%s12] sm:$0xf]
  %v1963 = vld [vmem:[%s12 + $0x4] sm:$0xf]
  %v1964 = vld [vmem:[%s12 + $0x8] sm:$0xf]
  %v1965 = vld [vmem:[%s12 + $0xc] sm:$0xf]
  %v1966 = vld [vmem:[%s12 + $0x10] sm:$0xf]
  %v1967 = vld [vmem:[%s12 + $0x14] sm:$0xf]
  %v1968 = vld [vmem:[%s12 + $0x18] sm:$0xf]
  %v1969 = vld [vmem:[%s12 + $0x1c] sm:$0xf]
  %v1970 = vld [vmem:[%s12 + $0x20] sm:$0xf]
  %v1971 = vld [vmem:[%s12 + $0x24] sm:$0xf]
  %v1972 = vld [vmem:[%s12 + $0x28] sm:$0xf]
  %v1973 = vld [vmem:[%s12 + $0x2c] sm:$0xf]
  %v1974 = vld [vmem:[%s12 + $0x30] sm:$0xf]
  %v1975 = vld [vmem:[%s12 + $0x34] sm:$0xf]
  %v1976 = vld [vmem:[%s12 + $0x38] sm:$0xf]
  %v1977 = vld [vmem:[%s12 + $0x3c] sm:$0xf]
  %v1978 = vld [vmem:[%s13] sm:$0xf]
  %v1979 = vld [vmem:[%s13 + $0x4] sm:$0xf]
  %v1980 = vld [vmem:[%s13 + $0x8] sm:$0xf]
  %v1981 = vld [vmem:[%s13 + $0xc] sm:$0xf]
  %v1982 = vld [vmem:[%s13 + $0x10] sm:$0xf]
  %v1983 = vld [vmem:[%s13 + $0x14] sm:$0xf]
  %v1984 = vld [vmem:[%s13 + $0x18] sm:$0xf]
  %v1985 = vld [vmem:[%s13 + $0x1c] sm:$0xf]
  %v1986 = vld [vmem:[%s13 + $0x20] sm:$0xf]
  %v1987 = vld [vmem:[%s13 + $0x24] sm:$0xf]
  %v1988 = vld [vmem:[%s13 + $0x28] sm:$0xf]
  %v1989 = vld [vmem:[%s13 + $0x2c] sm:$0xf]
  %v1990 = vld [vmem:[%s13 + $0x30] sm:$0xf]
  %v1991 = vld [vmem:[%s13 + $0x34] sm:$0xf]
  %v1992 = vld [vmem:[%s13 + $0x38] sm:$0xf]
  %v1993 = vld [vmem:[%s13 + $0x3c] sm:$0xf]
  %v1994 = vld [vmem:[%s14] sm:$0xf]
  %v1995 = vld [vmem:[%s14 + $0x4] sm:$0xf]
  %v1996 = vld [vmem:[%s14 + $0x8] sm:$0xf]
  %v1997 = vld [vmem:[%s14 + $0xc] sm:$0xf]
  %v1998 = vld [vmem:[%s14 + $0x10] sm:$0xf]
  %v1999 = vld [vmem:[%s14 + $0x14] sm:$0xf]
  %v2000 = vld [vmem:[%s14 + $0x18] sm:$0xf]
  %v2001 = vld [vmem:[%s14 + $0x1c] sm:$0xf]
  %v2002 = vld [vmem:[%s14 + $0x20] sm:$0xf]
  %v2003 = vld [vmem:[%s14 + $0x24] sm:$0xf]
  %v2004 = vld [vmem:[%s14 + $0x28] sm:$0xf]
  %v2005 = vld [vmem:[%s14 + $0x2c] sm:$0xf]
  %v2006 = vld [vmem:[%s14 + $0x30] sm:$0xf]
  %v2007 = vld [vmem:[%s14 + $0x34] sm:$0xf]
  %v2008 = vld [vmem:[%s14 + $0x38] sm:$0xf]
  %v2009 = vld [vmem:[%s14 + $0x3c] sm:$0xf]
  %v2010 = vld [vmem:[%s15] sm:$0x1]
  %v2011 = vpack.c.bf16 %v1939, %v1938
  %v2012 = vpack.c.bf16 %v1941, %v1940
  %v2013 = vpack.c.bf16 %v1943, %v1942
  %v2014 = vpack.c.bf16 %v1945, %v1944
  %v2031 = vunpack.c.l.b16 %v1946
  %v2032 = vunpack.c.l.b16 %v1947
  %v2033 = vunpack.c.l.b16 %v1948
  %v2034 = vunpack.c.l.b16 %v1949
  %v2035 = vunpack.c.l.b16 %v1950
  %v2036 = vunpack.c.l.b16 %v1951
  %v2037 = vunpack.c.l.b16 %v1952
  %v2038 = vunpack.c.l.b16 %v1953
  %v2039 = vunpack.c.l.b16 %v1954
  %v2040 = vunpack.c.l.b16 %v1955
  %v2041 = vunpack.c.l.b16 %v1956
  %v2042 = vunpack.c.l.b16 %v1957
  %v2043 = vunpack.c.l.b16 %v1958
  %v2044 = vunpack.c.l.b16 %v1959
  %v2045 = vunpack.c.l.b16 %v1960
  %v2046 = vunpack.c.l.b16 %v1961
  %v2047 = vpack.c.b16 %v2032, %v2031
  %v2048 = vpack.c.b16 %v2034, %v2033
  %v2049 = vpack.c.b16 %v2036, %v2035
  %v2050 = vpack.c.b16 %v2038, %v2037
  %v2051 = vpack.c.b16 %v2040, %v2039
  %v2052 = vpack.c.b16 %v2042, %v2041
  %v2053 = vpack.c.b16 %v2044, %v2043
  %v2054 = vpack.c.b16 %v2046, %v2045
  %vm2055 = vcmask 523264
  %v2057 = vsel %vm2055, %v2047, 0
  %v2060 = vsel %vm2055, %v2048, 0
  %v2063 = vsel %vm2055, %v2049, 0
  %v2066 = vsel %vm2055, %v2050, 0
  %v2069 = vsel %vm2055, %v2051, 0
  %v2072 = vsel %vm2055, %v2052, 0
  %v2075 = vsel %vm2055, %v2053, 0
  %v2078 = vsel %vm2055, %v2054, 0
  %2080 = vmatprep.subr.bf16.mxu0 0
  %2081 = vmatpush1.bf16.msra.mxu0 0
  %2082 = vmatprep.subr.bf16.mxu0 0
  %2083 = vmatpush1.bf16.msra.mxu0 0
  %2084 = vmatprep.subr.bf16.mxu0 0
  %2085 = vmatpush1.bf16.msra.mxu0 0
  %2086 = vmatprep.subr.bf16.mxu0 0
  %2087 = vmatpush1.bf16.msra.mxu0 0
  %2088 = vmatprep.subr.bf16.mxu0 0
  %2089 = vmatpush1.bf16.msra.mxu0 %v2014
  %2090 = vmatprep.subr.bf16.mxu0 0
  %2091 = vmatpush1.bf16.msra.mxu0 %v2013
  %2092 = vmatprep.subr.bf16.mxu0 0
  %2093 = vmatpush1.bf16.msra.mxu0 %v2012
  %2094 = vmatprep.subr.bf16.mxu0 0
  %2095 = vmatpush1.bf16.msra.mxu0 %v2011
  %2096 = vmatprep.subr.bf16.mxu0 0
  %2097 = vmatpush2.bf16.msra.mxu0 0
  %2098 = vmatprep.subr.bf16.mxu0 0
  %2099 = vmatpush2.bf16.msra.mxu0 0
  %2100 = vmatprep.subr.bf16.mxu0 0
  %2101 = vmatpush2.bf16.msra.mxu0 0
  %2102 = vmatprep.subr.bf16.mxu0 0
  %2103 = vmatpush2.bf16.msra.mxu0 0
  %2104 = vmatprep.subr.bf16.mxu0 0
  %2105 = vmatpush2.bf16.msra.mxu0 0
  %2106 = vmatprep.subr.bf16.mxu0 0
  %2107 = vmatpush2.bf16.msra.mxu0 0
  %2108 = vmatprep.subr.bf16.mxu0 0
  %2109 = vmatpush2.bf16.msra.mxu0 0
  %2110 = vmatprep.subr.bf16.mxu0 0
  %2111 = vmatpush2.bf16.msra.mxu0 0
  %2112 = vmatprep.mubr.bf16.mxu0 0
  %2113 = vmatmul.mubr.bf16.gmra.mxu0 %v2057
  %v2114 = vpop.f32.mrf.mxu0
  %v2115 = vadd.f32 0.0, %v2114
  %v2116 = vpop.f32.mrf.mxu0
  %v2117 = vpop.f32.mrf.mxu0
  %v2118 = vadd.f32 0.0, %v2117
  %v2119 = vpop.f32.mrf.mxu0
  %2120 = vmatprep.mubr.bf16.mxu0 0
  %2121 = vmatmul.mubr.bf16.gmra.mxu0 %v2060
  %v2122 = vpop.f32.mrf.mxu0
  %v2123 = vadd.f32 0.0, %v2122
  %v2124 = vpop.f32.mrf.mxu0
  %v2125 = vpop.f32.mrf.mxu0
  %v2126 = vadd.f32 0.0, %v2125
  %v2127 = vpop.f32.mrf.mxu0
  %2128 = vmatprep.mubr.bf16.mxu0 0
  %2129 = vmatmul.mubr.bf16.gmra.mxu0 %v2063
  %v2130 = vpop.f32.mrf.mxu0
  %v2131 = vadd.f32 0.0, %v2130
  %v2132 = vpop.f32.mrf.mxu0
  %v2133 = vpop.f32.mrf.mxu0
  %v2134 = vadd.f32 0.0, %v2133
  %v2135 = vpop.f32.mrf.mxu0
  %2136 = vmatprep.mubr.bf16.mxu0 0
  %2137 = vmatmul.mubr.bf16.gmra.mxu0 %v2066
  %v2138 = vpop.f32.mrf.mxu0
  %v2139 = vadd.f32 0.0, %v2138
  %v2140 = vpop.f32.mrf.mxu0
  %v2141 = vpop.f32.mrf.mxu0
  %v2142 = vadd.f32 0.0, %v2141
  %v2143 = vpop.f32.mrf.mxu0
  %2144 = vmatprep.mubr.bf16.mxu0 0
  %2145 = vmatmul.mubr.bf16.gmra.mxu0 %v2069
  %v2146 = vpop.f32.mrf.mxu0
  %v2147 = vadd.f32 0.0, %v2146
  %v2148 = vpop.f32.mrf.mxu0
  %v2149 = vpop.f32.mrf.mxu0
  %v2150 = vadd.f32 0.0, %v2149
  %v2151 = vpop.f32.mrf.mxu0
  %2152 = vmatprep.mubr.bf16.mxu0 0
  %2153 = vmatmul.mubr.bf16.gmra.mxu0 %v2072
  %v2154 = vpop.f32.mrf.mxu0
  %v2155 = vadd.f32 0.0, %v2154
  %v2156 = vpop.f32.mrf.mxu0
  %v2157 = vpop.f32.mrf.mxu0
  %v2158 = vadd.f32 0.0, %v2157
  %v2159 = vpop.f32.mrf.mxu0
  %2160 = vmatprep.mubr.bf16.mxu0 0
  %2161 = vmatmul.mubr.bf16.gmra.mxu0 %v2075
  %v2162 = vpop.f32.mrf.mxu0
  %v2163 = vadd.f32 0.0, %v2162
  %v2164 = vpop.f32.mrf.mxu0
  %v2165 = vpop.f32.mrf.mxu0
  %v2166 = vadd.f32 0.0, %v2165
  %v2167 = vpop.f32.mrf.mxu0
  %2168 = vmatprep.mubr.bf16.mxu0 0
  %2169 = vmatmul.mubr.bf16.gmra.mxu0 %v2078
  %v2170 = vpop.f32.mrf.mxu0
  %v2171 = vadd.f32 0.0, %v2170
  %v2172 = vpop.f32.mrf.mxu0
  %v2173 = vpop.f32.mrf.mxu0
  %v2174 = vadd.f32 0.0, %v2173
  %v2175 = vpop.f32.mrf.mxu0
  %2176 = vdwg.mxu0
  %v2177 = vpack.c.bf16 %v2118, %v2115
  %v2178 = vpack.c.bf16 %v2126, %v2123
  %v2179 = vpack.c.bf16 %v2134, %v2131
  %v2180 = vpack.c.bf16 %v2142, %v2139
  %v2181 = vpack.c.bf16 %v2150, %v2147
  %v2182 = vpack.c.bf16 %v2158, %v2155
  %v2183 = vpack.c.bf16 %v2166, %v2163
  %v2184 = vpack.c.bf16 %v2174, %v2171
  %v2201 = vunpack.c.l.b16 %v1978
  %v2202 = vunpack.c.l.b16 %v1979
  %v2203 = vunpack.c.l.b16 %v1980
  %v2204 = vunpack.c.l.b16 %v1981
  %v2205 = vunpack.c.l.b16 %v1982
  %v2206 = vunpack.c.l.b16 %v1983
  %v2207 = vunpack.c.l.b16 %v1984
  %v2208 = vunpack.c.l.b16 %v1985
  %v2209 = vunpack.c.l.b16 %v1986
  %v2210 = vunpack.c.l.b16 %v1987
  %v2211 = vunpack.c.l.b16 %v1988
  %v2212 = vunpack.c.l.b16 %v1989
  %v2213 = vunpack.c.l.b16 %v1990
  %v2214 = vunpack.c.l.b16 %v1991
  %v2215 = vunpack.c.l.b16 %v1992
  %v2216 = vunpack.c.l.b16 %v1993
  %v2217 = vpack.c.b16 %v2202, %v2201
  %v2218 = vpack.c.b16 %v2204, %v2203
  %v2219 = vpack.c.b16 %v2206, %v2205
  %v2220 = vpack.c.b16 %v2208, %v2207
  %v2221 = vpack.c.b16 %v2210, %v2209
  %v2222 = vpack.c.b16 %v2212, %v2211
  %v2223 = vpack.c.b16 %v2214, %v2213
  %v2224 = vpack.c.b16 %v2216, %v2215
  %2233 = vmatprep.subr.bf16.mxu0 0
  %2234 = vmatpush1.bf16.msra.mxu0 %v2224
  %2235 = vmatprep.subr.bf16.mxu0 0
  %2236 = vmatpush1.bf16.msra.mxu0 %v2223
  %2237 = vmatprep.subr.bf16.mxu0 0
  %2238 = vmatpush1.bf16.msra.mxu0 %v2222
  %2239 = vmatprep.subr.bf16.mxu0 0
  %2240 = vmatpush1.bf16.msra.mxu0 %v2221
  %2241 = vmatprep.subr.bf16.mxu0 0
  %2242 = vmatpush1.bf16.msra.mxu0 %v2220
  %2243 = vmatprep.subr.bf16.mxu0 0
  %2244 = vmatpush1.bf16.msra.mxu0 %v2219
  %2245 = vmatprep.subr.bf16.mxu0 0
  %2246 = vmatpush1.bf16.msra.mxu0 %v2218
  %2247 = vmatprep.subr.bf16.mxu0 0
  %2248 = vmatpush1.bf16.msra.mxu0 %v2217
  %2249 = vmatprep.subr.bf16.mxu0 0
  %2250 = vmatpush2.bf16.msra.mxu0 0
  %2251 = vmatprep.subr.bf16.mxu0 0
  %2252 = vmatpush2.bf16.msra.mxu0 0
  %2253 = vmatprep.subr.bf16.mxu0 0
  %2254 = vmatpush2.bf16.msra.mxu0 0
  %2255 = vmatprep.subr.bf16.mxu0 0
  %2256 = vmatpush2.bf16.msra.mxu0 0
  %2257 = vmatprep.subr.bf16.mxu0 0
  %2258 = vmatpush2.bf16.msra.mxu0 0
  %2259 = vmatprep.subr.bf16.mxu0 0
  %2260 = vmatpush2.bf16.msra.mxu0 0
  %2261 = vmatprep.subr.bf16.mxu0 0
  %2262 = vmatpush2.bf16.msra.mxu0 0
  %2263 = vmatprep.subr.bf16.mxu0 0
  %2264 = vmatpush2.bf16.msra.mxu0 0
  %2265 = vmatprep.mubr.bf16.mxu0 0
  %2266 = vmatmul.mubr.bf16.gmra.mxu0 %v2181
  %v2267 = vpop.f32.mrf.mxu0
  %v2268 = vadd.f32 0.0, %v2267
  %v2269 = vpop.f32.mrf.mxu0
  %v2270 = vpop.f32.mrf.mxu0
  %v2271 = vadd.f32 0.0, %v2270
  %v2272 = vpop.f32.mrf.mxu0
  %2273 = vmatprep.mubr.bf16.mxu0 0
  %2274 = vmatmul.mubr.bf16.gmra.mxu0 %v2182
  %v2275 = vpop.f32.mrf.mxu0
  %v2276 = vadd.f32 0.0, %v2275
  %v2277 = vpop.f32.mrf.mxu0
  %v2278 = vpop.f32.mrf.mxu0
  %v2279 = vadd.f32 0.0, %v2278
  %v2280 = vpop.f32.mrf.mxu0
  %2281 = vmatprep.mubr.bf16.mxu0 0
  %2282 = vmatmul.mubr.bf16.gmra.mxu0 %v2183
  %v2283 = vpop.f32.mrf.mxu0
  %v2284 = vadd.f32 0.0, %v2283
  %v2285 = vpop.f32.mrf.mxu0
  %v2286 = vpop.f32.mrf.mxu0
  %v2287 = vadd.f32 0.0, %v2286
  %v2288 = vpop.f32.mrf.mxu0
  %2289 = vmatprep.mubr.bf16.mxu0 0
  %2290 = vmatmul.mubr.bf16.gmra.mxu0 %v2184
  %v2291 = vpop.f32.mrf.mxu0
  %v2292 = vadd.f32 0.0, %v2291
  %v2293 = vpop.f32.mrf.mxu0
  %v2294 = vpop.f32.mrf.mxu0
  %v2295 = vadd.f32 0.0, %v2294
  %v2296 = vpop.f32.mrf.mxu0
  %2297 = vdwg.mxu0
  %v2314 = vunpack.c.l.b16 %v1962
  %v2315 = vunpack.c.l.b16 %v1963
  %v2316 = vunpack.c.l.b16 %v1964
  %v2317 = vunpack.c.l.b16 %v1965
  %v2318 = vunpack.c.l.b16 %v1966
  %v2319 = vunpack.c.l.b16 %v1967
  %v2320 = vunpack.c.l.b16 %v1968
  %v2321 = vunpack.c.l.b16 %v1969
  %v2322 = vunpack.c.l.b16 %v1970
  %v2323 = vunpack.c.l.b16 %v1971
  %v2324 = vunpack.c.l.b16 %v1972
  %v2325 = vunpack.c.l.b16 %v1973
  %v2326 = vunpack.c.l.b16 %v1974
  %v2327 = vunpack.c.l.b16 %v1975
  %v2328 = vunpack.c.l.b16 %v1976
  %v2329 = vunpack.c.l.b16 %v1977
  %v2330 = vpack.c.b16 %v2315, %v2314
  %v2331 = vpack.c.b16 %v2317, %v2316
  %v2332 = vpack.c.b16 %v2319, %v2318
  %v2333 = vpack.c.b16 %v2321, %v2320
  %v2334 = vpack.c.b16 %v2323, %v2322
  %v2335 = vpack.c.b16 %v2325, %v2324
  %v2336 = vpack.c.b16 %v2327, %v2326
  %v2337 = vpack.c.b16 %v2329, %v2328
  %2346 = vmatprep.subr.bf16.mxu0 0
  %2347 = vmatpush1.bf16.msra.mxu0 %v2337
  %2348 = vmatprep.subr.bf16.mxu0 0
  %2349 = vmatpush1.bf16.msra.mxu0 %v2336
  %2350 = vmatprep.subr.bf16.mxu0 0
  %2351 = vmatpush1.bf16.msra.mxu0 %v2335
  %2352 = vmatprep.subr.bf16.mxu0 0
  %2353 = vmatpush1.bf16.msra.mxu0 %v2334
  %2354 = vmatprep.subr.bf16.mxu0 0
  %2355 = vmatpush1.bf16.msra.mxu0 %v2333
  %2356 = vmatprep.subr.bf16.mxu0 0
  %2357 = vmatpush1.bf16.msra.mxu0 %v2332
  %2358 = vmatprep.subr.bf16.mxu0 0
  %2359 = vmatpush1.bf16.msra.mxu0 %v2331
  %2360 = vmatprep.subr.bf16.mxu0 0
  %2361 = vmatpush1.bf16.msra.mxu0 %v2330
  %2362 = vmatprep.subr.bf16.mxu0 0
  %2363 = vmatpush2.bf16.msra.mxu0 0
  %2364 = vmatprep.subr.bf16.mxu0 0
  %2365 = vmatpush2.bf16.msra.mxu0 0
  %2366 = vmatprep.subr.bf16.mxu0 0
  %2367 = vmatpush2.bf16.msra.mxu0 0
  %2368 = vmatprep.subr.bf16.mxu0 0
  %2369 = vmatpush2.bf16.msra.mxu0 0
  %2370 = vmatprep.subr.bf16.mxu0 0
  %2371 = vmatpush2.bf16.msra.mxu0 0
  %2372 = vmatprep.subr.bf16.mxu0 0
  %2373 = vmatpush2.bf16.msra.mxu0 0
  %2374 = vmatprep.subr.bf16.mxu0 0
  %2375 = vmatpush2.bf16.msra.mxu0 0
  %2376 = vmatprep.subr.bf16.mxu0 0
  %2377 = vmatpush2.bf16.msra.mxu0 0
  %2378 = vmatprep.mubr.bf16.mxu0 0
  %2379 = vmatmul.mubr.bf16.gmra.mxu0 %v2177
  %v2380 = vpop.f32.mrf.mxu0
  %v2381 = vadd.f32 %v2268, %v2380
  %v2382 = vpop.f32.mrf.mxu0
  %v2383 = vpop.f32.mrf.mxu0
  %v2384 = vadd.f32 %v2271, %v2383
  %v2385 = vpop.f32.mrf.mxu0
  %2386 = vmatprep.mubr.bf16.mxu0 0
  %2387 = vmatmul.mubr.bf16.gmra.mxu0 %v2178
  %v2388 = vpop.f32.mrf.mxu0
  %v2389 = vadd.f32 %v2276, %v2388
  %v2390 = vpop.f32.mrf.mxu0
  %v2391 = vpop.f32.mrf.mxu0
  %v2392 = vadd.f32 %v2279, %v2391
  %v2393 = vpop.f32.mrf.mxu0
  %2394 = vmatprep.mubr.bf16.mxu0 0
  %2395 = vmatmul.mubr.bf16.gmra.mxu0 %v2179
  %v2396 = vpop.f32.mrf.mxu0
  %v2397 = vadd.f32 %v2284, %v2396
  %v2398 = vpop.f32.mrf.mxu0
  %v2399 = vpop.f32.mrf.mxu0
  %v2400 = vadd.f32 %v2287, %v2399
  %v2401 = vpop.f32.mrf.mxu0
  %2402 = vmatprep.mubr.bf16.mxu0 0
  %2403 = vmatmul.mubr.bf16.gmra.mxu0 %v2180
  %v2404 = vpop.f32.mrf.mxu0
  %v2405 = vadd.f32 %v2292, %v2404
  %v2406 = vpop.f32.mrf.mxu0
  %v2407 = vpop.f32.mrf.mxu0
  %v2408 = vadd.f32 %v2295, %v2407
  %v2409 = vpop.f32.mrf.mxu0
  %2410 = vdwg.mxu0
  %v2427 = vunpack.c.l.b16 %v1994
  %v2428 = vunpack.c.l.b16 %v1995
  %v2429 = vunpack.c.l.b16 %v1996
  %v2430 = vunpack.c.l.b16 %v1997
  %v2431 = vunpack.c.l.b16 %v1998
  %v2432 = vunpack.c.l.b16 %v1999
  %v2433 = vunpack.c.l.b16 %v2000
  %v2434 = vunpack.c.l.b16 %v2001
  %v2435 = vunpack.c.l.b16 %v2002
  %v2436 = vunpack.c.l.b16 %v2003
  %v2437 = vunpack.c.l.b16 %v2004
  %v2438 = vunpack.c.l.b16 %v2005
  %v2439 = vunpack.c.l.b16 %v2006
  %v2440 = vunpack.c.l.b16 %v2007
  %v2441 = vunpack.c.l.b16 %v2008
  %v2442 = vunpack.c.l.b16 %v2009
  %v2443 = vpack.c.b16 %v2428, %v2427
  %v2444 = vpack.c.b16 %v2430, %v2429
  %v2445 = vpack.c.b16 %v2432, %v2431
  %v2446 = vpack.c.b16 %v2434, %v2433
  %v2447 = vpack.c.b16 %v2436, %v2435
  %v2448 = vpack.c.b16 %v2438, %v2437
  %v2449 = vpack.c.b16 %v2440, %v2439
  %v2450 = vpack.c.b16 %v2442, %v2441
  %2459 = vmatprep.subr.bf16.mxu0 0
  %2460 = vmatpush1.bf16.msra.mxu0 %v2450
  %2461 = vmatprep.subr.bf16.mxu0 0
  %2462 = vmatpush1.bf16.msra.mxu0 %v2449
  %2463 = vmatprep.subr.bf16.mxu0 0
  %2464 = vmatpush1.bf16.msra.mxu0 %v2448
  %2465 = vmatprep.subr.bf16.mxu0 0
  %2466 = vmatpush1.bf16.msra.mxu0 %v2447
  %2467 = vmatprep.subr.bf16.mxu0 0
  %2468 = vmatpush1.bf16.msra.mxu0 %v2446
  %2469 = vmatprep.subr.bf16.mxu0 0
  %2470 = vmatpush1.bf16.msra.mxu0 %v2445
  %2471 = vmatprep.subr.bf16.mxu0 0
  %2472 = vmatpush1.bf16.msra.mxu0 %v2444
  %2473 = vmatprep.subr.bf16.mxu0 0
  %2474 = vmatpush1.bf16.msra.mxu0 %v2443
  %2475 = vmatprep.subr.bf16.mxu0 0
  %2476 = vmatpush2.bf16.msra.mxu0 0
  %2477 = vmatprep.subr.bf16.mxu0 0
  %2478 = vmatpush2.bf16.msra.mxu0 0
  %2479 = vmatprep.subr.bf16.mxu0 0
  %2480 = vmatpush2.bf16.msra.mxu0 0
  %2481 = vmatprep.subr.bf16.mxu0 0
  %2482 = vmatpush2.bf16.msra.mxu0 0
  %2483 = vmatprep.subr.bf16.mxu0 0
  %2484 = vmatpush2.bf16.msra.mxu0 0
  %2485 = vmatprep.subr.bf16.mxu0 0
  %2486 = vmatpush2.bf16.msra.mxu0 0
  %2487 = vmatprep.subr.bf16.mxu0 0
  %2488 = vmatpush2.bf16.msra.mxu0 0
  %2489 = vmatprep.subr.bf16.mxu0 0
  %2490 = vmatpush2.bf16.msra.mxu0 0
  %2491 = vmatprep.mubr.bf16.mxu0 0
  %2492 = vmatmul.mubr.bf16.gmra.mxu0 %v2011
  %v2493 = vpop.f32.mrf.mxu0
  %v2494 = vadd.f32 0.0, %v2493
  %v2495 = vpop.f32.mrf.mxu0
  %v2496 = vpop.f32.mrf.mxu0
  %v2497 = vadd.f32 0.0, %v2496
  %v2498 = vpop.f32.mrf.mxu0
  %2499 = vmatprep.mubr.bf16.mxu0 0
  %2500 = vmatmul.mubr.bf16.gmra.mxu0 %v2012
  %v2501 = vpop.f32.mrf.mxu0
  %v2502 = vadd.f32 0.0, %v2501
  %v2503 = vpop.f32.mrf.mxu0
  %v2504 = vpop.f32.mrf.mxu0
  %v2505 = vadd.f32 0.0, %v2504
  %v2506 = vpop.f32.mrf.mxu0
  %2507 = vmatprep.mubr.bf16.mxu0 0
  %2508 = vmatmul.mubr.bf16.gmra.mxu0 %v2013
  %v2509 = vpop.f32.mrf.mxu0
  %v2510 = vadd.f32 0.0, %v2509
  %v2511 = vpop.f32.mrf.mxu0
  %v2512 = vpop.f32.mrf.mxu0
  %v2513 = vadd.f32 0.0, %v2512
  %v2514 = vpop.f32.mrf.mxu0
  %2515 = vmatprep.mubr.bf16.mxu0 0
  %2516 = vmatmul.mubr.bf16.gmra.mxu0 %v2014
  %v2517 = vpop.f32.mrf.mxu0
  %v2518 = vadd.f32 0.0, %v2517
  %v2519 = vpop.f32.mrf.mxu0
  %v2520 = vpop.f32.mrf.mxu0
  %v2521 = vadd.f32 0.0, %v2520
  %v2522 = vpop.f32.mrf.mxu0
  %2523 = vdwg.mxu0
  %v2524 = vadd.f32 %v2381, %v2494
  %v2525 = vadd.f32 %v2384, %v2497
  %v2526 = vadd.f32 %v2389, %v2502
  %v2527 = vadd.f32 %v2392, %v2505
  %v2528 = vadd.f32 %v2397, %v2510
  %v2529 = vadd.f32 %v2400, %v2513
  %v2530 = vadd.f32 %v2405, %v2518
  %v2531 = vadd.f32 %v2408, %v2521
  %v2533 = vlaneseq
  %v2534 = vshrl.u32 %v2533, 7
  %v2535 = vsub.s32 0, %v2534
  %v2536 = vrot.slane %v2010, %v2535
  %v2538 = vadd.f32 %v2524, %v2536
  %v2539 = vadd.f32 %v2525, %v2536
  %v2540 = vadd.f32 %v2526, %v2536
  %v2541 = vadd.f32 %v2527, %v2536
  %v2542 = vadd.f32 %v2528, %v2536
  %v2543 = vadd.f32 %v2529, %v2536
  %v2544 = vadd.f32 %v2530, %v2536
  %v2545 = vadd.f32 %v2531, %v2536
  %v2546 = vpack.c.bf16 %v2539, %v2538
  %v2547 = vpack.c.bf16 %v2541, %v2540
  %v2548 = vpack.c.bf16 %v2543, %v2542
  %v2549 = vpack.c.bf16 %v2545, %v2544
  %2550 = vmatprep.subr.bf16.mxu0 0
  %2551 = vmatpush1.bf16.msra.mxu0 0
  %2552 = vmatprep.subr.bf16.mxu0 0
  %2553 = vmatpush1.bf16.msra.mxu0 0
  %2554 = vmatprep.subr.bf16.mxu0 0
  %2555 = vmatpush1.bf16.msra.mxu0 0
  %2556 = vmatprep.subr.bf16.mxu0 0
  %2557 = vmatpush1.bf16.msra.mxu0 0
  %2558 = vmatprep.subr.bf16.mxu0 0
  %2559 = vmatpush1.bf16.msra.mxu0 %v2549
  %2560 = vmatprep.subr.bf16.mxu0 0
  %2561 = vmatpush1.bf16.msra.mxu0 %v2548
  %2562 = vmatprep.subr.bf16.mxu0 0
  %2563 = vmatpush1.bf16.msra.mxu0 %v2547
  %2564 = vmatprep.subr.bf16.mxu0 0
  %2565 = vmatpush1.bf16.msra.mxu0 %v2546
  %2566 = vmatprep.subr.bf16.mxu0 0
  %2567 = vmatpush2.bf16.msra.mxu0 0
  %2568 = vmatprep.subr.bf16.mxu0 0
  %2569 = vmatpush2.bf16.msra.mxu0 0
  %2570 = vmatprep.subr.bf16.mxu0 0
  %2571 = vmatpush2.bf16.msra.mxu0 0
  %2572 = vmatprep.subr.bf16.mxu0 0
  %2573 = vmatpush2.bf16.msra.mxu0 0
  %2574 = vmatprep.subr.bf16.mxu0 0
  %2575 = vmatpush2.bf16.msra.mxu0 0
  %2576 = vmatprep.subr.bf16.mxu0 0
  %2577 = vmatpush2.bf16.msra.mxu0 0
  %2578 = vmatprep.subr.bf16.mxu0 0
  %2579 = vmatpush2.bf16.msra.mxu0 0
  %2580 = vmatprep.subr.bf16.mxu0 0
  %2581 = vmatpush2.bf16.msra.mxu0 0
  %2582 = vmatprep.mubr.bf16.mxu0 0
  %2583 = vmatmul.mubr.bf16.gmra.mxu0 %v2057
  %v2584 = vpop.f32.mrf.mxu0
  %v2585 = vadd.f32 0.0, %v2584
  %v2586 = vpop.f32.mrf.mxu0
  %v2587 = vpop.f32.mrf.mxu0
  %v2588 = vadd.f32 0.0, %v2587
  %v2589 = vpop.f32.mrf.mxu0
  %2590 = vmatprep.mubr.bf16.mxu0 0
  %2591 = vmatmul.mubr.bf16.gmra.mxu0 %v2060
  %v2592 = vpop.f32.mrf.mxu0
  %v2593 = vadd.f32 0.0, %v2592
  %v2594 = vpop.f32.mrf.mxu0
  %v2595 = vpop.f32.mrf.mxu0
  %v2596 = vadd.f32 0.0, %v2595
  %v2597 = vpop.f32.mrf.mxu0
  %2598 = vmatprep.mubr.bf16.mxu0 0
  %2599 = vmatmul.mubr.bf16.gmra.mxu0 %v2063
  %v2600 = vpop.f32.mrf.mxu0
  %v2601 = vadd.f32 0.0, %v2600
  %v2602 = vpop.f32.mrf.mxu0
  %v2603 = vpop.f32.mrf.mxu0
  %v2604 = vadd.f32 0.0, %v2603
  %v2605 = vpop.f32.mrf.mxu0
  %2606 = vmatprep.mubr.bf16.mxu0 0
  %2607 = vmatmul.mubr.bf16.gmra.mxu0 %v2066
  %v2608 = vpop.f32.mrf.mxu0
  %v2609 = vadd.f32 0.0, %v2608
  %v2610 = vpop.f32.mrf.mxu0
  %v2611 = vpop.f32.mrf.mxu0
  %v2612 = vadd.f32 0.0, %v2611
  %v2613 = vpop.f32.mrf.mxu0
  %2614 = vmatprep.mubr.bf16.mxu0 0
  %2615 = vmatmul.mubr.bf16.gmra.mxu0 %v2069
  %v2616 = vpop.f32.mrf.mxu0
  %v2617 = vadd.f32 0.0, %v2616
  %v2618 = vpop.f32.mrf.mxu0
  %v2619 = vpop.f32.mrf.mxu0
  %v2620 = vadd.f32 0.0, %v2619
  %v2621 = vpop.f32.mrf.mxu0
  %2622 = vmatprep.mubr.bf16.mxu0 0
  %2623 = vmatmul.mubr.bf16.gmra.mxu0 %v2072
  %v2624 = vpop.f32.mrf.mxu0
  %v2625 = vadd.f32 0.0, %v2624
  %v2626 = vpop.f32.mrf.mxu0
  %v2627 = vpop.f32.mrf.mxu0
  %v2628 = vadd.f32 0.0, %v2627
  %v2629 = vpop.f32.mrf.mxu0
  %2630 = vmatprep.mubr.bf16.mxu0 0
  %2631 = vmatmul.mubr.bf16.gmra.mxu0 %v2075
  %v2632 = vpop.f32.mrf.mxu0
  %v2633 = vadd.f32 0.0, %v2632
  %v2634 = vpop.f32.mrf.mxu0
  %v2635 = vpop.f32.mrf.mxu0
  %v2636 = vadd.f32 0.0, %v2635
  %v2637 = vpop.f32.mrf.mxu0
  %2638 = vmatprep.mubr.bf16.mxu0 0
  %2639 = vmatmul.mubr.bf16.gmra.mxu0 %v2078
  %v2640 = vpop.f32.mrf.mxu0
  %v2641 = vadd.f32 0.0, %v2640
  %v2642 = vpop.f32.mrf.mxu0
  %v2643 = vpop.f32.mrf.mxu0
  %v2644 = vadd.f32 0.0, %v2643
  %v2645 = vpop.f32.mrf.mxu0
  %2646 = vdwg.mxu0
  %v2647 = vpack.c.bf16 %v2588, %v2585
  %v2648 = vpack.c.bf16 %v2596, %v2593
  %v2649 = vpack.c.bf16 %v2604, %v2601
  %v2650 = vpack.c.bf16 %v2612, %v2609
  %v2651 = vpack.c.bf16 %v2620, %v2617
  %v2652 = vpack.c.bf16 %v2628, %v2625
  %v2653 = vpack.c.bf16 %v2636, %v2633
  %v2654 = vpack.c.bf16 %v2644, %v2641
  %2655 = vmatprep.subr.bf16.mxu0 0
  %2656 = vmatpush1.bf16.msra.mxu0 %v2224
  %2657 = vmatprep.subr.bf16.mxu0 0
  %2658 = vmatpush1.bf16.msra.mxu0 %v2223
  %2659 = vmatprep.subr.bf16.mxu0 0
  %2660 = vmatpush1.bf16.msra.mxu0 %v2222
  %2661 = vmatprep.subr.bf16.mxu0 0
  %2662 = vmatpush1.bf16.msra.mxu0 %v2221
  %2663 = vmatprep.subr.bf16.mxu0 0
  %2664 = vmatpush1.bf16.msra.mxu0 %v2220
  %2665 = vmatprep.subr.bf16.mxu0 0
  %2666 = vmatpush1.bf16.msra.mxu0 %v2219
  %2667 = vmatprep.subr.bf16.mxu0 0
  %2668 = vmatpush1.bf16.msra.mxu0 %v2218
  %2669 = vmatprep.subr.bf16.mxu0 0
  %2670 = vmatpush1.bf16.msra.mxu0 %v2217
  %2671 = vmatprep.subr.bf16.mxu0 0
  %2672 = vmatpush2.bf16.msra.mxu0 0
  %2673 = vmatprep.subr.bf16.mxu0 0
  %2674 = vmatpush2.bf16.msra.mxu0 0
  %2675 = vmatprep.subr.bf16.mxu0 0
  %2676 = vmatpush2.bf16.msra.mxu0 0
  %2677 = vmatprep.subr.bf16.mxu0 0
  %2678 = vmatpush2.bf16.msra.mxu0 0
  %2679 = vmatprep.subr.bf16.mxu0 0
  %2680 = vmatpush2.bf16.msra.mxu0 0
  %2681 = vmatprep.subr.bf16.mxu0 0
  %2682 = vmatpush2.bf16.msra.mxu0 0
  %2683 = vmatprep.subr.bf16.mxu0 0
  %2684 = vmatpush2.bf16.msra.mxu0 0
  %2685 = vmatprep.subr.bf16.mxu0 0
  %2686 = vmatpush2.bf16.msra.mxu0 0
  %2687 = vmatprep.mubr.bf16.mxu0 0
  %2688 = vmatmul.mubr.bf16.gmra.mxu0 %v2651
  %v2689 = vpop.f32.mrf.mxu0
  %v2690 = vadd.f32 0.0, %v2689
  %v2691 = vpop.f32.mrf.mxu0
  %v2692 = vpop.f32.mrf.mxu0
  %v2693 = vadd.f32 0.0, %v2692
  %v2694 = vpop.f32.mrf.mxu0
  %2695 = vmatprep.mubr.bf16.mxu0 0
  %2696 = vmatmul.mubr.bf16.gmra.mxu0 %v2652
  %v2697 = vpop.f32.mrf.mxu0
  %v2698 = vadd.f32 0.0, %v2697
  %v2699 = vpop.f32.mrf.mxu0
  %v2700 = vpop.f32.mrf.mxu0
  %v2701 = vadd.f32 0.0, %v2700
  %v2702 = vpop.f32.mrf.mxu0
  %2703 = vmatprep.mubr.bf16.mxu0 0
  %2704 = vmatmul.mubr.bf16.gmra.mxu0 %v2653
  %v2705 = vpop.f32.mrf.mxu0
  %v2706 = vadd.f32 0.0, %v2705
  %v2707 = vpop.f32.mrf.mxu0
  %v2708 = vpop.f32.mrf.mxu0
  %v2709 = vadd.f32 0.0, %v2708
  %v2710 = vpop.f32.mrf.mxu0
  %2711 = vmatprep.mubr.bf16.mxu0 0
  %2712 = vmatmul.mubr.bf16.gmra.mxu0 %v2654
  %v2713 = vpop.f32.mrf.mxu0
  %v2714 = vadd.f32 0.0, %v2713
  %v2715 = vpop.f32.mrf.mxu0
  %v2716 = vpop.f32.mrf.mxu0
  %v2717 = vadd.f32 0.0, %v2716
  %v2718 = vpop.f32.mrf.mxu0
  %2719 = vdwg.mxu0
  %2720 = vmatprep.subr.bf16.mxu0 0
  %2721 = vmatpush1.bf16.msra.mxu0 %v2337
  %2722 = vmatprep.subr.bf16.mxu0 0
  %2723 = vmatpush1.bf16.msra.mxu0 %v2336
  %2724 = vmatprep.subr.bf16.mxu0 0
  %2725 = vmatpush1.bf16.msra.mxu0 %v2335
  %2726 = vmatprep.subr.bf16.mxu0 0
  %2727 = vmatpush1.bf16.msra.mxu0 %v2334
  %2728 = vmatprep.subr.bf16.mxu0 0
  %2729 = vmatpush1.bf16.msra.mxu0 %v2333
  %2730 = vmatprep.subr.bf16.mxu0 0
  %2731 = vmatpush1.bf16.msra.mxu0 %v2332
  %2732 = vmatprep.subr.bf16.mxu0 0
  %2733 = vmatpush1.bf16.msra.mxu0 %v2331
  %2734 = vmatprep.subr.bf16.mxu0 0
  %2735 = vmatpush1.bf16.msra.mxu0 %v2330
  %2736 = vmatprep.subr.bf16.mxu0 0
  %2737 = vmatpush2.bf16.msra.mxu0 0
  %2738 = vmatprep.subr.bf16.mxu0 0
  %2739 = vmatpush2.bf16.msra.mxu0 0
  %2740 = vmatprep.subr.bf16.mxu0 0
  %2741 = vmatpush2.bf16.msra.mxu0 0
  %2742 = vmatprep.subr.bf16.mxu0 0
  %2743 = vmatpush2.bf16.msra.mxu0 0
  %2744 = vmatprep.subr.bf16.mxu0 0
  %2745 = vmatpush2.bf16.msra.mxu0 0
  %2746 = vmatprep.subr.bf16.mxu0 0
  %2747 = vmatpush2.bf16.msra.mxu0 0
  %2748 = vmatprep.subr.bf16.mxu0 0
  %2749 = vmatpush2.bf16.msra.mxu0 0
  %2750 = vmatprep.subr.bf16.mxu0 0
  %2751 = vmatpush2.bf16.msra.mxu0 0
  %2752 = vmatprep.mubr.bf16.mxu0 0
  %2753 = vmatmul.mubr.bf16.gmra.mxu0 %v2647
  %v2754 = vpop.f32.mrf.mxu0
  %v2755 = vadd.f32 %v2690, %v2754
  %v2756 = vpop.f32.mrf.mxu0
  %v2757 = vpop.f32.mrf.mxu0
  %v2758 = vadd.f32 %v2693, %v2757
  %v2759 = vpop.f32.mrf.mxu0
  %2760 = vmatprep.mubr.bf16.mxu0 0
  %2761 = vmatmul.mubr.bf16.gmra.mxu0 %v2648
  %v2762 = vpop.f32.mrf.mxu0
  %v2763 = vadd.f32 %v2698, %v2762
  %v2764 = vpop.f32.mrf.mxu0
  %v2765 = vpop.f32.mrf.mxu0
  %v2766 = vadd.f32 %v2701, %v2765
  %v2767 = vpop.f32.mrf.mxu0
  %2768 = vmatprep.mubr.bf16.mxu0 0
  %2769 = vmatmul.mubr.bf16.gmra.mxu0 %v2649
  %v2770 = vpop.f32.mrf.mxu0
  %v2771 = vadd.f32 %v2706, %v2770
  %v2772 = vpop.f32.mrf.mxu0
  %v2773 = vpop.f32.mrf.mxu0
  %v2774 = vadd.f32 %v2709, %v2773
  %v2775 = vpop.f32.mrf.mxu0
  %2776 = vmatprep.mubr.bf16.mxu0 0
  %2777 = vmatmul.mubr.bf16.gmra.mxu0 %v2650
  %v2778 = vpop.f32.mrf.mxu0
  %v2779 = vadd.f32 %v2714, %v2778
  %v2780 = vpop.f32.mrf.mxu0
  %v2781 = vpop.f32.mrf.mxu0
  %v2782 = vadd.f32 %v2717, %v2781
  %v2783 = vpop.f32.mrf.mxu0
  %2784 = vdwg.mxu0
  %2785 = vmatprep.subr.bf16.mxu0 0
  %2786 = vmatpush1.bf16.msra.mxu0 %v2450
  %2787 = vmatprep.subr.bf16.mxu0 0
  %2788 = vmatpush1.bf16.msra.mxu0 %v2449
  %2789 = vmatprep.subr.bf16.mxu0 0
  %2790 = vmatpush1.bf16.msra.mxu0 %v2448
  %2791 = vmatprep.subr.bf16.mxu0 0
  %2792 = vmatpush1.bf16.msra.mxu0 %v2447
  %2793 = vmatprep.subr.bf16.mxu0 0
  %2794 = vmatpush1.bf16.msra.mxu0 %v2446
  %2795 = vmatprep.subr.bf16.mxu0 0
  %2796 = vmatpush1.bf16.msra.mxu0 %v2445
  %2797 = vmatprep.subr.bf16.mxu0 0
  %2798 = vmatpush1.bf16.msra.mxu0 %v2444
  %2799 = vmatprep.subr.bf16.mxu0 0
  %2800 = vmatpush1.bf16.msra.mxu0 %v2443
  %2801 = vmatprep.subr.bf16.mxu0 0
  %2802 = vmatpush2.bf16.msra.mxu0 0
  %2803 = vmatprep.subr.bf16.mxu0 0
  %2804 = vmatpush2.bf16.msra.mxu0 0
  %2805 = vmatprep.subr.bf16.mxu0 0
  %2806 = vmatpush2.bf16.msra.mxu0 0
  %2807 = vmatprep.subr.bf16.mxu0 0
  %2808 = vmatpush2.bf16.msra.mxu0 0
  %2809 = vmatprep.subr.bf16.mxu0 0
  %2810 = vmatpush2.bf16.msra.mxu0 0
  %2811 = vmatprep.subr.bf16.mxu0 0
  %2812 = vmatpush2.bf16.msra.mxu0 0
  %2813 = vmatprep.subr.bf16.mxu0 0
  %2814 = vmatpush2.bf16.msra.mxu0 0
  %2815 = vmatprep.subr.bf16.mxu0 0
  %2816 = vmatpush2.bf16.msra.mxu0 0
  %2817 = vmatprep.mubr.bf16.mxu0 0
  %2818 = vmatmul.mubr.bf16.gmra.mxu0 %v2546
  %v2819 = vpop.f32.mrf.mxu0
  %v2820 = vadd.f32 0.0, %v2819
  %v2821 = vpop.f32.mrf.mxu0
  %v2822 = vpop.f32.mrf.mxu0
  %v2823 = vadd.f32 0.0, %v2822
  %v2824 = vpop.f32.mrf.mxu0
  %2825 = vmatprep.mubr.bf16.mxu0 0
  %2826 = vmatmul.mubr.bf16.gmra.mxu0 %v2547
  %v2827 = vpop.f32.mrf.mxu0
  %v2828 = vadd.f32 0.0, %v2827
  %v2829 = vpop.f32.mrf.mxu0
  %v2830 = vpop.f32.mrf.mxu0
  %v2831 = vadd.f32 0.0, %v2830
  %v2832 = vpop.f32.mrf.mxu0
  %2833 = vmatprep.mubr.bf16.mxu0 0
  %2834 = vmatmul.mubr.bf16.gmra.mxu0 %v2548
  %v2835 = vpop.f32.mrf.mxu0
  %v2836 = vadd.f32 0.0, %v2835
  %v2837 = vpop.f32.mrf.mxu0
  %v2838 = vpop.f32.mrf.mxu0
  %v2839 = vadd.f32 0.0, %v2838
  %v2840 = vpop.f32.mrf.mxu0
  %2841 = vmatprep.mubr.bf16.mxu0 0
  %2842 = vmatmul.mubr.bf16.gmra.mxu0 %v2549
  %v2843 = vpop.f32.mrf.mxu0
  %v2844 = vadd.f32 0.0, %v2843
  %v2845 = vpop.f32.mrf.mxu0
  %v2846 = vpop.f32.mrf.mxu0
  %v2847 = vadd.f32 0.0, %v2846
  %v2848 = vpop.f32.mrf.mxu0
  %2849 = vdwg.mxu0
  %v2850 = vadd.f32 %v2755, %v2820
  %v2851 = vadd.f32 %v2758, %v2823
  %v2852 = vadd.f32 %v2763, %v2828
  %v2853 = vadd.f32 %v2766, %v2831
  %v2854 = vadd.f32 %v2771, %v2836
  %v2855 = vadd.f32 %v2774, %v2839
  %v2856 = vadd.f32 %v2779, %v2844
  %v2857 = vadd.f32 %v2782, %v2847
  %v2858 = vadd.f32 %v2850, %v2536
  %v2859 = vadd.f32 %v2851, %v2536
  %v2860 = vadd.f32 %v2852, %v2536
  %v2861 = vadd.f32 %v2853, %v2536
  %v2862 = vadd.f32 %v2854, %v2536
  %v2863 = vadd.f32 %v2855, %v2536
  %v2864 = vadd.f32 %v2856, %v2536
  %v2865 = vadd.f32 %v2857, %v2536
  %v2866 = vpack.c.bf16 %v2859, %v2858
  %v2867 = vpack.c.bf16 %v2861, %v2860
  %v2868 = vpack.c.bf16 %v2863, %v2862
  %v2869 = vpack.c.bf16 %v2865, %v2864
  %2870 = vmatprep.subr.bf16.mxu0 0
  %2871 = vmatpush1.bf16.msra.mxu0 0
  %2872 = vmatprep.subr.bf16.mxu0 0
  %2873 = vmatpush1.bf16.msra.mxu0 0
  %2874 = vmatprep.subr.bf16.mxu0 0
  %2875 = vmatpush1.bf16.msra.mxu0 0
  %2876 = vmatprep.subr.bf16.mxu0 0
  %2877 = vmatpush1.bf16.msra.mxu0 0
  %2878 = vmatprep.subr.bf16.mxu0 0
  %2879 = vmatpush1.bf16.msra.mxu0 %v2869
  %2880 = vmatprep.subr.bf16.mxu0 0
  %2881 = vmatpush1.bf16.msra.mxu0 %v2868
  %2882 = vmatprep.subr.bf16.mxu0 0
  %2883 = vmatpush1.bf16.msra.mxu0 %v2867
  %2884 = vmatprep.subr.bf16.mxu0 0
  %2885 = vmatpush1.bf16.msra.mxu0 %v2866
  %2886 = vmatprep.subr.bf16.mxu0 0
  %2887 = vmatpush2.bf16.msra.mxu0 0
  %2888 = vmatprep.subr.bf16.mxu0 0
  %2889 = vmatpush2.bf16.msra.mxu0 0
  %2890 = vmatprep.subr.bf16.mxu0 0
  %2891 = vmatpush2.bf16.msra.mxu0 0
  %2892 = vmatprep.subr.bf16.mxu0 0
  %2893 = vmatpush2.bf16.msra.mxu0 0
  %2894 = vmatprep.subr.bf16.mxu0 0
  %2895 = vmatpush2.bf16.msra.mxu0 0
  %2896 = vmatprep.subr.bf16.mxu0 0
  %2897 = vmatpush2.bf16.msra.mxu0 0
  %2898 = vmatprep.subr.bf16.mxu0 0
  %2899 = vmatpush2.bf16.msra.mxu0 0
  %2900 = vmatprep.subr.bf16.mxu0 0
  %2901 = vmatpush2.bf16.msra.mxu0 0
  %2902 = vmatprep.mubr.bf16.mxu0 0
  %2903 = vmatmul.mubr.bf16.gmra.mxu0 %v2057
  %v2904 = vpop.f32.mrf.mxu0
  %v2905 = vadd.f32 0.0, %v2904
  %v2906 = vpop.f32.mrf.mxu0
  %v2907 = vpop.f32.mrf.mxu0
  %v2908 = vadd.f32 0.0, %v2907
  %v2909 = vpop.f32.mrf.mxu0
  %2910 = vmatprep.mubr.bf16.mxu0 0
  %2911 = vmatmul.mubr.bf16.gmra.mxu0 %v2060
  %v2912 = vpop.f32.mrf.mxu0
  %v2913 = vadd.f32 0.0, %v2912
  %v2914 = vpop.f32.mrf.mxu0
  %v2915 = vpop.f32.mrf.mxu0
  %v2916 = vadd.f32 0.0, %v2915
  %v2917 = vpop.f32.mrf.mxu0
  %2918 = vmatprep.mubr.bf16.mxu0 0
  %2919 = vmatmul.mubr.bf16.gmra.mxu0 %v2063
  %v2920 = vpop.f32.mrf.mxu0
  %v2921 = vadd.f32 0.0, %v2920
  %v2922 = vpop.f32.mrf.mxu0
  %v2923 = vpop.f32.mrf.mxu0
  %v2924 = vadd.f32 0.0, %v2923
  %v2925 = vpop.f32.mrf.mxu0
  %2926 = vmatprep.mubr.bf16.mxu0 0
  %2927 = vmatmul.mubr.bf16.gmra.mxu0 %v2066
  %v2928 = vpop.f32.mrf.mxu0
  %v2929 = vadd.f32 0.0, %v2928
  %v2930 = vpop.f32.mrf.mxu0
  %v2931 = vpop.f32.mrf.mxu0
  %v2932 = vadd.f32 0.0, %v2931
  %v2933 = vpop.f32.mrf.mxu0
  %2934 = vmatprep.mubr.bf16.mxu0 0
  %2935 = vmatmul.mubr.bf16.gmra.mxu0 %v2069
  %v2936 = vpop.f32.mrf.mxu0
  %v2937 = vadd.f32 0.0, %v2936
  %v2938 = vpop.f32.mrf.mxu0
  %v2939 = vpop.f32.mrf.mxu0
  %v2940 = vadd.f32 0.0, %v2939
  %v2941 = vpop.f32.mrf.mxu0
  %2942 = vmatprep.mubr.bf16.mxu0 0
  %2943 = vmatmul.mubr.bf16.gmra.mxu0 %v2072
  %v2944 = vpop.f32.mrf.mxu0
  %v2945 = vadd.f32 0.0, %v2944
  %v2946 = vpop.f32.mrf.mxu0
  %v2947 = vpop.f32.mrf.mxu0
  %v2948 = vadd.f32 0.0, %v2947
  %v2949 = vpop.f32.mrf.mxu0
  %2950 = vmatprep.mubr.bf16.mxu0 0
  %2951 = vmatmul.mubr.bf16.gmra.mxu0 %v2075
  %v2952 = vpop.f32.mrf.mxu0
  %v2953 = vadd.f32 0.0, %v2952
  %v2954 = vpop.f32.mrf.mxu0
  %v2955 = vpop.f32.mrf.mxu0
  %v2956 = vadd.f32 0.0, %v2955
  %v2957 = vpop.f32.mrf.mxu0
  %2958 = vmatprep.mubr.bf16.mxu0 0
  %2959 = vmatmul.mubr.bf16.gmra.mxu0 %v2078
  %v2960 = vpop.f32.mrf.mxu0
  %v2961 = vadd.f32 0.0, %v2960
  %v2962 = vpop.f32.mrf.mxu0
  %v2963 = vpop.f32.mrf.mxu0
  %v2964 = vadd.f32 0.0, %v2963
  %v2965 = vpop.f32.mrf.mxu0
  %2966 = vdwg.mxu0
  %v2967 = vpack.c.bf16 %v2908, %v2905
  %v2968 = vpack.c.bf16 %v2916, %v2913
  %v2969 = vpack.c.bf16 %v2924, %v2921
  %v2970 = vpack.c.bf16 %v2932, %v2929
  %v2971 = vpack.c.bf16 %v2940, %v2937
  %v2972 = vpack.c.bf16 %v2948, %v2945
  %v2973 = vpack.c.bf16 %v2956, %v2953
  %v2974 = vpack.c.bf16 %v2964, %v2961
  %2975 = vmatprep.subr.bf16.mxu0 0
  %2976 = vmatpush1.bf16.msra.mxu0 %v2224
  %2977 = vmatprep.subr.bf16.mxu0 0
  %2978 = vmatpush1.bf16.msra.mxu0 %v2223
  %2979 = vmatprep.subr.bf16.mxu0 0
  %2980 = vmatpush1.bf16.msra.mxu0 %v2222
  %2981 = vmatprep.subr.bf16.mxu0 0
  %2982 = vmatpush1.bf16.msra.mxu0 %v2221
  %2983 = vmatprep.subr.bf16.mxu0 0
  %2984 = vmatpush1.bf16.msra.mxu0 %v2220
  %2985 = vmatprep.subr.bf16.mxu0 0
  %2986 = vmatpush1.bf16.msra.mxu0 %v2219
  %2987 = vmatprep.subr.bf16.mxu0 0
  %2988 = vmatpush1.bf16.msra.mxu0 %v2218
  %2989 = vmatprep.subr.bf16.mxu0 0
  %2990 = vmatpush1.bf16.msra.mxu0 %v2217
  %2991 = vmatprep.subr.bf16.mxu0 0
  %2992 = vmatpush2.bf16.msra.mxu0 0
  %2993 = vmatprep.subr.bf16.mxu0 0
  %2994 = vmatpush2.bf16.msra.mxu0 0
  %2995 = vmatprep.subr.bf16.mxu0 0
  %2996 = vmatpush2.bf16.msra.mxu0 0
  %2997 = vmatprep.subr.bf16.mxu0 0
  %2998 = vmatpush2.bf16.msra.mxu0 0
  %2999 = vmatprep.subr.bf16.mxu0 0
  %3000 = vmatpush2.bf16.msra.mxu0 0
  %3001 = vmatprep.subr.bf16.mxu0 0
  %3002 = vmatpush2.bf16.msra.mxu0 0
  %3003 = vmatprep.subr.bf16.mxu0 0
  %3004 = vmatpush2.bf16.msra.mxu0 0
  %3005 = vmatprep.subr.bf16.mxu0 0
  %3006 = vmatpush2.bf16.msra.mxu0 0
  %3007 = vmatprep.mubr.bf16.mxu0 0
  %3008 = vmatmul.mubr.bf16.gmra.mxu0 %v2971
  %v3009 = vpop.f32.mrf.mxu0
  %v3010 = vadd.f32 0.0, %v3009
  %v3011 = vpop.f32.mrf.mxu0
  %v3012 = vpop.f32.mrf.mxu0
  %v3013 = vadd.f32 0.0, %v3012
  %v3014 = vpop.f32.mrf.mxu0
  %3015 = vmatprep.mubr.bf16.mxu0 0
  %3016 = vmatmul.mubr.bf16.gmra.mxu0 %v2972
  %v3017 = vpop.f32.mrf.mxu0
  %v3018 = vadd.f32 0.0, %v3017
  %v3019 = vpop.f32.mrf.mxu0
  %v3020 = vpop.f32.mrf.mxu0
  %v3021 = vadd.f32 0.0, %v3020
  %v3022 = vpop.f32.mrf.mxu0
  %3023 = vmatprep.mubr.bf16.mxu0 0
  %3024 = vmatmul.mubr.bf16.gmra.mxu0 %v2973
  %v3025 = vpop.f32.mrf.mxu0
  %v3026 = vadd.f32 0.0, %v3025
  %v3027 = vpop.f32.mrf.mxu0
  %v3028 = vpop.f32.mrf.mxu0
  %v3029 = vadd.f32 0.0, %v3028
  %v3030 = vpop.f32.mrf.mxu0
  %3031 = vmatprep.mubr.bf16.mxu0 0
  %3032 = vmatmul.mubr.bf16.gmra.mxu0 %v2974
  %v3033 = vpop.f32.mrf.mxu0
  %v3034 = vadd.f32 0.0, %v3033
  %v3035 = vpop.f32.mrf.mxu0
  %v3036 = vpop.f32.mrf.mxu0
  %v3037 = vadd.f32 0.0, %v3036
  %v3038 = vpop.f32.mrf.mxu0
  %3039 = vdwg.mxu0
  %3040 = vmatprep.subr.bf16.mxu0 0
  %3041 = vmatpush1.bf16.msra.mxu0 %v2337
  %3042 = vmatprep.subr.bf16.mxu0 0
  %3043 = vmatpush1.bf16.msra.mxu0 %v2336
  %3044 = vmatprep.subr.bf16.mxu0 0
  %3045 = vmatpush1.bf16.msra.mxu0 %v2335
  %3046 = vmatprep.subr.bf16.mxu0 0
  %3047 = vmatpush1.bf16.msra.mxu0 %v2334
  %3048 = vmatprep.subr.bf16.mxu0 0
  %3049 = vmatpush1.bf16.msra.mxu0 %v2333
  %3050 = vmatprep.subr.bf16.mxu0 0
  %3051 = vmatpush1.bf16.msra.mxu0 %v2332
  %3052 = vmatprep.subr.bf16.mxu0 0
  %3053 = vmatpush1.bf16.msra.mxu0 %v2331
  %3054 = vmatprep.subr.bf16.mxu0 0
  %3055 = vmatpush1.bf16.msra.mxu0 %v2330
  %3056 = vmatprep.subr.bf16.mxu0 0
  %3057 = vmatpush2.bf16.msra.mxu0 0
  %3058 = vmatprep.subr.bf16.mxu0 0
  %3059 = vmatpush2.bf16.msra.mxu0 0
  %3060 = vmatprep.subr.bf16.mxu0 0
  %3061 = vmatpush2.bf16.msra.mxu0 0
  %3062 = vmatprep.subr.bf16.mxu0 0
  %3063 = vmatpush2.bf16.msra.mxu0 0
  %3064 = vmatprep.subr.bf16.mxu0 0
  %3065 = vmatpush2.bf16.msra.mxu0 0
  %3066 = vmatprep.subr.bf16.mxu0 0
  %3067 = vmatpush2.bf16.msra.mxu0 0
  %3068 = vmatprep.subr.bf16.mxu0 0
  %3069 = vmatpush2.bf16.msra.mxu0 0
  %3070 = vmatprep.subr.bf16.mxu0 0
  %3071 = vmatpush2.bf16.msra.mxu0 0
  %3072 = vmatprep.mubr.bf16.mxu0 0
  %3073 = vmatmul.mubr.bf16.gmra.mxu0 %v2967
  %v3074 = vpop.f32.mrf.mxu0
  %v3075 = vadd.f32 %v3010, %v3074
  %v3076 = vpop.f32.mrf.mxu0
  %v3077 = vpop.f32.mrf.mxu0
  %v3078 = vadd.f32 %v3013, %v3077
  %v3079 = vpop.f32.mrf.mxu0
  %3080 = vmatprep.mubr.bf16.mxu0 0
  %3081 = vmatmul.mubr.bf16.gmra.mxu0 %v2968
  %v3082 = vpop.f32.mrf.mxu0
  %v3083 = vadd.f32 %v3018, %v3082
  %v3084 = vpop.f32.mrf.mxu0
  %v3085 = vpop.f32.mrf.mxu0
  %v3086 = vadd.f32 %v3021, %v3085
  %v3087 = vpop.f32.mrf.mxu0
  %3088 = vmatprep.mubr.bf16.mxu0 0
  %3089 = vmatmul.mubr.bf16.gmra.mxu0 %v2969
  %v3090 = vpop.f32.mrf.mxu0
  %v3091 = vadd.f32 %v3026, %v3090
  %v3092 = vpop.f32.mrf.mxu0
  %v3093 = vpop.f32.mrf.mxu0
  %v3094 = vadd.f32 %v3029, %v3093
  %v3095 = vpop.f32.mrf.mxu0
  %3096 = vmatprep.mubr.bf16.mxu0 0
  %3097 = vmatmul.mubr.bf16.gmra.mxu0 %v2970
  %v3098 = vpop.f32.mrf.mxu0
  %v3099 = vadd.f32 %v3034, %v3098
  %v3100 = vpop.f32.mrf.mxu0
  %v3101 = vpop.f32.mrf.mxu0
  %v3102 = vadd.f32 %v3037, %v3101
  %v3103 = vpop.f32.mrf.mxu0
  %3104 = vdwg.mxu0
  %3105 = vmatprep.subr.bf16.mxu0 0
  %3106 = vmatpush1.bf16.msra.mxu0 %v2450
  %3107 = vmatprep.subr.bf16.mxu0 0
  %3108 = vmatpush1.bf16.msra.mxu0 %v2449
  %3109 = vmatprep.subr.bf16.mxu0 0
  %3110 = vmatpush1.bf16.msra.mxu0 %v2448
  %3111 = vmatprep.subr.bf16.mxu0 0
  %3112 = vmatpush1.bf16.msra.mxu0 %v2447
  %3113 = vmatprep.subr.bf16.mxu0 0
  %3114 = vmatpush1.bf16.msra.mxu0 %v2446
  %3115 = vmatprep.subr.bf16.mxu0 0
  %3116 = vmatpush1.bf16.msra.mxu0 %v2445
  %3117 = vmatprep.subr.bf16.mxu0 0
  %3118 = vmatpush1.bf16.msra.mxu0 %v2444
  %3119 = vmatprep.subr.bf16.mxu0 0
  %3120 = vmatpush1.bf16.msra.mxu0 %v2443
  %3121 = vmatprep.subr.bf16.mxu0 0
  %3122 = vmatpush2.bf16.msra.mxu0 0
  %3123 = vmatprep.subr.bf16.mxu0 0
  %3124 = vmatpush2.bf16.msra.mxu0 0
  %3125 = vmatprep.subr.bf16.mxu0 0
  %3126 = vmatpush2.bf16.msra.mxu0 0
  %3127 = vmatprep.subr.bf16.mxu0 0
  %3128 = vmatpush2.bf16.msra.mxu0 0
  %3129 = vmatprep.subr.bf16.mxu0 0
  %3130 = vmatpush2.bf16.msra.mxu0 0
  %3131 = vmatprep.subr.bf16.mxu0 0
  %3132 = vmatpush2.bf16.msra.mxu0 0
  %3133 = vmatprep.subr.bf16.mxu0 0
  %3134 = vmatpush2.bf16.msra.mxu0 0
  %3135 = vmatprep.subr.bf16.mxu0 0
  %3136 = vmatpush2.bf16.msra.mxu0 0
  %3137 = vmatprep.mubr.bf16.mxu0 0
  %3138 = vmatmul.mubr.bf16.gmra.mxu0 %v2866
  %v3139 = vpop.f32.mrf.mxu0
  %v3140 = vadd.f32 0.0, %v3139
  %v3141 = vpop.f32.mrf.mxu0
  %v3142 = vpop.f32.mrf.mxu0
  %v3143 = vadd.f32 0.0, %v3142
  %v3144 = vpop.f32.mrf.mxu0
  %3145 = vmatprep.mubr.bf16.mxu0 0
  %3146 = vmatmul.mubr.bf16.gmra.mxu0 %v2867
  %v3147 = vpop.f32.mrf.mxu0
  %v3148 = vadd.f32 0.0, %v3147
  %v3149 = vpop.f32.mrf.mxu0
  %v3150 = vpop.f32.mrf.mxu0
  %v3151 = vadd.f32 0.0, %v3150
  %v3152 = vpop.f32.mrf.mxu0
  %3153 = vmatprep.mubr.bf16.mxu0 0
  %3154 = vmatmul.mubr.bf16.gmra.mxu0 %v2868
  %v3155 = vpop.f32.mrf.mxu0
  %v3156 = vadd.f32 0.0, %v3155
  %v3157 = vpop.f32.mrf.mxu0
  %v3158 = vpop.f32.mrf.mxu0
  %v3159 = vadd.f32 0.0, %v3158
  %v3160 = vpop.f32.mrf.mxu0
  %3161 = vmatprep.mubr.bf16.mxu0 0
  %3162 = vmatmul.mubr.bf16.gmra.mxu0 %v2869
  %v3163 = vpop.f32.mrf.mxu0
  %v3164 = vadd.f32 0.0, %v3163
  %v3165 = vpop.f32.mrf.mxu0
  %v3166 = vpop.f32.mrf.mxu0
  %v3167 = vadd.f32 0.0, %v3166
  %v3168 = vpop.f32.mrf.mxu0
  %3169 = vdwg.mxu0
  %v3170 = vadd.f32 %v3075, %v3140
  %v3171 = vadd.f32 %v3078, %v3143
  %v3172 = vadd.f32 %v3083, %v3148
  %v3173 = vadd.f32 %v3086, %v3151
  %v3174 = vadd.f32 %v3091, %v3156
  %v3175 = vadd.f32 %v3094, %v3159
  %v3176 = vadd.f32 %v3099, %v3164
  %v3177 = vadd.f32 %v3102, %v3167
  %v3178 = vadd.f32 %v3170, %v2536
  %v3179 = vadd.f32 %v3171, %v2536
  %v3180 = vadd.f32 %v3172, %v2536
  %v3181 = vadd.f32 %v3173, %v2536
  %v3182 = vadd.f32 %v3174, %v2536
  %v3183 = vadd.f32 %v3175, %v2536
  %v3184 = vadd.f32 %v3176, %v2536
  %v3185 = vadd.f32 %v3177, %v2536
  %v3186 = vpack.c.bf16 %v3179, %v3178
  %v3187 = vpack.c.bf16 %v3181, %v3180
  %v3188 = vpack.c.bf16 %v3183, %v3182
  %v3189 = vpack.c.bf16 %v3185, %v3184
  %3190 = vmatprep.subr.bf16.mxu0 0
  %3191 = vmatpush1.bf16.msra.mxu0 0
  %3192 = vmatprep.subr.bf16.mxu0 0
  %3193 = vmatpush1.bf16.msra.mxu0 0
  %3194 = vmatprep.subr.bf16.mxu0 0
  %3195 = vmatpush1.bf16.msra.mxu0 0
  %3196 = vmatprep.subr.bf16.mxu0 0
  %3197 = vmatpush1.bf16.msra.mxu0 0
  %3198 = vmatprep.subr.bf16.mxu0 0
  %3199 = vmatpush1.bf16.msra.mxu0 %v3189
  %3200 = vmatprep.subr.bf16.mxu0 0
  %3201 = vmatpush1.bf16.msra.mxu0 %v3188
  %3202 = vmatprep.subr.bf16.mxu0 0
  %3203 = vmatpush1.bf16.msra.mxu0 %v3187
  %3204 = vmatprep.subr.bf16.mxu0 0
  %3205 = vmatpush1.bf16.msra.mxu0 %v3186
  %3206 = vmatprep.subr.bf16.mxu0 0
  %3207 = vmatpush2.bf16.msra.mxu0 0
  %3208 = vmatprep.subr.bf16.mxu0 0
  %3209 = vmatpush2.bf16.msra.mxu0 0
  %3210 = vmatprep.subr.bf16.mxu0 0
  %3211 = vmatpush2.bf16.msra.mxu0 0
  %3212 = vmatprep.subr.bf16.mxu0 0
  %3213 = vmatpush2.bf16.msra.mxu0 0
  %3214 = vmatprep.subr.bf16.mxu0 0
  %3215 = vmatpush2.bf16.msra.mxu0 0
  %3216 = vmatprep.subr.bf16.mxu0 0
  %3217 = vmatpush2.bf16.msra.mxu0 0
  %3218 = vmatprep.subr.bf16.mxu0 0
  %3219 = vmatpush2.bf16.msra.mxu0 0
  %3220 = vmatprep.subr.bf16.mxu0 0
  %3221 = vmatpush2.bf16.msra.mxu0 0
  %3222 = vmatprep.mubr.bf16.mxu0 0
  %3223 = vmatmul.mubr.bf16.gmra.mxu0 %v2057
  %v3224 = vpop.f32.mrf.mxu0
  %v3225 = vadd.f32 0.0, %v3224
  %v3226 = vpop.f32.mrf.mxu0
  %v3227 = vpop.f32.mrf.mxu0
  %v3228 = vadd.f32 0.0, %v3227
  %v3229 = vpop.f32.mrf.mxu0
  %3230 = vmatprep.mubr.bf16.mxu0 0
  %3231 = vmatmul.mubr.bf16.gmra.mxu0 %v2060
  %v3232 = vpop.f32.mrf.mxu0
  %v3233 = vadd.f32 0.0, %v3232
  %v3234 = vpop.f32.mrf.mxu0
  %v3235 = vpop.f32.mrf.mxu0
  %v3236 = vadd.f32 0.0, %v3235
  %v3237 = vpop.f32.mrf.mxu0
  %3238 = vmatprep.mubr.bf16.mxu0 0
  %3239 = vmatmul.mubr.bf16.gmra.mxu0 %v2063
  %v3240 = vpop.f32.mrf.mxu0
  %v3241 = vadd.f32 0.0, %v3240
  %v3242 = vpop.f32.mrf.mxu0
  %v3243 = vpop.f32.mrf.mxu0
  %v3244 = vadd.f32 0.0, %v3243
  %v3245 = vpop.f32.mrf.mxu0
  %3246 = vmatprep.mubr.bf16.mxu0 0
  %3247 = vmatmul.mubr.bf16.gmra.mxu0 %v2066
  %v3248 = vpop.f32.mrf.mxu0
  %v3249 = vadd.f32 0.0, %v3248
  %v3250 = vpop.f32.mrf.mxu0
  %v3251 = vpop.f32.mrf.mxu0
  %v3252 = vadd.f32 0.0, %v3251
  %v3253 = vpop.f32.mrf.mxu0
  %3254 = vmatprep.mubr.bf16.mxu0 0
  %3255 = vmatmul.mubr.bf16.gmra.mxu0 %v2069
  %v3256 = vpop.f32.mrf.mxu0
  %v3257 = vadd.f32 0.0, %v3256
  %v3258 = vpop.f32.mrf.mxu0
  %v3259 = vpop.f32.mrf.mxu0
  %v3260 = vadd.f32 0.0, %v3259
  %v3261 = vpop.f32.mrf.mxu0
  %3262 = vmatprep.mubr.bf16.mxu0 0
  %3263 = vmatmul.mubr.bf16.gmra.mxu0 %v2072
  %v3264 = vpop.f32.mrf.mxu0
  %v3265 = vadd.f32 0.0, %v3264
  %v3266 = vpop.f32.mrf.mxu0
  %v3267 = vpop.f32.mrf.mxu0
  %v3268 = vadd.f32 0.0, %v3267
  %v3269 = vpop.f32.mrf.mxu0
  %3270 = vmatprep.mubr.bf16.mxu0 0
  %3271 = vmatmul.mubr.bf16.gmra.mxu0 %v2075
  %v3272 = vpop.f32.mrf.mxu0
  %v3273 = vadd.f32 0.0, %v3272
  %v3274 = vpop.f32.mrf.mxu0
  %v3275 = vpop.f32.mrf.mxu0
  %v3276 = vadd.f32 0.0, %v3275
  %v3277 = vpop.f32.mrf.mxu0
  %3278 = vmatprep.mubr.bf16.mxu0 0
  %3279 = vmatmul.mubr.bf16.gmra.mxu0 %v2078
  %v3280 = vpop.f32.mrf.mxu0
  %v3281 = vadd.f32 0.0, %v3280
  %v3282 = vpop.f32.mrf.mxu0
  %v3283 = vpop.f32.mrf.mxu0
  %v3284 = vadd.f32 0.0, %v3283
  %v3285 = vpop.f32.mrf.mxu0
  %3286 = vdwg.mxu0
  %v3287 = vpack.c.bf16 %v3228, %v3225
  %v3288 = vpack.c.bf16 %v3236, %v3233
  %v3289 = vpack.c.bf16 %v3244, %v3241
  %v3290 = vpack.c.bf16 %v3252, %v3249
  %v3291 = vpack.c.bf16 %v3260, %v3257
  %v3292 = vpack.c.bf16 %v3268, %v3265
  %v3293 = vpack.c.bf16 %v3276, %v3273
  %v3294 = vpack.c.bf16 %v3284, %v3281
  %3295 = vmatprep.subr.bf16.mxu0 0
  %3296 = vmatpush1.bf16.msra.mxu0 %v2224
  %3297 = vmatprep.subr.bf16.mxu0 0
  %3298 = vmatpush1.bf16.msra.mxu0 %v2223
  %3299 = vmatprep.subr.bf16.mxu0 0
  %3300 = vmatpush1.bf16.msra.mxu0 %v2222
  %3301 = vmatprep.subr.bf16.mxu0 0
  %3302 = vmatpush1.bf16.msra.mxu0 %v2221
  %3303 = vmatprep.subr.bf16.mxu0 0
  %3304 = vmatpush1.bf16.msra.mxu0 %v2220
  %3305 = vmatprep.subr.bf16.mxu0 0
  %3306 = vmatpush1.bf16.msra.mxu0 %v2219
  %3307 = vmatprep.subr.bf16.mxu0 0
  %3308 = vmatpush1.bf16.msra.mxu0 %v2218
  %3309 = vmatprep.subr.bf16.mxu0 0
  %3310 = vmatpush1.bf16.msra.mxu0 %v2217
  %3311 = vmatprep.subr.bf16.mxu0 0
  %3312 = vmatpush2.bf16.msra.mxu0 0
  %3313 = vmatprep.subr.bf16.mxu0 0
  %3314 = vmatpush2.bf16.msra.mxu0 0
  %3315 = vmatprep.subr.bf16.mxu0 0
  %3316 = vmatpush2.bf16.msra.mxu0 0
  %3317 = vmatprep.subr.bf16.mxu0 0
  %3318 = vmatpush2.bf16.msra.mxu0 0
  %3319 = vmatprep.subr.bf16.mxu0 0
  %3320 = vmatpush2.bf16.msra.mxu0 0
  %3321 = vmatprep.subr.bf16.mxu0 0
  %3322 = vmatpush2.bf16.msra.mxu0 0
  %3323 = vmatprep.subr.bf16.mxu0 0
  %3324 = vmatpush2.bf16.msra.mxu0 0
  %3325 = vmatprep.subr.bf16.mxu0 0
  %3326 = vmatpush2.bf16.msra.mxu0 0
  %3327 = vmatprep.mubr.bf16.mxu0 0
  %3328 = vmatmul.mubr.bf16.gmra.mxu0 %v3291
  %v3329 = vpop.f32.mrf.mxu0
  %v3330 = vadd.f32 0.0, %v3329
  %v3331 = vpop.f32.mrf.mxu0
  %v3332 = vpop.f32.mrf.mxu0
  %v3333 = vadd.f32 0.0, %v3332
  %v3334 = vpop.f32.mrf.mxu0
  %3335 = vmatprep.mubr.bf16.mxu0 0
  %3336 = vmatmul.mubr.bf16.gmra.mxu0 %v3292
  %v3337 = vpop.f32.mrf.mxu0
  %v3338 = vadd.f32 0.0, %v3337
  %v3339 = vpop.f32.mrf.mxu0
  %v3340 = vpop.f32.mrf.mxu0
  %v3341 = vadd.f32 0.0, %v3340
  %v3342 = vpop.f32.mrf.mxu0
  %3343 = vmatprep.mubr.bf16.mxu0 0
  %3344 = vmatmul.mubr.bf16.gmra.mxu0 %v3293
  %v3345 = vpop.f32.mrf.mxu0
  %v3346 = vadd.f32 0.0, %v3345
  %v3347 = vpop.f32.mrf.mxu0
  %v3348 = vpop.f32.mrf.mxu0
  %v3349 = vadd.f32 0.0, %v3348
  %v3350 = vpop.f32.mrf.mxu0
  %3351 = vmatprep.mubr.bf16.mxu0 0
  %3352 = vmatmul.mubr.bf16.gmra.mxu0 %v3294
  %v3353 = vpop.f32.mrf.mxu0
  %v3354 = vadd.f32 0.0, %v3353
  %v3355 = vpop.f32.mrf.mxu0
  %v3356 = vpop.f32.mrf.mxu0
  %v3357 = vadd.f32 0.0, %v3356
  %v3358 = vpop.f32.mrf.mxu0
  %3359 = vdwg.mxu0
  %3360 = vmatprep.subr.bf16.mxu0 0
  %3361 = vmatpush1.bf16.msra.mxu0 %v2337
  %3362 = vmatprep.subr.bf16.mxu0 0
  %3363 = vmatpush1.bf16.msra.mxu0 %v2336
  %3364 = vmatprep.subr.bf16.mxu0 0
  %3365 = vmatpush1.bf16.msra.mxu0 %v2335
  %3366 = vmatprep.subr.bf16.mxu0 0
  %3367 = vmatpush1.bf16.msra.mxu0 %v2334
  %3368 = vmatprep.subr.bf16.mxu0 0
  %3369 = vmatpush1.bf16.msra.mxu0 %v2333
  %3370 = vmatprep.subr.bf16.mxu0 0
  %3371 = vmatpush1.bf16.msra.mxu0 %v2332
  %3372 = vmatprep.subr.bf16.mxu0 0
  %3373 = vmatpush1.bf16.msra.mxu0 %v2331
  %3374 = vmatprep.subr.bf16.mxu0 0
  %3375 = vmatpush1.bf16.msra.mxu0 %v2330
  %3376 = vmatprep.subr.bf16.mxu0 0
  %3377 = vmatpush2.bf16.msra.mxu0 0
  %3378 = vmatprep.subr.bf16.mxu0 0
  %3379 = vmatpush2.bf16.msra.mxu0 0
  %3380 = vmatprep.subr.bf16.mxu0 0
  %3381 = vmatpush2.bf16.msra.mxu0 0
  %3382 = vmatprep.subr.bf16.mxu0 0
  %3383 = vmatpush2.bf16.msra.mxu0 0
  %3384 = vmatprep.subr.bf16.mxu0 0
  %3385 = vmatpush2.bf16.msra.mxu0 0
  %3386 = vmatprep.subr.bf16.mxu0 0
  %3387 = vmatpush2.bf16.msra.mxu0 0
  %3388 = vmatprep.subr.bf16.mxu0 0
  %3389 = vmatpush2.bf16.msra.mxu0 0
  %3390 = vmatprep.subr.bf16.mxu0 0
  %3391 = vmatpush2.bf16.msra.mxu0 0
  %3392 = vmatprep.mubr.bf16.mxu0 0
  %3393 = vmatmul.mubr.bf16.gmra.mxu0 %v3287
  %v3394 = vpop.f32.mrf.mxu0
  %v3395 = vadd.f32 %v3330, %v3394
  %v3396 = vpop.f32.mrf.mxu0
  %v3397 = vpop.f32.mrf.mxu0
  %v3398 = vadd.f32 %v3333, %v3397
  %v3399 = vpop.f32.mrf.mxu0
  %3400 = vmatprep.mubr.bf16.mxu0 0
  %3401 = vmatmul.mubr.bf16.gmra.mxu0 %v3288
  %v3402 = vpop.f32.mrf.mxu0
  %v3403 = vadd.f32 %v3338, %v3402
  %v3404 = vpop.f32.mrf.mxu0
  %v3405 = vpop.f32.mrf.mxu0
  %v3406 = vadd.f32 %v3341, %v3405
  %v3407 = vpop.f32.mrf.mxu0
  %3408 = vmatprep.mubr.bf16.mxu0 0
  %3409 = vmatmul.mubr.bf16.gmra.mxu0 %v3289
  %v3410 = vpop.f32.mrf.mxu0
  %v3411 = vadd.f32 %v3346, %v3410
  %v3412 = vpop.f32.mrf.mxu0
  %v3413 = vpop.f32.mrf.mxu0
  %v3414 = vadd.f32 %v3349, %v3413
  %v3415 = vpop.f32.mrf.mxu0
  %3416 = vmatprep.mubr.bf16.mxu0 0
  %3417 = vmatmul.mubr.bf16.gmra.mxu0 %v3290
  %v3418 = vpop.f32.mrf.mxu0
  %v3419 = vadd.f32 %v3354, %v3418
  %v3420 = vpop.f32.mrf.mxu0
  %v3421 = vpop.f32.mrf.mxu0
  %v3422 = vadd.f32 %v3357, %v3421
  %v3423 = vpop.f32.mrf.mxu0
  %3424 = vdwg.mxu0
  %3425 = vmatprep.subr.bf16.mxu0 0
  %3426 = vmatpush1.bf16.msra.mxu0 %v2450
  %3427 = vmatprep.subr.bf16.mxu0 0
  %3428 = vmatpush1.bf16.msra.mxu0 %v2449
  %3429 = vmatprep.subr.bf16.mxu0 0
  %3430 = vmatpush1.bf16.msra.mxu0 %v2448
  %3431 = vmatprep.subr.bf16.mxu0 0
  %3432 = vmatpush1.bf16.msra.mxu0 %v2447
  %3433 = vmatprep.subr.bf16.mxu0 0
  %3434 = vmatpush1.bf16.msra.mxu0 %v2446
  %3435 = vmatprep.subr.bf16.mxu0 0
  %3436 = vmatpush1.bf16.msra.mxu0 %v2445
  %3437 = vmatprep.subr.bf16.mxu0 0
  %3438 = vmatpush1.bf16.msra.mxu0 %v2444
  %3439 = vmatprep.subr.bf16.mxu0 0
  %3440 = vmatpush1.bf16.msra.mxu0 %v2443
  %3441 = vmatprep.subr.bf16.mxu0 0
  %3442 = vmatpush2.bf16.msra.mxu0 0
  %3443 = vmatprep.subr.bf16.mxu0 0
  %3444 = vmatpush2.bf16.msra.mxu0 0
  %3445 = vmatprep.subr.bf16.mxu0 0
  %3446 = vmatpush2.bf16.msra.mxu0 0
  %3447 = vmatprep.subr.bf16.mxu0 0
  %3448 = vmatpush2.bf16.msra.mxu0 0
  %3449 = vmatprep.subr.bf16.mxu0 0
  %3450 = vmatpush2.bf16.msra.mxu0 0
  %3451 = vmatprep.subr.bf16.mxu0 0
  %3452 = vmatpush2.bf16.msra.mxu0 0
  %3453 = vmatprep.subr.bf16.mxu0 0
  %3454 = vmatpush2.bf16.msra.mxu0 0
  %3455 = vmatprep.subr.bf16.mxu0 0
  %3456 = vmatpush2.bf16.msra.mxu0 0
  %3457 = vmatprep.mubr.bf16.mxu0 0
  %3458 = vmatmul.mubr.bf16.gmra.mxu0 %v3186
  %v3459 = vpop.f32.mrf.mxu0
  %v3460 = vadd.f32 0.0, %v3459
  %v3461 = vpop.f32.mrf.mxu0
  %v3462 = vpop.f32.mrf.mxu0
  %v3463 = vadd.f32 0.0, %v3462
  %v3464 = vpop.f32.mrf.mxu0
  %3465 = vmatprep.mubr.bf16.mxu0 0
  %3466 = vmatmul.mubr.bf16.gmra.mxu0 %v3187
  %v3467 = vpop.f32.mrf.mxu0
  %v3468 = vadd.f32 0.0, %v3467
  %v3469 = vpop.f32.mrf.mxu0
  %v3470 = vpop.f32.mrf.mxu0
  %v3471 = vadd.f32 0.0, %v3470
  %v3472 = vpop.f32.mrf.mxu0
  %3473 = vmatprep.mubr.bf16.mxu0 0
  %3474 = vmatmul.mubr.bf16.gmra.mxu0 %v3188
  %v3475 = vpop.f32.mrf.mxu0
  %v3476 = vadd.f32 0.0, %v3475
  %v3477 = vpop.f32.mrf.mxu0
  %v3478 = vpop.f32.mrf.mxu0
  %v3479 = vadd.f32 0.0, %v3478
  %v3480 = vpop.f32.mrf.mxu0
  %3481 = vmatprep.mubr.bf16.mxu0 0
  %3482 = vmatmul.mubr.bf16.gmra.mxu0 %v3189
  %v3483 = vpop.f32.mrf.mxu0
  %v3484 = vadd.f32 0.0, %v3483
  %v3485 = vpop.f32.mrf.mxu0
  %v3486 = vpop.f32.mrf.mxu0
  %v3487 = vadd.f32 0.0, %v3486
  %v3488 = vpop.f32.mrf.mxu0
  %3489 = vdwg.mxu0
  %v3490 = vadd.f32 %v3395, %v3460
  %v3491 = vadd.f32 %v3398, %v3463
  %v3492 = vadd.f32 %v3403, %v3468
  %v3493 = vadd.f32 %v3406, %v3471
  %v3494 = vadd.f32 %v3411, %v3476
  %v3495 = vadd.f32 %v3414, %v3479
  %v3496 = vadd.f32 %v3419, %v3484
  %v3497 = vadd.f32 %v3422, %v3487
  %v3498 = vadd.f32 %v3490, %v2536
  %v3499 = vadd.f32 %v3491, %v2536
  %v3500 = vadd.f32 %v3492, %v2536
  %v3501 = vadd.f32 %v3493, %v2536
  %v3502 = vadd.f32 %v3494, %v2536
  %v3503 = vadd.f32 %v3495, %v2536
  %v3504 = vadd.f32 %v3496, %v2536
  %v3505 = vadd.f32 %v3497, %v2536
  %v3506 = vpack.c.bf16 %v3499, %v3498
  %v3507 = vpack.c.bf16 %v3501, %v3500
  %v3508 = vpack.c.bf16 %v3503, %v3502
  %v3509 = vpack.c.bf16 %v3505, %v3504
  %v3510 = vld [vmem:[%s16] sm:$0xf]
  %v3511 = vld [vmem:[%s16 + $0x4] sm:$0xf]
  %v3512 = vld [vmem:[%s16 + $0x8] sm:$0xf]
  %v3513 = vld [vmem:[%s16 + $0xc] sm:$0xf]
  %v3514 = vld [vmem:[%s16 + $0x10] sm:$0xf]
  %v3515 = vld [vmem:[%s16 + $0x14] sm:$0xf]
  %v3516 = vld [vmem:[%s16 + $0x18] sm:$0xf]
  %v3517 = vld [vmem:[%s16 + $0x1c] sm:$0xf]
  %v3518 = vld [vmem:[%s16 + $0x20] sm:$0xf]
  %v3519 = vld [vmem:[%s16 + $0x24] sm:$0xf]
  %v3520 = vld [vmem:[%s16 + $0x28] sm:$0xf]
  %v3521 = vld [vmem:[%s16 + $0x2c] sm:$0xf]
  %v3522 = vld [vmem:[%s16 + $0x30] sm:$0xf]
  %v3523 = vld [vmem:[%s16 + $0x34] sm:$0xf]
  %v3524 = vld [vmem:[%s16 + $0x38] sm:$0xf]
  %v3525 = vld [vmem:[%s16 + $0x3c] sm:$0xf]
  %v3526 = vld [vmem:[%s17] sm:$0x1]
  %v3528 = vlaneseq
  %v3529 = vshrl.u32 %v3528, 7
  %v3530 = vsub.s32 0, %v3529
  %v3531 = vrot.slane %v3526, %v3530
  %v3549 = vunpack.c.l.b16 %v3510
  %v3550 = vunpack.c.l.b16 %v3511
  %v3551 = vunpack.c.l.b16 %v3512
  %v3552 = vunpack.c.l.b16 %v3513
  %v3553 = vunpack.c.l.b16 %v3514
  %v3554 = vunpack.c.l.b16 %v3515
  %v3555 = vunpack.c.l.b16 %v3516
  %v3556 = vunpack.c.l.b16 %v3517
  %v3557 = vunpack.c.l.b16 %v3518
  %v3558 = vunpack.c.l.b16 %v3519
  %v3559 = vunpack.c.l.b16 %v3520
  %v3560 = vunpack.c.l.b16 %v3521
  %v3561 = vunpack.c.l.b16 %v3522
  %v3562 = vunpack.c.l.b16 %v3523
  %v3563 = vunpack.c.l.b16 %v3524
  %v3564 = vunpack.c.l.b16 %v3525
  %v3565 = vpack.c.b16 %v3550, %v3549
  %v3566 = vpack.c.b16 %v3552, %v3551
  %v3567 = vpack.c.b16 %v3554, %v3553
  %v3568 = vpack.c.b16 %v3556, %v3555
  %v3569 = vpack.c.b16 %v3558, %v3557
  %v3570 = vpack.c.b16 %v3560, %v3559
  %v3571 = vpack.c.b16 %v3562, %v3561
  %v3572 = vpack.c.b16 %v3564, %v3563
  %3581 = vmatprep.subr.bf16.mxu0 0
  %3582 = vmatpush1.bf16.msra.mxu0 %v3572
  %3583 = vmatprep.subr.bf16.mxu0 0
  %3584 = vmatpush1.bf16.msra.mxu0 %v3571
  %3585 = vmatprep.subr.bf16.mxu0 0
  %3586 = vmatpush1.bf16.msra.mxu0 %v3570
  %3587 = vmatprep.subr.bf16.mxu0 0
  %3588 = vmatpush1.bf16.msra.mxu0 %v3569
  %3589 = vmatprep.subr.bf16.mxu0 0
  %3590 = vmatpush1.bf16.msra.mxu0 %v3568
  %3591 = vmatprep.subr.bf16.mxu0 0
  %3592 = vmatpush1.bf16.msra.mxu0 %v3567
  %3593 = vmatprep.subr.bf16.mxu0 0
  %3594 = vmatpush1.bf16.msra.mxu0 %v3566
  %3595 = vmatprep.subr.bf16.mxu0 0
  %3596 = vmatpush1.bf16.msra.mxu0 %v3565
  %3597 = vmatprep.subr.bf16.mxu0 0
  %3598 = vmatpush2.bf16.msra.mxu0 0
  %3599 = vmatprep.subr.bf16.mxu0 0
  %3600 = vmatpush2.bf16.msra.mxu0 0
  %3601 = vmatprep.subr.bf16.mxu0 0
  %3602 = vmatpush2.bf16.msra.mxu0 0
  %3603 = vmatprep.subr.bf16.mxu0 0
  %3604 = vmatpush2.bf16.msra.mxu0 0
  %3605 = vmatprep.subr.bf16.mxu0 0
  %3606 = vmatpush2.bf16.msra.mxu0 0
  %3607 = vmatprep.subr.bf16.mxu0 0
  %3608 = vmatpush2.bf16.msra.mxu0 0
  %3609 = vmatprep.subr.bf16.mxu0 0
  %3610 = vmatpush2.bf16.msra.mxu0 0
  %3611 = vmatprep.subr.bf16.mxu0 0
  %3612 = vmatpush2.bf16.msra.mxu0 0
  %3613 = vmatprep.mubr.bf16.mxu0 0
  %3614 = vmatmul.mubr.bf16.gmra.mxu0 %v3506
  %v3615 = vpop.f32.mrf.mxu0
  %v3616 = vadd.f32 %v3531, %v3615
  %v3617 = vpop.f32.mrf.mxu0
  %v3618 = vpop.f32.mrf.mxu0
  %v3619 = vadd.f32 %v3531, %v3618
  %v3620 = vpop.f32.mrf.mxu0
  %3621 = vmatprep.mubr.bf16.mxu0 0
  %3622 = vmatmul.mubr.bf16.gmra.mxu0 %v3507
  %v3623 = vpop.f32.mrf.mxu0
  %v3624 = vadd.f32 %v3531, %v3623
  %v3625 = vpop.f32.mrf.mxu0
  %v3626 = vpop.f32.mrf.mxu0
  %v3627 = vadd.f32 %v3531, %v3626
  %v3628 = vpop.f32.mrf.mxu0
  %3629 = vmatprep.mubr.bf16.mxu0 0
  %3630 = vmatmul.mubr.bf16.gmra.mxu0 %v3508
  %v3631 = vpop.f32.mrf.mxu0
  %v3632 = vadd.f32 %v3531, %v3631
  %v3633 = vpop.f32.mrf.mxu0
  %v3634 = vpop.f32.mrf.mxu0
  %v3635 = vadd.f32 %v3531, %v3634
  %v3636 = vpop.f32.mrf.mxu0
  %3637 = vmatprep.mubr.bf16.mxu0 0
  %3638 = vmatmul.mubr.bf16.gmra.mxu0 %v3509
  %v3639 = vpop.f32.mrf.mxu0
  %v3640 = vadd.f32 %v3531, %v3639
  %v3641 = vpop.f32.mrf.mxu0
  %v3642 = vpop.f32.mrf.mxu0
  %v3643 = vadd.f32 %v3531, %v3642
  %v3644 = vpop.f32.mrf.mxu0
  %3645 = vdwg.mxu0
  %v3646 = vmul.f32 %v3616, 0.01
  %v3647 = vmul.f32 %v3619, 0.01
  %v3648 = vmul.f32 %v3624, 0.01
  %v3649 = vmul.f32 %v3627, 0.01
  %v3650 = vmul.f32 %v3632, 0.01
  %v3651 = vmul.f32 %v3635, 0.01
  %v3652 = vmul.f32 %v3640, 0.01
  %v3653 = vmul.f32 %v3643, 0.01
  %v3654 = vmax.f32 %v3616, %v3646
  %v3655 = vmax.f32 %v3619, %v3647
  %v3656 = vmax.f32 %v3624, %v3648
  %v3657 = vmax.f32 %v3627, %v3649
  %v3658 = vmax.f32 %v3632, %v3650
  %v3659 = vmax.f32 %v3635, %v3651
  %v3660 = vmax.f32 %v3640, %v3652
  %v3661 = vmax.f32 %v3643, %v3653
  %v3662 = vpack.c.bf16 %v3655, %v3654
  %v3663 = vpack.c.bf16 %v3657, %v3656
  %v3664 = vpack.c.bf16 %v3659, %v3658
  %v3665 = vpack.c.bf16 %v3661, %v3660
  %v3666 = vld [vmem:[%s18] sm:$0xf]
  %v3667 = vld [vmem:[%s18 + $0x4] sm:$0xf]
  %v3668 = vld [vmem:[%s18 + $0x8] sm:$0xf]
  %v3669 = vld [vmem:[%s18 + $0xc] sm:$0xf]
  %v3670 = vld [vmem:[%s18 + $0x10] sm:$0xf]
  %v3671 = vld [vmem:[%s18 + $0x14] sm:$0xf]
  %v3672 = vld [vmem:[%s18 + $0x18] sm:$0xf]
  %v3673 = vld [vmem:[%s18 + $0x1c] sm:$0xf]
  %v3674 = vld [vmem:[%s18 + $0x20] sm:$0xf]
  %v3675 = vld [vmem:[%s18 + $0x24] sm:$0xf]
  %v3676 = vld [vmem:[%s18 + $0x28] sm:$0xf]
  %v3677 = vld [vmem:[%s18 + $0x2c] sm:$0xf]
  %v3678 = vld [vmem:[%s18 + $0x30] sm:$0xf]
  %v3679 = vld [vmem:[%s18 + $0x34] sm:$0xf]
  %v3680 = vld [vmem:[%s18 + $0x38] sm:$0xf]
  %v3681 = vld [vmem:[%s18 + $0x3c] sm:$0xf]
  %v3682 = vld [vmem:[%s19] sm:$0x1]
  %v3684 = vlaneseq
  %v3685 = vshrl.u32 %v3684, 7
  %v3686 = vsub.s32 0, %v3685
  %v3687 = vrot.slane %v3682, %v3686
  %v3705 = vunpack.c.l.b16 %v3666
  %v3706 = vunpack.c.l.b16 %v3667
  %v3707 = vunpack.c.l.b16 %v3668
  %v3708 = vunpack.c.l.b16 %v3669
  %v3709 = vunpack.c.l.b16 %v3670
  %v3710 = vunpack.c.l.b16 %v3671
  %v3711 = vunpack.c.l.b16 %v3672
  %v3712 = vunpack.c.l.b16 %v3673
  %v3713 = vunpack.c.l.b16 %v3674
  %v3714 = vunpack.c.l.b16 %v3675
  %v3715 = vunpack.c.l.b16 %v3676
  %v3716 = vunpack.c.l.b16 %v3677
  %v3717 = vunpack.c.l.b16 %v3678
  %v3718 = vunpack.c.l.b16 %v3679
  %v3719 = vunpack.c.l.b16 %v3680
  %v3720 = vunpack.c.l.b16 %v3681
  %v3721 = vpack.c.b16 %v3706, %v3705
  %v3722 = vpack.c.b16 %v3708, %v3707
  %v3723 = vpack.c.b16 %v3710, %v3709
  %v3724 = vpack.c.b16 %v3712, %v3711
  %v3725 = vpack.c.b16 %v3714, %v3713
  %v3726 = vpack.c.b16 %v3716, %v3715
  %v3727 = vpack.c.b16 %v3718, %v3717
  %v3728 = vpack.c.b16 %v3720, %v3719
  %3737 = vmatprep.subr.bf16.mxu0 0
  %3738 = vmatpush1.bf16.msra.mxu0 %v3728
  %3739 = vmatprep.subr.bf16.mxu0 0
  %3740 = vmatpush1.bf16.msra.mxu0 %v3727
  %3741 = vmatprep.subr.bf16.mxu0 0
  %3742 = vmatpush1.bf16.msra.mxu0 %v3726
  %3743 = vmatprep.subr.bf16.mxu0 0
  %3744 = vmatpush1.bf16.msra.mxu0 %v3725
  %3745 = vmatprep.subr.bf16.mxu0 0
  %3746 = vmatpush1.bf16.msra.mxu0 %v3724
  %3747 = vmatprep.subr.bf16.mxu0 0
  %3748 = vmatpush1.bf16.msra.mxu0 %v3723
  %3749 = vmatprep.subr.bf16.mxu0 0
  %3750 = vmatpush1.bf16.msra.mxu0 %v3722
  %3751 = vmatprep.subr.bf16.mxu0 0
  %3752 = vmatpush1.bf16.msra.mxu0 %v3721
  %3753 = vmatprep.subr.bf16.mxu0 0
  %3754 = vmatpush2.bf16.msra.mxu0 0
  %3755 = vmatprep.subr.bf16.mxu0 0
  %3756 = vmatpush2.bf16.msra.mxu0 0
  %3757 = vmatprep.subr.bf16.mxu0 0
  %3758 = vmatpush2.bf16.msra.mxu0 0
  %3759 = vmatprep.subr.bf16.mxu0 0
  %3760 = vmatpush2.bf16.msra.mxu0 0
  %3761 = vmatprep.subr.bf16.mxu0 0
  %3762 = vmatpush2.bf16.msra.mxu0 0
  %3763 = vmatprep.subr.bf16.mxu0 0
  %3764 = vmatpush2.bf16.msra.mxu0 0
  %3765 = vmatprep.subr.bf16.mxu0 0
  %3766 = vmatpush2.bf16.msra.mxu0 0
  %3767 = vmatprep.subr.bf16.mxu0 0
  %3768 = vmatpush2.bf16.msra.mxu0 0
  %3769 = vmatprep.mubr.bf16.mxu0 0
  %3770 = vmatmul.mubr.bf16.gmra.mxu0 %v3662
  %v3771 = vpop.f32.mrf.mxu0
  %v3772 = vadd.f32 %v3687, %v3771
  %v3773 = vpop.f32.mrf.mxu0
  %v3774 = vpop.f32.mrf.mxu0
  %v3775 = vadd.f32 %v3687, %v3774
  %v3776 = vpop.f32.mrf.mxu0
  %3777 = vmatprep.mubr.bf16.mxu0 0
  %3778 = vmatmul.mubr.bf16.gmra.mxu0 %v3663
  %v3779 = vpop.f32.mrf.mxu0
  %v3780 = vadd.f32 %v3687, %v3779
  %v3781 = vpop.f32.mrf.mxu0
  %v3782 = vpop.f32.mrf.mxu0
  %v3783 = vadd.f32 %v3687, %v3782
  %v3784 = vpop.f32.mrf.mxu0
  %3785 = vmatprep.mubr.bf16.mxu0 0
  %3786 = vmatmul.mubr.bf16.gmra.mxu0 %v3664
  %v3787 = vpop.f32.mrf.mxu0
  %v3788 = vadd.f32 %v3687, %v3787
  %v3789 = vpop.f32.mrf.mxu0
  %v3790 = vpop.f32.mrf.mxu0
  %v3791 = vadd.f32 %v3687, %v3790
  %v3792 = vpop.f32.mrf.mxu0
  %3793 = vmatprep.mubr.bf16.mxu0 0
  %3794 = vmatmul.mubr.bf16.gmra.mxu0 %v3665
  %v3795 = vpop.f32.mrf.mxu0
  %v3796 = vadd.f32 %v3687, %v3795
  %v3797 = vpop.f32.mrf.mxu0
  %v3798 = vpop.f32.mrf.mxu0
  %v3799 = vadd.f32 %v3687, %v3798
  %v3800 = vpop.f32.mrf.mxu0
  %3801 = vdwg.mxu0
  %3802 = vst [vmem:[%s20] sm:$0xff] %v3772
  %3803 = vst [vmem:[%s20 + $0x8] sm:$0xff] %v3775
  %3804 = vst [vmem:[%s20 + $0x10] sm:$0xff] %v3780
  %3805 = vst [vmem:[%s20 + $0x18] sm:$0xff] %v3783
  %3806 = vst [vmem:[%s20 + $0x20] sm:$0xff] %v3788
  %3807 = vst [vmem:[%s20 + $0x28] sm:$0xff] %v3791
  %3808 = vst [vmem:[%s20 + $0x30] sm:$0xff] %v3796
  %3809 = vst [vmem:[%s20 + $0x38] sm:$0xff] %v3799
  // Predicated region
  $region82: #{drgcn_forward.1} parent=0 // pred_check
    _
  $region83: #{drgcn_forward.1} parent=0 // pred_check_branch
    %3811 = sbr.rel (0) target = $region85
  $region84: #{drgcn_forward.1} parent=0 // pred_region
    _
  $region85: #{drgcn_forward.1} parent=0 // pred_fallthru
    _
  // Predicated region
  $region86: #{drgcn_forward.1} parent=0 // pred_check
    _
  $region87: #{drgcn_forward.1} parent=0 // pred_check_branch
    %3813 = sbr.rel (0) target = $region89
  $region88: #{drgcn_forward.1} parent=0 // pred_region
    _
  $region89: #{drgcn_forward.1} parent=0 // pred_fallthru
    _

</llo_original>
